<compile_context>
chip_gen: v6e
topology: v6e:2x2x1
jax: 0.10.0
libtpu: 0.0.40
codegen_flags: <defaults>
</compile_context>

<pallas_src>
import math
from functools import partial

import jax
import jax.numpy as jnp
import numpy as np
from jax import lax
from jax.experimental import pallas as pl
from jax.experimental.pallas import tpu as pltpu

_LN_EPS = 1e-5


def _round_up(v, m):
    return ((v + m - 1) // m) * m


def _erf(x):
    # Abramowitz & Stegun 7.1.26 polynomial (max abs err ~1.5e-7), built from
    # exp/abs/where only so it lowers cleanly in Mosaic (matches exact erf-GELU).
    a1, a2, a3, a4, a5 = (0.254829592, -0.284496736, 1.421413741,
                          -1.453152027, 1.061405429)
    p = 0.3275911
    s = jnp.where(x >= 0.0, 1.0, -1.0)
    ax = jnp.abs(x)
    t = 1.0 / (1.0 + p * ax)
    poly = ((((a5 * t + a4) * t + a3) * t + a2) * t + a1) * t
    return s * (1.0 - poly * jnp.exp(-ax * ax))


def _gelu_exact(x):
    return 0.5 * x * (1.0 + _erf(x * (1.0 / math.sqrt(2.0))))


def _gelu_tanh(x):
    # tanh-approximate GELU for the fast path (EUP tanh; far fewer VALU ops than erf poly).
    c = 0.7978845608028654  # sqrt(2/pi)
    return 0.5 * x * (1.0 + jnp.tanh(c * (x + 0.044715 * x * x * x)))


def _layernorm(x, g, b, d_true):
    """LayerNorm over the last dim; if the lane dim is zero-padded beyond d_true,
    statistics are computed over the true d_true columns only (pad cols of x are 0)."""
    d_pad = x.shape[-1]
    if d_true == d_pad:
        mu = jnp.mean(x, axis=-1, keepdims=True)
        diff = x - mu
        var = jnp.mean(diff * diff, axis=-1, keepdims=True)
    else:
        inv_d = 1.0 / d_true
        mu = jnp.sum(x, axis=-1, keepdims=True) * inv_d          # pad cols are exactly 0
        mask = lax.broadcasted_iota(jnp.int32, x.shape, x.ndim - 1) < d_true
        diff = jnp.where(mask, x - mu, 0.0)
        var = jnp.sum(diff * diff, axis=-1, keepdims=True) * inv_d
    # gamma/beta are zero in pad columns, so padded outputs stay exactly 0.
    return diff * lax.rsqrt(var + _LN_EPS) * g + b


# --------------------------------- kernel ---------------------------------

def encoder_layer_kernel(x_ref,
                         wqkv_ref, bqkv_ref, wo_ref, bo_ref,
                         ln1g_ref, ln1b_ref,
                         w1_ref, b1_ref, w2_ref, b2_ref,
                         ln2g_ref, ln2b_ref,
                         o_ref, attn_slab_ref, *,
                         num_heads, dim_head, batch_block, seq_len, d_true,
                         compute_dtype, precise):
    n = batch_block * seq_len
    e = num_heads * dim_head
    scale = 1.0 / math.sqrt(dim_head)

    x = x_ref[...]                               # (n, Dp)
    x_f32 = x.astype(jnp.float32)                # residual / LN path stays f32
    x_mm = x.astype(compute_dtype)               # MXU operand dtype

    # ---- fused QKV: one lane-dense (n, 3E) matmul + one bias add (hoisted) ----
    qkv = jnp.dot(x_mm, wqkv_ref[...], preferred_element_type=jnp.float32) + bqkv_ref[...]
    qkv = qkv.astype(compute_dtype)

    # ---- per-head attention over the batch block ----
    # Demo config has num_heads=2, so this static loop is exactly the review's "unroll<=2".
    # TODO(synk): for large head counts (e.g. 12) switch to lax.fori_loop over 128-lane
    # aligned head pairs to bound live ranges / instruction stream.
    for h in range(num_heads):
        q_b = qkv[:, h * dim_head:(h + 1) * dim_head].reshape(batch_block, seq_len, dim_head)
        k_b = qkv[:, e + h * dim_head: e + (h + 1) * dim_head].reshape(batch_block, seq_len, dim_head)
        v_b = qkv[:, 2 * e + h * dim_head: 2 * e + (h + 1) * dim_head].reshape(batch_block, seq_len, dim_head)

        s = jnp.einsum('bqd,bkd->bqk', q_b, k_b,
                       preferred_element_type=jnp.float32) * scale       # (BB, S, S) f32
        s = s - jnp.max(s, axis=-1, keepdims=True)
        p = jnp.exp(s)
        denom = jnp.sum(p, axis=-1, keepdims=True)
        if precise:
            p = p / denom
        else:
            p = p * pl.reciprocal(denom, approx=True)                    # EUP slot

        o_b = jnp.einsum('bqk,bkd->bqd', p.astype(compute_dtype), v_b,
                         preferred_element_type=jnp.float32)             # (BB, S, Dh)
        attn_slab_ref[:, h * dim_head:(h + 1) * dim_head] = o_b.reshape(n, dim_head)

    # ---- output projection: single full-depth (K = E) matmul ----
    attn = jnp.dot(attn_slab_ref[...].astype(compute_dtype), wo_ref[...],
                   preferred_element_type=jnp.float32) + bo_ref[...]     # (n, Dp)

    h1 = _layernorm(x_f32 + attn, ln1g_ref[...], ln1b_ref[...], d_true)  # post-norm

    # ---- feed-forward ----
    ff = jnp.dot(h1.astype(compute_dtype), w1_ref[...],
                 preferred_element_type=jnp.float32) + b1_ref[...]
    ff = _gelu_exact(ff) if precise else _gelu_tanh(ff)
    ff = jnp.dot(ff.astype(compute_dtype), w2_ref[...],
                 preferred_element_type=jnp.float32) + b2_ref[...]

    out = _layernorm(h1 + ff, ln2g_ref[...], ln2b_ref[...], d_true)
    o_ref[...] = out.astype(o_ref.dtype)


# --------------------------------- wrapper ---------------------------------

def _vmem_capacity_bytes():
    """Per-core VMEM capacity; conservative (v7x 64 MiB/TC) fallback if unavailable."""
    try:
        info = pltpu.get_tpu_info()
        for name in ("vmem_capacity_bytes", "vmem_bytes", "vmem_size_bytes"):
            v = getattr(info, name, None)
            if v:
                return int(v)
    except Exception:
        pass
    return 64 * 1024 * 1024


def _pick_batch_block(B, S, d_pad, e, f_pad, weight_bytes, budget_bytes):
    """Largest BB dividing B that (a) keeps >=2 grid steps (both v7x TensorCores busy),
    (b) keeps the block row count 8-aligned, and (c) fits the VMEM budget."""
    def footprint(bb):
        rows = bb * S
        f32 = 4
        io = 2 * 2 * rows * d_pad * f32                 # x + out tiles, double-buffered
        inter = f32 * (rows * 3 * e                     # fused qkv slab
                       + rows * e                       # attention-output scratch slab
                       + 3 * bb * S * S                 # scores / probs temporaries
                       + 2 * rows * d_pad               # h1 / residual
                       + 2 * rows * f_pad)              # FFN intermediate (+ GELU temp)
        return io + inter + weight_bytes
    best = 1
    for bb in range(1, B + 1):
        if B % bb:
            continue
        if B >= 2 and B // bb < 2:      # keep grid >= 2 so the batch axis can shard on v7x
            continue
        if (bb * S) % 8 and bb != B:    # block rows must be 8-aligned (or full array)
            continue
        if footprint(bb) <= budget_bytes:
            best = bb
    if (best * S) % 8 and best != B:
        best = B                         # full-array block is always layout-legal
    return best


def _prepare_layer_params(params, num_heads, dim_head, compute_dtype, d_pad, f_pad):
    """Fuse wq|wk|wv into one (D,3E) weight / (1,3E) bias, zero-pad the model and FF dims
    to lane multiples, and cast matmul weights to the compute dtype. Gamma/beta/bias pads
    are zero so padded columns stay exactly zero through the kernel."""
    (wq, bq, wk, bk, wv, bv, wo, bo, ln1g, ln1b,
     w1, b1, w2, b2, ln2g, ln2b) = params
    D, E = wq.shape
    assert E == num_heads * dim_head

    def pad_rows(w, to):
        return jnp.pad(w, ((0, to - w.shape[0]), (0, 0)))

    def pad_cols(w, to):
        return jnp.pad(w, ((0, 0), (0, to - w.shape[1])))

    wqkv = jnp.concatenate([wq, wk, wv], axis=1)          # (D, 3E), '(h d)' column order
    bqkv = jnp.concatenate([bq, bk, bv], axis=1)          # (1, 3E)

    return (pad_rows(wqkv, d_pad).astype(compute_dtype),
            bqkv.astype(jnp.float32),
            pad_cols(wo, d_pad).astype(compute_dtype),                    # (E, Dp)
            pad_cols(bo, d_pad).astype(jnp.float32),
            pad_cols(ln1g, d_pad).astype(jnp.float32),
            pad_cols(ln1b, d_pad).astype(jnp.float32),
            pad_cols(pad_rows(w1, d_pad), f_pad).astype(compute_dtype),   # (Dp, Fp)
            pad_cols(b1, f_pad).astype(jnp.float32),
            pad_cols(pad_rows(w2, f_pad), d_pad).astype(compute_dtype),   # (Fp, Dp)
            pad_cols(b2, d_pad).astype(jnp.float32),
            pad_cols(ln2g, d_pad).astype(jnp.float32),
            pad_cols(ln2b, d_pad).astype(jnp.float32))


def _const_spec(a, single_buffer):
    """Full-array BlockSpec with a constant index map; single-buffered when supported
    (constant weights gain nothing from double-buffering and would double VMEM use)."""
    nd = a.ndim
    idx = lambda i, _nd=nd: (0,) * _nd
    if single_buffer and hasattr(pl, "Buffered"):
        try:
            return pl.BlockSpec(a.shape, idx, pipeline_mode=pl.Buffered(1))
        except Exception:
            pass
    return pl.BlockSpec(a.shape, idx)


def encoder_layer(x, params, *, num_heads, dim_head, precise=False, batch_block=None):
    B, S, D = x.shape
    E = num_heads * dim_head
    dim_ff = params[10].shape[-1]     # w1: (D, dim_ff)
    d_out = params[12].shape[-1]      # w2: (dim_ff, d_out)
    # residual structure (x + attn, h1 + ff) requires dim_out == dim
    assert d_out == D, "Encoder residual requires dim_out == dim"

    compute_dtype = jnp.float32 if precise else jnp.bfloat16
    d_pad = _round_up(D, 128)         # lane-dense model dim (no-op at real ViT sizes)
    f_pad = _round_up(dim_ff, 128)

    prepped = _prepare_layer_params(params, num_heads, dim_head, compute_dtype, d_pad, f_pad)
    weight_bytes = sum(int(np.prod(p.shape)) * p.dtype.itemsize for p in prepped)

    vmem_cap = _vmem_capacity_bytes()
    vmem_limit = int(0.75 * vmem_cap)               # ~48 MiB on v7x, ~96 MiB on v5e/v6e

    if batch_block is None:
        BB = _pick_batch_block(B, S, d_pad, E, f_pad, weight_bytes,
                               budget_bytes=int(0.6 * vmem_limit))
    else:
        BB = batch_block
    assert B % BB == 0
    rows = BB * S
    assert rows % 8 == 0 or rows == B * S

    x2 = x.reshape(B * S, D)
    if d_pad != D:
        x2 = jnp.pad(x2, ((0, 0), (0, d_pad - D)))  # pad cols are zero -> math unchanged

    # Advisory cost estimate so XLA doesn't treat the call as zero-cost.
    n_rows = B * S
    flops = (2 * n_rows * d_pad * 3 * E               # fused QKV projection
             + 4 * B * num_heads * S * S * dim_head   # scores + p@v
             + 2 * n_rows * E * d_pad                 # output projection
             + 2 * n_rows * d_pad * f_pad             # FFN linear 1
             + 2 * n_rows * f_pad * d_pad)            # FFN linear 2
    transcendentals = B * num_heads * S * S + n_rows * f_pad
    bytes_accessed = int(2 * n_rows * d_pad * x.dtype.itemsize + weight_bytes)
    cost = pl.CostEstimate(flops=int(flops), transcendentals=int(transcendentals),
                           bytes_accessed=bytes_accessed)

    kernel = partial(encoder_layer_kernel,
                     num_heads=num_heads, dim_head=dim_head,
                     batch_block=BB, seq_len=S, d_true=D,
                     compute_dtype=compute_dtype, precise=precise)

    def run(single_buffer_weights):
        in_specs = [pl.BlockSpec((rows, d_pad), lambda i: (i, 0))]
        in_specs += [_const_spec(p, single_buffer_weights) for p in prepped]
        return pl.pallas_call(
            kernel,
            out_shape=jax.ShapeDtypeStruct((B * S, d_pad), x.dtype),
            grid=(B // BB,),
            in_specs=in_specs,
            out_specs=pl.BlockSpec((rows, d_pad), lambda i: (i, 0)),
            scratch_shapes=[pltpu.VMEM((rows, E), jnp.float32)],   # attention-output slab
            compiler_params=pltpu.CompilerParams(
                dimension_semantics=("parallel",),    # batch tiles are independent
                vmem_limit_bytes=vmem_limit),
            cost_estimate=cost,
        )(x2, *prepped)

    if hasattr(pl, "Buffered"):
        try:
            out2 = run(True)
        except Exception:
            out2 = run(False)       # fall back to default buffering if Buffered(1) rejected
    else:
        out2 = run(False)

    if d_pad != D:
        out2 = out2[:, :D]
    return out2.reshape(B, S, D)


def encoder_forward(x, layer_params, *, num_heads, dim_head, precise=False):
    for params in layer_params:
        x = encoder_layer(x, params, num_heads=num_heads, dim_head=dim_head,
                          precise=precise)
    return x


# ---------------- deterministic parameter init (synthetic) ----------------

def init_layer_params(key, dim, dim_head, num_heads, dim_ff, dim_out):
    E = num_heads * dim_head
    ks = jax.random.split(key, 12)

    def w(k, din, dout):
        return jax.random.normal(k, (din, dout), jnp.float32) / math.sqrt(din)

    def b(k, dout):
        return jax.random.normal(k, (1, dout), jnp.float32) * 0.02

    wq, bq = w(ks[0], dim, E), b(ks[1], E)
    wk, bk = w(ks[2], dim, E), b(ks[3], E)
    wv, bv = w(ks[4], dim, E), b(ks[5], E)
    wo, bo = w(ks[6], E, dim), b(ks[7], dim)
    ln1g = jnp.ones((1, dim), jnp.float32)
    ln1b = jnp.zeros((1, dim), jnp.float32)
    w1, b1 = w(ks[8], dim, dim_ff), b(ks[9], dim_ff)
    w2, b2 = w(ks[10], dim_ff, dim_out), b(ks[11], dim_out)
    ln2g = jnp.ones((1, dim_out), jnp.float32)
    ln2b = jnp.zeros((1, dim_out), jnp.float32)
    return (wq, bq, wk, bk, wv, bv, wo, bo, ln1g, ln1b,
            w1, b1, w2, b2, ln2g, ln2b)


# ---------------- pure-JAX references for validation ----------------

def _ln_ref(v, g, b):
    mu = jnp.mean(v, axis=-1, keepdims=True)
    var = jnp.mean((v - mu) ** 2, axis=-1, keepdims=True)
    return (v - mu) * lax.rsqrt(var + _LN_EPS) * g + b


def encoder_ref(x, layer_params, *, num_heads, dim_head):
    """f32 reference matching the PyTorch module."""
    for (wq, bq, wk, bk, wv, bv, wo, bo, ln1g, ln1b,
         w1, b1, w2, b2, ln2g, ln2b) in layer_params:
        B, S, D = x.shape
        E = num_heads * dim_head
        q = (x @ wq + bq).reshape(B, S, num_heads, dim_head).transpose(0, 2, 1, 3)
        k = (x @ wk + bk).reshape(B, S, num_heads, dim_head).transpose(0, 2, 1, 3)
        v = (x @ wv + bv).reshape(B, S, num_heads, dim_head).transpose(0, 2, 1, 3)
        s = jnp.einsum('bhid,bhjd->bhij', q, k) / math.sqrt(dim_head)
        p = jax.nn.softmax(s, axis=-1)
        o = jnp.einsum('bhij,bhjd->bhid', p, v).transpose(0, 2, 1, 3).reshape(B, S, E)
        attn = o @ wo + bo
        h1 = _ln_ref(x + attn, ln1g, ln1b)
        ff = jax.nn.gelu(h1 @ w1 + b1, approximate=False) @ w2 + b2
        x = _ln_ref(h1 + ff, ln2g, ln2b)
    return x


def encoder_ref_bf16(x, layer_params, *, num_heads, dim_head):
    """Reference mirroring the kernel fast path's cast points (bf16 MXU operands, f32
    accumulation, f32 LN/softmax, tanh GELU). Remaining differences vs the kernel are
    limited to the approximate softmax reciprocal and summation order."""
    cd = jnp.bfloat16
    for (wq, bq, wk, bk, wv, bv, wo, bo, ln1g, ln1b,
         w1, b1, w2, b2, ln2g, ln2b) in layer_params:
        B, S, D = x.shape
        E = num_heads * dim_head
        xc = x.astype(cd)

        def proj(w, bias):
            return jnp.einsum('bsd,de->bse', xc, w.astype(cd),
                              preferred_element_type=jnp.float32) + bias

        q = proj(wq, bq).astype(cd).reshape(B, S, num_heads, dim_head).transpose(0, 2, 1, 3)
        k = proj(wk, bk).astype(cd).reshape(B, S, num_heads, dim_head).transpose(0, 2, 1, 3)
        v = proj(wv, bv).astype(cd).reshape(B, S, num_heads, dim_head).transpose(0, 2, 1, 3)
        s = jnp.einsum('bhid,bhjd->bhij', q, k,
                       preferred_element_type=jnp.float32) / math.sqrt(dim_head)
        s = s - jnp.max(s, axis=-1, keepdims=True)
        p = jnp.exp(s)
        p = p / jnp.sum(p, axis=-1, keepdims=True)
        o = jnp.einsum('bhij,bhjd->bhid', p.astype(cd), v,
                       preferred_element_type=jnp.float32)
        o = o.transpose(0, 2, 1, 3).reshape(B, S, E).astype(cd)
        attn = jnp.einsum('bse,ed->bsd', o, wo.astype(cd),
                          preferred_element_type=jnp.float32) + bo
        h1 = _ln_ref(x + attn, ln1g, ln1b)
        ff = jnp.einsum('bsd,df->bsf', h1.astype(cd), w1.astype(cd),
                        preferred_element_type=jnp.float32) + b1
        ff = jax.nn.gelu(ff, approximate=True)
        ff = jnp.einsum('bsf,fd->bsd', ff.astype(cd), w2.astype(cd),
                        preferred_element_type=jnp.float32) + b2
        x = _ln_ref(h1 + ff, ln2g, ln2b)
    return x


if __name__ == "__main__":
    B, S, D = 2, 8, 32           # batch, seq, model dim
    num_heads, dim_head = 2, 16  # embed_dim = 32
    dim_ff = 4 * D
    dim_out = D                  # residual structure requires dim_out == dim
    num_layers = 1

    key = jax.random.PRNGKey(0)
    kx, kp = jax.random.split(key)
    x = jax.random.normal(kx, (B, S, D), jnp.float32)

    layer_keys = jax.random.split(kp, num_layers)
    layer_params = [
        init_layer_params(layer_keys[i], D, dim_head, num_heads, dim_ff,
                          D if i != num_layers - 1 else dim_out)
        for i in range(num_layers)
    ]

    ref = jax.block_until_ready(
        encoder_ref(x, layer_params, num_heads=num_heads, dim_head=dim_head))

    # 1) Precise path (f32 matmuls, exact softmax divide, exact GELU): tight check vs f32 ref.
    out_precise = jax.block_until_ready(
        encoder_forward(x, layer_params, num_heads=num_heads, dim_head=dim_head,
                        precise=True))
    assert out_precise.shape == (B, S, dim_out), out_precise.shape
    np.testing.assert_allclose(np.asarray(out_precise), np.asarray(ref),
                               atol=1e-4, rtol=1e-4)

    # 2) Fast path (bf16 MXU operands, approx softmax reciprocal, tanh GELU): compared
    #    against a bf16-quantized reference with matching cast points at a tight bound,
    #    so structural bugs (head permutation / bias errors) cannot hide in the tolerance.
    ref_bf16 = jax.block_until_ready(
        encoder_ref_bf16(x, layer_params, num_heads=num_heads, dim_head=dim_head))
    out_fast = jax.block_until_ready(
        encoder_forward(x, layer_params, num_heads=num_heads, dim_head=dim_head,
                        precise=False))
    assert out_fast.shape == (B, S, dim_out), out_fast.shape
    np.testing.assert_allclose(np.asarray(out_fast), np.asarray(ref_bf16),
                               atol=2e-2, rtol=2e-2)

    print("KERNEL_OK")
</pallas_src>

<mosaic_0001>
module attributes {stable_mosaic.version = 11 : i64} {
  func.func @encoder_layer_kernel(%arg0: i32, %arg1: memref<8x128xf32, #tpu.memory_space<vmem>>, %arg2: memref<128x96xf32, #tpu.memory_space<vmem>>, %arg3: memref<1x96xf32, #tpu.memory_space<vmem>>, %arg4: memref<32x128xf32, #tpu.memory_space<vmem>>, %arg5: memref<1x128xf32, #tpu.memory_space<vmem>>, %arg6: memref<1x128xf32, #tpu.memory_space<vmem>>, %arg7: memref<1x128xf32, #tpu.memory_space<vmem>>, %arg8: memref<128x128xf32, #tpu.memory_space<vmem>>, %arg9: memref<1x128xf32, #tpu.memory_space<vmem>>, %arg10: memref<128x128xf32, #tpu.memory_space<vmem>>, %arg11: memref<1x128xf32, #tpu.memory_space<vmem>>, %arg12: memref<1x128xf32, #tpu.memory_space<vmem>>, %arg13: memref<1x128xf32, #tpu.memory_space<vmem>>, %arg14: memref<8x128xf32, #tpu.memory_space<vmem>>, %arg15: memref<8x32xf32, #tpu.memory_space<vmem>>) attributes {dimension_semantics = [#tpu.dimension_semantics<parallel>], iteration_bounds = array<i64: 2>, scalar_prefetch = 0 : i64, scratch_operands = 1 : i64, tpu.core_type = #tpu.core_type<tc>, window_params = [{transform_indices = @transform_0, window_bounds = array<i64: 8, 128>}, {pipeline_mode = #tpu.pipeline_mode<synchronous>, transform_indices = @transform_1, window_bounds = array<i64: 128, 96>}, {pipeline_mode = #tpu.pipeline_mode<synchronous>, transform_indices = @transform_2, window_bounds = array<i64: 1, 96>}, {pipeline_mode = #tpu.pipeline_mode<synchronous>, transform_indices = @transform_3, window_bounds = array<i64: 32, 128>}, {pipeline_mode = #tpu.pipeline_mode<synchronous>, transform_indices = @transform_4, window_bounds = array<i64: 1, 128>}, {pipeline_mode = #tpu.pipeline_mode<synchronous>, transform_indices = @transform_5, window_bounds = array<i64: 1, 128>}, {pipeline_mode = #tpu.pipeline_mode<synchronous>, transform_indices = @transform_6, window_bounds = array<i64: 1, 128>}, {pipeline_mode = #tpu.pipeline_mode<synchronous>, transform_indices = @transform_7, window_bounds = array<i64: 128, 128>}, {pipeline_mode = #tpu.pipeline_mode<synchronous>, transform_indices = @transform_8, window_bounds = array<i64: 1, 128>}, {pipeline_mode = #tpu.pipeline_mode<synchronous>, transform_indices = @transform_9, window_bounds = array<i64: 128, 128>}, {pipeline_mode = #tpu.pipeline_mode<synchronous>, transform_indices = @transform_10, window_bounds = array<i64: 1, 128>}, {pipeline_mode = #tpu.pipeline_mode<synchronous>, transform_indices = @transform_11, window_bounds = array<i64: 1, 128>}, {pipeline_mode = #tpu.pipeline_mode<synchronous>, transform_indices = @transform_12, window_bounds = array<i64: 1, 128>}, {transform_indices = @transform_13, window_bounds = array<i64: 8, 128>}]} {
    %c0 = arith.constant 0 : index
    %c0_0 = arith.constant 0 : index
    %0 = vector.load %arg1[%c0, %c0_0] : memref<8x128xf32, #tpu.memory_space<vmem>>, vector<8x128xf32>
    %c0_1 = arith.constant 0 : index
    %c0_2 = arith.constant 0 : index
    %1 = vector.load %arg2[%c0_1, %c0_2] : memref<128x96xf32, #tpu.memory_space<vmem>>, vector<128x96xf32>
    %cst = arith.constant dense<0.000000e+00> : vector<8x96xf32>
    %2 = tpu.matmul %0, %1, %cst {dimension_numbers = #tpu.dot_dimension_numbers<[1], [0], [0], [1], [0, 0, 1, 1], [], []>} : vector<8x128xf32>, vector<128x96xf32>, vector<8x96xf32> -> vector<8x96xf32>
    %c0_3 = arith.constant 0 : index
    %c0_4 = arith.constant 0 : index
    %3 = vector.load %arg3[%c0_3, %c0_4] : memref<1x96xf32, #tpu.memory_space<vmem>>, vector<1x96xf32>
    %4 = vector.broadcast %3 : vector<1x96xf32> to vector<8x96xf32>
    %5 = arith.addf %2, %4 : vector<8x96xf32>
    %6 = vector.extract_strided_slice %5 {offsets = [0, 0], sizes = [8, 16], strides = [1, 1]} : vector<8x96xf32> to vector<8x16xf32>
    %7 = vector.shape_cast %6 : vector<8x16xf32> to vector<1x8x16xf32>
    %8 = vector.extract_strided_slice %5 {offsets = [0, 32], sizes = [8, 16], strides = [1, 1]} : vector<8x96xf32> to vector<8x16xf32>
    %9 = vector.shape_cast %8 : vector<8x16xf32> to vector<1x8x16xf32>
    %10 = vector.extract_strided_slice %5 {offsets = [0, 64], sizes = [8, 16], strides = [1, 1]} : vector<8x96xf32> to vector<8x16xf32>
    %11 = vector.shape_cast %10 : vector<8x16xf32> to vector<1x8x16xf32>
    "tpu.trace_start"() <{level = 10 : i32, message = "bqd,bkd->bqk"}> : () -> ()
    %cst_5 = arith.constant dense<0.000000e+00> : vector<1x8x8xf32>
    %12 = tpu.matmul %7, %9, %cst_5 {dimension_numbers = #tpu.dot_dimension_numbers<[2], [2], [1], [1], [0, 0, 0, 1, 1, 1], [0], [0]>} : vector<1x8x16xf32>, vector<1x8x16xf32>, vector<1x8x8xf32> -> vector<1x8x8xf32>
    "tpu.trace_stop"() : () -> ()
    %cst_6 = arith.constant 2.500000e-01 : f32
    %13 = vector.broadcast %cst_6 : f32 to vector<1x8x8xf32>
    %14 = arith.mulf %12, %13 : vector<1x8x8xf32>
    %cst_7 = arith.constant dense<0xFF800000> : vector<1x8xf32>
    %15 = vector.multi_reduction <maximumf>, %14, %cst_7 [2] : vector<1x8x8xf32> to vector<1x8xf32>
    %16 = vector.shape_cast %15 : vector<1x8xf32> to vector<1x8x1xf32>
    %17 = vector.broadcast %16 : vector<1x8x1xf32> to vector<1x8x8xf32>
    %18 = arith.subf %14, %17 : vector<1x8x8xf32>
    %19 = math.exp %18 : vector<1x8x8xf32>
    %cst_8 = arith.constant dense<0.000000e+00> : vector<1x8xf32>
    %20 = vector.multi_reduction <add>, %19, %cst_8 [2] : vector<1x8x8xf32> to vector<1x8xf32>
    %21 = vector.shape_cast %20 : vector<1x8xf32> to vector<1x8x1xf32>
    %22 = vector.broadcast %21 : vector<1x8x1xf32> to vector<1x8x8xf32>
    %23 = arith.divf %19, %22 : vector<1x8x8xf32>
    "tpu.trace_start"() <{level = 10 : i32, message = "bqk,bkd->bqd"}> : () -> ()
    %cst_9 = arith.constant dense<0.000000e+00> : vector<1x8x16xf32>
    %24 = tpu.matmul %23, %11, %cst_9 {dimension_numbers = #tpu.dot_dimension_numbers<[2], [1], [1], [2], [0, 0, 0, 1, 1, 2], [0], [0]>} : vector<1x8x8xf32>, vector<1x8x16xf32>, vector<1x8x16xf32> -> vector<1x8x16xf32>
    "tpu.trace_stop"() : () -> ()
    %25 = vector.shape_cast %24 : vector<1x8x16xf32> to vector<8x16xf32>
    %c0_10 = arith.constant 0 : index
    %c0_11 = arith.constant 0 : index
    %26 = vector.load %arg15[%c0_10, %c0_11] : memref<8x32xf32, #tpu.memory_space<vmem>>, vector<8x16xf32>
    tpu.vector_store %arg15[%c0_10, %c0_11], %25 {strides = array<i32>} : memref<8x32xf32, #tpu.memory_space<vmem>>, vector<8x16xf32>,
    %27 = vector.extract_strided_slice %5 {offsets = [0, 16], sizes = [8, 16], strides = [1, 1]} : vector<8x96xf32> to vector<8x16xf32>
    %28 = vector.shape_cast %27 : vector<8x16xf32> to vector<1x8x16xf32>
    %29 = vector.extract_strided_slice %5 {offsets = [0, 48], sizes = [8, 16], strides = [1, 1]} : vector<8x96xf32> to vector<8x16xf32>
    %30 = vector.shape_cast %29 : vector<8x16xf32> to vector<1x8x16xf32>
    %31 = vector.extract_strided_slice %5 {offsets = [0, 80], sizes = [8, 16], strides = [1, 1]} : vector<8x96xf32> to vector<8x16xf32>
    %32 = vector.shape_cast %31 : vector<8x16xf32> to vector<1x8x16xf32>
    "tpu.trace_start"() <{level = 10 : i32, message = "bqd,bkd->bqk"}> : () -> ()
    %cst_12 = arith.constant dense<0.000000e+00> : vector<1x8x8xf32>
    %33 = tpu.matmul %28, %30, %cst_12 {dimension_numbers = #tpu.dot_dimension_numbers<[2], [2], [1], [1], [0, 0, 0, 1, 1, 1], [0], [0]>} : vector<1x8x16xf32>, vector<1x8x16xf32>, vector<1x8x8xf32> -> vector<1x8x8xf32>
    "tpu.trace_stop"() : () -> ()
    %cst_13 = arith.constant 2.500000e-01 : f32
    %34 = vector.broadcast %cst_13 : f32 to vector<1x8x8xf32>
    %35 = arith.mulf %33, %34 : vector<1x8x8xf32>
    %cst_14 = arith.constant dense<0xFF800000> : vector<1x8xf32>
    %36 = vector.multi_reduction <maximumf>, %35, %cst_14 [2] : vector<1x8x8xf32> to vector<1x8xf32>
    %37 = vector.shape_cast %36 : vector<1x8xf32> to vector<1x8x1xf32>
    %38 = vector.broadcast %37 : vector<1x8x1xf32> to vector<1x8x8xf32>
    %39 = arith.subf %35, %38 : vector<1x8x8xf32>
    %40 = math.exp %39 : vector<1x8x8xf32>
    %cst_15 = arith.constant dense<0.000000e+00> : vector<1x8xf32>
    %41 = vector.multi_reduction <add>, %40, %cst_15 [2] : vector<1x8x8xf32> to vector<1x8xf32>
    %42 = vector.shape_cast %41 : vector<1x8xf32> to vector<1x8x1xf32>
    %43 = vector.broadcast %42 : vector<1x8x1xf32> to vector<1x8x8xf32>
    %44 = arith.divf %40, %43 : vector<1x8x8xf32>
    "tpu.trace_start"() <{level = 10 : i32, message = "bqk,bkd->bqd"}> : () -> ()
    %cst_16 = arith.constant dense<0.000000e+00> : vector<1x8x16xf32>
    %45 = tpu.matmul %44, %32, %cst_16 {dimension_numbers = #tpu.dot_dimension_numbers<[2], [1], [1], [2], [0, 0, 0, 1, 1, 2], [0], [0]>} : vector<1x8x8xf32>, vector<1x8x16xf32>, vector<1x8x16xf32> -> vector<1x8x16xf32>
    "tpu.trace_stop"() : () -> ()
    %46 = vector.shape_cast %45 : vector<1x8x16xf32> to vector<8x16xf32>
    %c0_17 = arith.constant 0 : index
    %c16 = arith.constant 16 : index
    %47 = vector.load %arg15[%c0_17, %c16] : memref<8x32xf32, #tpu.memory_space<vmem>>, vector<8x16xf32>
    tpu.vector_store %arg15[%c0_17, %c16], %46 {strides = array<i32>} : memref<8x32xf32, #tpu.memory_space<vmem>>, vector<8x16xf32>,
    %c0_18 = arith.constant 0 : index
    %c0_19 = arith.constant 0 : index
    %48 = vector.load %arg15[%c0_18, %c0_19] : memref<8x32xf32, #tpu.memory_space<vmem>>, vector<8x32xf32>
    %c0_20 = arith.constant 0 : index
    %c0_21 = arith.constant 0 : index
    %49 = vector.load %arg4[%c0_20, %c0_21] : memref<32x128xf32, #tpu.memory_space<vmem>>, vector<32x128xf32>
    %cst_22 = arith.constant dense<0.000000e+00> : vector<8x128xf32>
    %50 = tpu.matmul %48, %49, %cst_22 {dimension_numbers = #tpu.dot_dimension_numbers<[1], [0], [0], [1], [0, 0, 1, 1], [], []>} : vector<8x32xf32>, vector<32x128xf32>, vector<8x128xf32> -> vector<8x128xf32>
    %c0_23 = arith.constant 0 : index
    %c0_24 = arith.constant 0 : index
    %51 = vector.load %arg5[%c0_23, %c0_24] : memref<1x128xf32, #tpu.memory_space<vmem>>, vector<1x128xf32>
    %52 = vector.broadcast %51 : vector<1x128xf32> to vector<8x128xf32>
    %53 = arith.addf %50, %52 : vector<8x128xf32>
    %54 = arith.addf %0, %53 : vector<8x128xf32>
    %c0_25 = arith.constant 0 : index
    %c0_26 = arith.constant 0 : index
    %55 = vector.load %arg6[%c0_25, %c0_26] : memref<1x128xf32, #tpu.memory_space<vmem>>, vector<1x128xf32>
    %c0_27 = arith.constant 0 : index
    %c0_28 = arith.constant 0 : index
    %56 = vector.load %arg7[%c0_27, %c0_28] : memref<1x128xf32, #tpu.memory_space<vmem>>, vector<1x128xf32>
    %cst_29 = arith.constant dense<0.000000e+00> : vector<8xf32>
    %57 = vector.multi_reduction <add>, %54, %cst_29 [1] : vector<8x128xf32> to vector<8xf32>
    %58 = vector.shape_cast %57 : vector<8xf32> to vector<8x1xf32>
    %cst_30 = arith.constant 3.125000e-02 : f32
    %59 = vector.broadcast %cst_30 : f32 to vector<8x1xf32>
    %60 = arith.mulf %58, %59 : vector<8x1xf32>
    %61 = tpu.iota {dimensions = array<i32: 1>} : vector<8x128xi32>
    %c32_i32 = arith.constant 32 : i32
    %62 = vector.broadcast %c32_i32 : i32 to vector<8x128xi32>
    %63 = arith.cmpi slt, %61, %62 : vector<8x128xi32>
    %64 = vector.broadcast %60 : vector<8x1xf32> to vector<8x128xf32>
    %65 = arith.subf %54, %64 : vector<8x128xf32>
    %cst_31 = arith.constant 0.000000e+00 : f32
    %66 = vector.broadcast %cst_31 : f32 to vector<8x128xf32>
    %67 = arith.select %63, %65, %66 : vector<8x128xi1>, vector<8x128xf32>
    %68 = arith.mulf %67, %67 : vector<8x128xf32>
    %cst_32 = arith.constant dense<0.000000e+00> : vector<8xf32>
    %69 = vector.multi_reduction <add>, %68, %cst_32 [1] : vector<8x128xf32> to vector<8xf32>
    %70 = vector.shape_cast %69 : vector<8xf32> to vector<8x1xf32>
    %cst_33 = arith.constant 3.125000e-02 : f32
    %71 = vector.broadcast %cst_33 : f32 to vector<8x1xf32>
    %72 = arith.mulf %70, %71 : vector<8x1xf32>
    %cst_34 = arith.constant 9.99999974E-6 : f32
    %73 = vector.broadcast %cst_34 : f32 to vector<8x1xf32>
    %74 = arith.addf %72, %73 : vector<8x1xf32>
    %75 = math.rsqrt %74 : vector<8x1xf32>
    %76 = vector.broadcast %75 : vector<8x1xf32> to vector<8x128xf32>
    %77 = arith.mulf %67, %76 : vector<8x128xf32>
    %78 = vector.broadcast %55 : vector<1x128xf32> to vector<8x128xf32>
    %79 = arith.mulf %77, %78 : vector<8x128xf32>
    %80 = vector.broadcast %56 : vector<1x128xf32> to vector<8x128xf32>
    %81 = arith.addf %79, %80 : vector<8x128xf32>
    %c0_35 = arith.constant 0 : index
    %c0_36 = arith.constant 0 : index
    %82 = vector.load %arg8[%c0_35, %c0_36] : memref<128x128xf32, #tpu.memory_space<vmem>>, vector<128x128xf32>
    %cst_37 = arith.constant dense<0.000000e+00> : vector<8x128xf32>
    %83 = tpu.matmul %81, %82, %cst_37 {dimension_numbers = #tpu.dot_dimension_numbers<[1], [0], [0], [1], [0, 0, 1, 1], [], []>} : vector<8x128xf32>, vector<128x128xf32>, vector<8x128xf32> -> vector<8x128xf32>
    %c0_38 = arith.constant 0 : index
    %c0_39 = arith.constant 0 : index
    %84 = vector.load %arg9[%c0_38, %c0_39] : memref<1x128xf32, #tpu.memory_space<vmem>>, vector<1x128xf32>
    %85 = vector.broadcast %84 : vector<1x128xf32> to vector<8x128xf32>
    %86 = arith.addf %83, %85 : vector<8x128xf32>
    %cst_40 = arith.constant 5.000000e-01 : f32
    %87 = vector.broadcast %cst_40 : f32 to vector<8x128xf32>
    %88 = arith.mulf %87, %86 : vector<8x128xf32>
    %cst_41 = arith.constant 0.707106769 : f32
    %89 = vector.broadcast %cst_41 : f32 to vector<8x128xf32>
    %90 = arith.mulf %86, %89 : vector<8x128xf32>
    %cst_42 = arith.constant 0.000000e+00 : f32
    %91 = vector.broadcast %cst_42 : f32 to vector<8x128xf32>
    %92 = arith.cmpf oge, %90, %91 : vector<8x128xf32>
    %cst_43 = arith.constant 1.000000e+00 : f32
    %cst_44 = arith.constant -1.000000e+00 : f32
    %93 = vector.broadcast %cst_43 : f32 to vector<8x128xf32>
    %94 = vector.broadcast %cst_44 : f32 to vector<8x128xf32>
    %95 = arith.select %92, %93, %94 : vector<8x128xi1>, vector<8x128xf32>
    %96 = math.absf %90 : vector<8x128xf32>
    %cst_45 = arith.constant 0.327591091 : f32
    %97 = vector.broadcast %cst_45 : f32 to vector<8x128xf32>
    %98 = arith.mulf %97, %96 : vector<8x128xf32>
    %cst_46 = arith.constant 1.000000e+00 : f32
    %99 = vector.broadcast %cst_46 : f32 to vector<8x128xf32>
    %100 = arith.addf %99, %98 : vector<8x128xf32>
    %cst_47 = arith.constant 1.000000e+00 : f32
    %101 = vector.broadcast %cst_47 : f32 to vector<8x128xf32>
    %102 = arith.divf %101, %100 : vector<8x128xf32>
    %cst_48 = arith.constant 1.06140542 : f32
    %103 = vector.broadcast %cst_48 : f32 to vector<8x128xf32>
    %104 = arith.mulf %103, %102 : vector<8x128xf32>
    %cst_49 = arith.constant -1.45315206 : f32
    %105 = vector.broadcast %cst_49 : f32 to vector<8x128xf32>
    %106 = arith.addf %104, %105 : vector<8x128xf32>
    %107 = arith.mulf %106, %102 : vector<8x128xf32>
    %cst_50 = arith.constant 1.42141378 : f32
    %108 = vector.broadcast %cst_50 : f32 to vector<8x128xf32>
    %109 = arith.addf %107, %108 : vector<8x128xf32>
    %110 = arith.mulf %109, %102 : vector<8x128xf32>
    %cst_51 = arith.constant -0.284496725 : f32
    %111 = vector.broadcast %cst_51 : f32 to vector<8x128xf32>
    %112 = arith.addf %110, %111 : vector<8x128xf32>
    %113 = arith.mulf %112, %102 : vector<8x128xf32>
    %cst_52 = arith.constant 0.254829586 : f32
    %114 = vector.broadcast %cst_52 : f32 to vector<8x128xf32>
    %115 = arith.addf %113, %114 : vector<8x128xf32>
    %116 = arith.mulf %115, %102 : vector<8x128xf32>
    %cst_53 = arith.constant 0.000000e+00 : f32
    %117 = vector.broadcast %cst_53 : f32 to vector<8x128xf32>
    %118 = arith.subf %117, %96 : vector<8x128xf32>
    %119 = arith.mulf %118, %96 : vector<8x128xf32>
    %120 = math.exp %119 : vector<8x128xf32>
    %121 = arith.mulf %116, %120 : vector<8x128xf32>
    %cst_54 = arith.constant 1.000000e+00 : f32
    %122 = vector.broadcast %cst_54 : f32 to vector<8x128xf32>
    %123 = arith.subf %122, %121 : vector<8x128xf32>
    %124 = arith.mulf %95, %123 : vector<8x128xf32>
    %cst_55 = arith.constant 1.000000e+00 : f32
    %125 = vector.broadcast %cst_55 : f32 to vector<8x128xf32>
    %126 = arith.addf %125, %124 : vector<8x128xf32>
    %127 = arith.mulf %88, %126 : vector<8x128xf32>
    %c0_56 = arith.constant 0 : index
    %c0_57 = arith.constant 0 : index
    %128 = vector.load %arg10[%c0_56, %c0_57] : memref<128x128xf32, #tpu.memory_space<vmem>>, vector<128x128xf32>
    %cst_58 = arith.constant dense<0.000000e+00> : vector<8x128xf32>
    %129 = tpu.matmul %127, %128, %cst_58 {dimension_numbers = #tpu.dot_dimension_numbers<[1], [0], [0], [1], [0, 0, 1, 1], [], []>} : vector<8x128xf32>, vector<128x128xf32>, vector<8x128xf32> -> vector<8x128xf32>
    %c0_59 = arith.constant 0 : index
    %c0_60 = arith.constant 0 : index
    %130 = vector.load %arg11[%c0_59, %c0_60] : memref<1x128xf32, #tpu.memory_space<vmem>>, vector<1x128xf32>
    %131 = vector.broadcast %130 : vector<1x128xf32> to vector<8x128xf32>
    %132 = arith.addf %129, %131 : vector<8x128xf32>
    %133 = arith.addf %81, %132 : vector<8x128xf32>
    %c0_61 = arith.constant 0 : index
    %c0_62 = arith.constant 0 : index
    %134 = vector.load %arg12[%c0_61, %c0_62] : memref<1x128xf32, #tpu.memory_space<vmem>>, vector<1x128xf32>
    %c0_63 = arith.constant 0 : index
    %c0_64 = arith.constant 0 : index
    %135 = vector.load %arg13[%c0_63, %c0_64] : memref<1x128xf32, #tpu.memory_space<vmem>>, vector<1x128xf32>
    %cst_65 = arith.constant dense<0.000000e+00> : vector<8xf32>
    %136 = vector.multi_reduction <add>, %133, %cst_65 [1] : vector<8x128xf32> to vector<8xf32>
    %137 = vector.shape_cast %136 : vector<8xf32> to vector<8x1xf32>
    %cst_66 = arith.constant 3.125000e-02 : f32
    %138 = vector.broadcast %cst_66 : f32 to vector<8x1xf32>
    %139 = arith.mulf %137, %138 : vector<8x1xf32>
    %140 = tpu.iota {dimensions = array<i32: 1>} : vector<8x128xi32>
    %c32_i32_67 = arith.constant 32 : i32
    %141 = vector.broadcast %c32_i32_67 : i32 to vector<8x128xi32>
    %142 = arith.cmpi slt, %140, %141 : vector<8x128xi32>
    %143 = vector.broadcast %139 : vector<8x1xf32> to vector<8x128xf32>
    %144 = arith.subf %133, %143 : vector<8x128xf32>
    %cst_68 = arith.constant 0.000000e+00 : f32
    %145 = vector.broadcast %cst_68 : f32 to vector<8x128xf32>
    %146 = arith.select %142, %144, %145 : vector<8x128xi1>, vector<8x128xf32>
    %147 = arith.mulf %146, %146 : vector<8x128xf32>
    %cst_69 = arith.constant dense<0.000000e+00> : vector<8xf32>
    %148 = vector.multi_reduction <add>, %147, %cst_69 [1] : vector<8x128xf32> to vector<8xf32>
    %149 = vector.shape_cast %148 : vector<8xf32> to vector<8x1xf32>
    %cst_70 = arith.constant 3.125000e-02 : f32
    %150 = vector.broadcast %cst_70 : f32 to vector<8x1xf32>
    %151 = arith.mulf %149, %150 : vector<8x1xf32>
    %cst_71 = arith.constant 9.99999974E-6 : f32
    %152 = vector.broadcast %cst_71 : f32 to vector<8x1xf32>
    %153 = arith.addf %151, %152 : vector<8x1xf32>
    %154 = math.rsqrt %153 : vector<8x1xf32>
    %155 = vector.broadcast %154 : vector<8x1xf32> to vector<8x128xf32>
    %156 = arith.mulf %146, %155 : vector<8x128xf32>
    %157 = vector.broadcast %134 : vector<1x128xf32> to vector<8x128xf32>
    %158 = arith.mulf %156, %157 : vector<8x128xf32>
    %159 = vector.broadcast %135 : vector<1x128xf32> to vector<8x128xf32>
    %160 = arith.addf %158, %159 : vector<8x128xf32>
    %c0_72 = arith.constant 0 : index
    %c0_73 = arith.constant 0 : index
    %161 = vector.load %arg14[%c0_72, %c0_73] : memref<8x128xf32, #tpu.memory_space<vmem>>, vector<8x128xf32>
    tpu.vector_store %arg14[%c0_72, %c0_73], %160 {strides = array<i32>} : memref<8x128xf32, #tpu.memory_space<vmem>>, vector<8x128xf32>,
    return
  }
  func.func @transform_0(%arg0: i32) -> (i32, i32) {
    %c0_i32 = arith.constant 0 : i32
    %c0_i32_0 = arith.constant 0 : i32
    return %arg0, %c0_i32 : i32, i32
  }
  func.func @transform_1(%arg0: i32) -> (i32, i32) {
    %c0_i32 = arith.constant 0 : i32
    %c0_i32_0 = arith.constant 0 : i32
    %c0_i32_1 = arith.constant 0 : i32
    return %c0_i32, %c0_i32_0 : i32, i32
  }
  func.func @transform_2(%arg0: i32) -> (i32, i32) {
    %c0_i32 = arith.constant 0 : i32
    %c0_i32_0 = arith.constant 0 : i32
    %c0_i32_1 = arith.constant 0 : i32
    return %c0_i32, %c0_i32_0 : i32, i32
  }
  func.func @transform_3(%arg0: i32) -> (i32, i32) {
    %c0_i32 = arith.constant 0 : i32
    %c0_i32_0 = arith.constant 0 : i32
    %c0_i32_1 = arith.constant 0 : i32
    return %c0_i32, %c0_i32_0 : i32, i32
  }
  func.func @transform_4(%arg0: i32) -> (i32, i32) {
    %c0_i32 = arith.constant 0 : i32
    %c0_i32_0 = arith.constant 0 : i32
    %c0_i32_1 = arith.constant 0 : i32
    return %c0_i32, %c0_i32_0 : i32, i32
  }
  func.func @transform_5(%arg0: i32) -> (i32, i32) {
    %c0_i32 = arith.constant 0 : i32
    %c0_i32_0 = arith.constant 0 : i32
    %c0_i32_1 = arith.constant 0 : i32
    return %c0_i32, %c0_i32_0 : i32, i32
  }
  func.func @transform_6(%arg0: i32) -> (i32, i32) {
    %c0_i32 = arith.constant 0 : i32
    %c0_i32_0 = arith.constant 0 : i32
    %c0_i32_1 = arith.constant 0 : i32
    return %c0_i32, %c0_i32_0 : i32, i32
  }
  func.func @transform_7(%arg0: i32) -> (i32, i32) {
    %c0_i32 = arith.constant 0 : i32
    %c0_i32_0 = arith.constant 0 : i32
    %c0_i32_1 = arith.constant 0 : i32
    return %c0_i32, %c0_i32_0 : i32, i32
  }
  func.func @transform_8(%arg0: i32) -> (i32, i32) {
    %c0_i32 = arith.constant 0 : i32
    %c0_i32_0 = arith.constant 0 : i32
    %c0_i32_1 = arith.constant 0 : i32
    return %c0_i32, %c0_i32_0 : i32, i32
  }
  func.func @transform_9(%arg0: i32) -> (i32, i32) {
    %c0_i32 = arith.constant 0 : i32
    %c0_i32_0 = arith.constant 0 : i32
    %c0_i32_1 = arith.constant 0 : i32
    return %c0_i32, %c0_i32_0 : i32, i32
  }
  func.func @transform_10(%arg0: i32) -> (i32, i32) {
    %c0_i32 = arith.constant 0 : i32
    %c0_i32_0 = arith.constant 0 : i32
    %c0_i32_1 = arith.constant 0 : i32
    return %c0_i32, %c0_i32_0 : i32, i32
  }
  func.func @transform_11(%arg0: i32) -> (i32, i32) {
    %c0_i32 = arith.constant 0 : i32
    %c0_i32_0 = arith.constant 0 : i32
    %c0_i32_1 = arith.constant 0 : i32
    return %c0_i32, %c0_i32_0 : i32, i32
  }
  func.func @transform_12(%arg0: i32) -> (i32, i32) {
    %c0_i32 = arith.constant 0 : i32
    %c0_i32_0 = arith.constant 0 : i32
    %c0_i32_1 = arith.constant 0 : i32
    return %c0_i32, %c0_i32_0 : i32, i32
  }
  func.func @transform_13(%arg0: i32) -> (i32, i32) {
    %c0_i32 = arith.constant 0 : i32
    %c0_i32_0 = arith.constant 0 : i32
    return %arg0, %c0_i32 : i32, i32
  }
}

module attributes {stable_mosaic.version = 11 : i64} {
  func.func @encoder_layer_kernel(%arg0: i32, %arg1: memref<8x128xf32, #tpu.memory_space<vmem>>, %arg2: memref<128x96xf32, #tpu.memory_space<vmem>>, %arg3: memref<1x96xf32, #tpu.memory_space<vmem>>, %arg4: memref<32x128xf32, #tpu.memory_space<vmem>>, %arg5: memref<1x128xf32, #tpu.memory_space<vmem>>, %arg6: memref<1x128xf32, #tpu.memory_space<vmem>>, %arg7: memref<1x128xf32, #tpu.memory_space<vmem>>, %arg8: memref<128x128xf32, #tpu.memory_space<vmem>>, %arg9: memref<1x128xf32, #tpu.memory_space<vmem>>, %arg10: memref<128x128xf32, #tpu.memory_space<vmem>>, %arg11: memref<1x128xf32, #tpu.memory_space<vmem>>, %arg12: memref<1x128xf32, #tpu.memory_space<vmem>>, %arg13: memref<1x128xf32, #tpu.memory_space<vmem>>, %arg14: memref<8x128xf32, #tpu.memory_space<vmem>>, %arg15: memref<8x32xf32, #tpu.memory_space<vmem>>) attributes {dimension_semantics = [#tpu.dimension_semantics<parallel>], iteration_bounds = array<i64: 2>, scalar_prefetch = 0 : i64, scratch_operands = 1 : i64, tpu.core_type = #tpu.core_type<tc>, window_params = [{transform_indices = @transform_0, window_bounds = array<i64: 8, 128>}, {pipeline_mode = #tpu.pipeline_mode<synchronous>, transform_indices = @transform_1, window_bounds = array<i64: 128, 96>}, {pipeline_mode = #tpu.pipeline_mode<synchronous>, transform_indices = @transform_2, window_bounds = array<i64: 1, 96>}, {pipeline_mode = #tpu.pipeline_mode<synchronous>, transform_indices = @transform_3, window_bounds = array<i64: 32, 128>}, {pipeline_mode = #tpu.pipeline_mode<synchronous>, transform_indices = @transform_4, window_bounds = array<i64: 1, 128>}, {pipeline_mode = #tpu.pipeline_mode<synchronous>, transform_indices = @transform_5, window_bounds = array<i64: 1, 128>}, {pipeline_mode = #tpu.pipeline_mode<synchronous>, transform_indices = @transform_6, window_bounds = array<i64: 1, 128>}, {pipeline_mode = #tpu.pipeline_mode<synchronous>, transform_indices = @transform_7, window_bounds = array<i64: 128, 128>}, {pipeline_mode = #tpu.pipeline_mode<synchronous>, transform_indices = @transform_8, window_bounds = array<i64: 1, 128>}, {pipeline_mode = #tpu.pipeline_mode<synchronous>, transform_indices = @transform_9, window_bounds = array<i64: 128, 128>}, {pipeline_mode = #tpu.pipeline_mode<synchronous>, transform_indices = @transform_10, window_bounds = array<i64: 1, 128>}, {pipeline_mode = #tpu.pipeline_mode<synchronous>, transform_indices = @transform_11, window_bounds = array<i64: 1, 128>}, {pipeline_mode = #tpu.pipeline_mode<synchronous>, transform_indices = @transform_12, window_bounds = array<i64: 1, 128>}, {transform_indices = @transform_13, window_bounds = array<i64: 8, 128>}]} {
    %c0 = arith.constant 0 : index
    %c0_0 = arith.constant 0 : index
    %0 = vector.load %arg1[%c0, %c0_0] : memref<8x128xf32, #tpu.memory_space<vmem>>, vector<8x128xf32>
    %c0_1 = arith.constant 0 : index
    %c0_2 = arith.constant 0 : index
    %1 = vector.load %arg2[%c0_1, %c0_2] : memref<128x96xf32, #tpu.memory_space<vmem>>, vector<128x96xf32>
    %cst = arith.constant dense<0.000000e+00> : vector<8x96xf32>
    %2 = tpu.matmul %0, %1, %cst {dimension_numbers = #tpu.dot_dimension_numbers<[1], [0], [0], [1], [0, 0, 1, 1], [], []>} : vector<8x128xf32>, vector<128x96xf32>, vector<8x96xf32> -> vector<8x96xf32>
    %c0_3 = arith.constant 0 : index
    %c0_4 = arith.constant 0 : index
    %3 = vector.load %arg3[%c0_3, %c0_4] : memref<1x96xf32, #tpu.memory_space<vmem>>, vector<1x96xf32>
    %4 = vector.broadcast %3 : vector<1x96xf32> to vector<8x96xf32>
    %5 = arith.addf %2, %4 : vector<8x96xf32>
    %6 = vector.extract_strided_slice %5 {offsets = [0, 0], sizes = [8, 16], strides = [1, 1]} : vector<8x96xf32> to vector<8x16xf32>
    %7 = vector.shape_cast %6 : vector<8x16xf32> to vector<1x8x16xf32>
    %8 = vector.extract_strided_slice %5 {offsets = [0, 32], sizes = [8, 16], strides = [1, 1]} : vector<8x96xf32> to vector<8x16xf32>
    %9 = vector.shape_cast %8 : vector<8x16xf32> to vector<1x8x16xf32>
    %10 = vector.extract_strided_slice %5 {offsets = [0, 64], sizes = [8, 16], strides = [1, 1]} : vector<8x96xf32> to vector<8x16xf32>
    %11 = vector.shape_cast %10 : vector<8x16xf32> to vector<1x8x16xf32>
    "tpu.trace_start"() <{level = 10 : i32, message = "bqd,bkd->bqk"}> : () -> ()
    %cst_5 = arith.constant dense<0.000000e+00> : vector<1x8x8xf32>
    %12 = tpu.matmul %7, %9, %cst_5 {dimension_numbers = #tpu.dot_dimension_numbers<[2], [2], [1], [1], [0, 0, 0, 1, 1, 1], [0], [0]>} : vector<1x8x16xf32>, vector<1x8x16xf32>, vector<1x8x8xf32> -> vector<1x8x8xf32>
    "tpu.trace_stop"() : () -> ()
    %cst_6 = arith.constant 2.500000e-01 : f32
    %13 = vector.broadcast %cst_6 : f32 to vector<1x8x8xf32>
    %14 = arith.mulf %12, %13 : vector<1x8x8xf32>
    %cst_7 = arith.constant dense<0xFF800000> : vector<1x8xf32>
    %15 = vector.multi_reduction <maximumf>, %14, %cst_7 [2] : vector<1x8x8xf32> to vector<1x8xf32>
    %16 = vector.shape_cast %15 : vector<1x8xf32> to vector<1x8x1xf32>
    %17 = vector.broadcast %16 : vector<1x8x1xf32> to vector<1x8x8xf32>
    %18 = arith.subf %14, %17 : vector<1x8x8xf32>
    %19 = math.exp %18 : vector<1x8x8xf32>
    %cst_8 = arith.constant dense<0.000000e+00> : vector<1x8xf32>
    %20 = vector.multi_reduction <add>, %19, %cst_8 [2] : vector<1x8x8xf32> to vector<1x8xf32>
    %21 = vector.shape_cast %20 : vector<1x8xf32> to vector<1x8x1xf32>
    %22 = vector.broadcast %21 : vector<1x8x1xf32> to vector<1x8x8xf32>
    %23 = arith.divf %19, %22 : vector<1x8x8xf32>
    "tpu.trace_start"() <{level = 10 : i32, message = "bqk,bkd->bqd"}> : () -> ()
    %cst_9 = arith.constant dense<0.000000e+00> : vector<1x8x16xf32>
    %24 = tpu.matmul %23, %11, %cst_9 {dimension_numbers = #tpu.dot_dimension_numbers<[2], [1], [1], [2], [0, 0, 0, 1, 1, 2], [0], [0]>} : vector<1x8x8xf32>, vector<1x8x16xf32>, vector<1x8x16xf32> -> vector<1x8x16xf32>
    "tpu.trace_stop"() : () -> ()
    %25 = vector.shape_cast %24 : vector<1x8x16xf32> to vector<8x16xf32>
    %c0_10 = arith.constant 0 : index
    %c0_11 = arith.constant 0 : index
    %26 = vector.load %arg15[%c0_10, %c0_11] : memref<8x32xf32, #tpu.memory_space<vmem>>, vector<8x16xf32>
    tpu.vector_store %arg15[%c0_10, %c0_11], %25 {strides = array<i32>} : memref<8x32xf32, #tpu.memory_space<vmem>>, vector<8x16xf32>,
    %27 = vector.extract_strided_slice %5 {offsets = [0, 16], sizes = [8, 16], strides = [1, 1]} : vector<8x96xf32> to vector<8x16xf32>
    %28 = vector.shape_cast %27 : vector<8x16xf32> to vector<1x8x16xf32>
    %29 = vector.extract_strided_slice %5 {offsets = [0, 48], sizes = [8, 16], strides = [1, 1]} : vector<8x96xf32> to vector<8x16xf32>
    %30 = vector.shape_cast %29 : vector<8x16xf32> to vector<1x8x16xf32>
    %31 = vector.extract_strided_slice %5 {offsets = [0, 80], sizes = [8, 16], strides = [1, 1]} : vector<8x96xf32> to vector<8x16xf32>
    %32 = vector.shape_cast %31 : vector<8x16xf32> to vector<1x8x16xf32>
    "tpu.trace_start"() <{level = 10 : i32, message = "bqd,bkd->bqk"}> : () -> ()
    %cst_12 = arith.constant dense<0.000000e+00> : vector<1x8x8xf32>
    %33 = tpu.matmul %28, %30, %cst_12 {dimension_numbers = #tpu.dot_dimension_numbers<[2], [2], [1], [1], [0, 0, 0, 1, 1, 1], [0], [0]>} : vector<1x8x16xf32>, vector<1x8x16xf32>, vector<1x8x8xf32> -> vector<1x8x8xf32>
    "tpu.trace_stop"() : () -> ()
    %cst_13 = arith.constant 2.500000e-01 : f32
    %34 = vector.broadcast %cst_13 : f32 to vector<1x8x8xf32>
    %35 = arith.mulf %33, %34 : vector<1x8x8xf32>
    %cst_14 = arith.constant dense<0xFF800000> : vector<1x8xf32>
    %36 = vector.multi_reduction <maximumf>, %35, %cst_14 [2] : vector<1x8x8xf32> to vector<1x8xf32>
    %37 = vector.shape_cast %36 : vector<1x8xf32> to vector<1x8x1xf32>
    %38 = vector.broadcast %37 : vector<1x8x1xf32> to vector<1x8x8xf32>
    %39 = arith.subf %35, %38 : vector<1x8x8xf32>
    %40 = math.exp %39 : vector<1x8x8xf32>
    %cst_15 = arith.constant dense<0.000000e+00> : vector<1x8xf32>
    %41 = vector.multi_reduction <add>, %40, %cst_15 [2] : vector<1x8x8xf32> to vector<1x8xf32>
    %42 = vector.shape_cast %41 : vector<1x8xf32> to vector<1x8x1xf32>
    %43 = vector.broadcast %42 : vector<1x8x1xf32> to vector<1x8x8xf32>
    %44 = arith.divf %40, %43 : vector<1x8x8xf32>
    "tpu.trace_start"() <{level = 10 : i32, message = "bqk,bkd->bqd"}> : () -> ()
    %cst_16 = arith.constant dense<0.000000e+00> : vector<1x8x16xf32>
    %45 = tpu.matmul %44, %32, %cst_16 {dimension_numbers = #tpu.dot_dimension_numbers<[2], [1], [1], [2], [0, 0, 0, 1, 1, 2], [0], [0]>} : vector<1x8x8xf32>, vector<1x8x16xf32>, vector<1x8x16xf32> -> vector<1x8x16xf32>
    "tpu.trace_stop"() : () -> ()
    %46 = vector.shape_cast %45 : vector<1x8x16xf32> to vector<8x16xf32>
    %c0_17 = arith.constant 0 : index
    %c16 = arith.constant 16 : index
    %47 = vector.load %arg15[%c0_17, %c16] : memref<8x32xf32, #tpu.memory_space<vmem>>, vector<8x16xf32>
    tpu.vector_store %arg15[%c0_17, %c16], %46 {strides = array<i32>} : memref<8x32xf32, #tpu.memory_space<vmem>>, vector<8x16xf32>,
    %c0_18 = arith.constant 0 : index
    %c0_19 = arith.constant 0 : index
    %48 = vector.load %arg15[%c0_18, %c0_19] : memref<8x32xf32, #tpu.memory_space<vmem>>, vector<8x32xf32>
    %c0_20 = arith.constant 0 : index
    %c0_21 = arith.constant 0 : index
    %49 = vector.load %arg4[%c0_20, %c0_21] : memref<32x128xf32, #tpu.memory_space<vmem>>, vector<32x128xf32>
    %cst_22 = arith.constant dense<0.000000e+00> : vector<8x128xf32>
    %50 = tpu.matmul %48, %49, %cst_22 {dimension_numbers = #tpu.dot_dimension_numbers<[1], [0], [0], [1], [0, 0, 1, 1], [], []>} : vector<8x32xf32>, vector<32x128xf32>, vector<8x128xf32> -> vector<8x128xf32>
    %c0_23 = arith.constant 0 : index
    %c0_24 = arith.constant 0 : index
    %51 = vector.load %arg5[%c0_23, %c0_24] : memref<1x128xf32, #tpu.memory_space<vmem>>, vector<1x128xf32>
    %52 = vector.broadcast %51 : vector<1x128xf32> to vector<8x128xf32>
    %53 = arith.addf %50, %52 : vector<8x128xf32>
    %54 = arith.addf %0, %53 : vector<8x128xf32>
    %c0_25 = arith.constant 0 : index
    %c0_26 = arith.constant 0 : index
    %55 = vector.load %arg6[%c0_25, %c0_26] : memref<1x128xf32, #tpu.memory_space<vmem>>, vector<1x128xf32>
    %c0_27 = arith.constant 0 : index
    %c0_28 = arith.constant 0 : index
    %56 = vector.load %arg7[%c0_27, %c0_28] : memref<1x128xf32, #tpu.memory_space<vmem>>, vector<1x128xf32>
    %cst_29 = arith.constant dense<0.000000e+00> : vector<8xf32>
    %57 = vector.multi_reduction <add>, %54, %cst_29 [1] : vector<8x128xf32> to vector<8xf32>
    %58 = vector.shape_cast %57 : vector<8xf32> to vector<8x1xf32>
    %cst_30 = arith.constant 3.125000e-02 : f32
    %59 = vector.broadcast %cst_30 : f32 to vector<8x1xf32>
    %60 = arith.mulf %58, %59 : vector<8x1xf32>
    %61 = tpu.iota {dimensions = array<i32: 1>} : vector<8x128xi32>
    %c32_i32 = arith.constant 32 : i32
    %62 = vector.broadcast %c32_i32 : i32 to vector<8x128xi32>
    %63 = arith.cmpi slt, %61, %62 : vector<8x128xi32>
    %64 = vector.broadcast %60 : vector<8x1xf32> to vector<8x128xf32>
    %65 = arith.subf %54, %64 : vector<8x128xf32>
    %cst_31 = arith.constant 0.000000e+00 : f32
    %66 = vector.broadcast %cst_31 : f32 to vector<8x128xf32>
    %67 = arith.select %63, %65, %66 : vector<8x128xi1>, vector<8x128xf32>
    %68 = arith.mulf %67, %67 : vector<8x128xf32>
    %cst_32 = arith.constant dense<0.000000e+00> : vector<8xf32>
    %69 = vector.multi_reduction <add>, %68, %cst_32 [1] : vector<8x128xf32> to vector<8xf32>
    %70 = vector.shape_cast %69 : vector<8xf32> to vector<8x1xf32>
    %cst_33 = arith.constant 3.125000e-02 : f32
    %71 = vector.broadcast %cst_33 : f32 to vector<8x1xf32>
    %72 = arith.mulf %70, %71 : vector<8x1xf32>
    %cst_34 = arith.constant 9.99999974E-6 : f32
    %73 = vector.broadcast %cst_34 : f32 to vector<8x1xf32>
    %74 = arith.addf %72, %73 : vector<8x1xf32>
    %75 = math.rsqrt %74 : vector<8x1xf32>
    %76 = vector.broadcast %75 : vector<8x1xf32> to vector<8x128xf32>
    %77 = arith.mulf %67, %76 : vector<8x128xf32>
    %78 = vector.broadcast %55 : vector<1x128xf32> to vector<8x128xf32>
    %79 = arith.mulf %77, %78 : vector<8x128xf32>
    %80 = vector.broadcast %56 : vector<1x128xf32> to vector<8x128xf32>
    %81 = arith.addf %79, %80 : vector<8x128xf32>
    %c0_35 = arith.constant 0 : index
    %c0_36 = arith.constant 0 : index
    %82 = vector.load %arg8[%c0_35, %c0_36] : memref<128x128xf32, #tpu.memory_space<vmem>>, vector<128x128xf32>
    %cst_37 = arith.constant dense<0.000000e+00> : vector<8x128xf32>
    %83 = tpu.matmul %81, %82, %cst_37 {dimension_numbers = #tpu.dot_dimension_numbers<[1], [0], [0], [1], [0, 0, 1, 1], [], []>} : vector<8x128xf32>, vector<128x128xf32>, vector<8x128xf32> -> vector<8x128xf32>
    %c0_38 = arith.constant 0 : index
    %c0_39 = arith.constant 0 : index
    %84 = vector.load %arg9[%c0_38, %c0_39] : memref<1x128xf32, #tpu.memory_space<vmem>>, vector<1x128xf32>
    %85 = vector.broadcast %84 : vector<1x128xf32> to vector<8x128xf32>
    %86 = arith.addf %83, %85 : vector<8x128xf32>
    %cst_40 = arith.constant 5.000000e-01 : f32
    %87 = vector.broadcast %cst_40 : f32 to vector<8x128xf32>
    %88 = arith.mulf %87, %86 : vector<8x128xf32>
    %cst_41 = arith.constant 0.707106769 : f32
    %89 = vector.broadcast %cst_41 : f32 to vector<8x128xf32>
    %90 = arith.mulf %86, %89 : vector<8x128xf32>
    %cst_42 = arith.constant 0.000000e+00 : f32
    %91 = vector.broadcast %cst_42 : f32 to vector<8x128xf32>
    %92 = arith.cmpf oge, %90, %91 : vector<8x128xf32>
    %cst_43 = arith.constant 1.000000e+00 : f32
    %cst_44 = arith.constant -1.000000e+00 : f32
    %93 = vector.broadcast %cst_43 : f32 to vector<8x128xf32>
    %94 = vector.broadcast %cst_44 : f32 to vector<8x128xf32>
    %95 = arith.select %92, %93, %94 : vector<8x128xi1>, vector<8x128xf32>
    %96 = math.absf %90 : vector<8x128xf32>
    %cst_45 = arith.constant 0.327591091 : f32
    %97 = vector.broadcast %cst_45 : f32 to vector<8x128xf32>
    %98 = arith.mulf %97, %96 : vector<8x128xf32>
    %cst_46 = arith.constant 1.000000e+00 : f32
    %99 = vector.broadcast %cst_46 : f32 to vector<8x128xf32>
    %100 = arith.addf %99, %98 : vector<8x128xf32>
    %cst_47 = arith.constant 1.000000e+00 : f32
    %101 = vector.broadcast %cst_47 : f32 to vector<8x128xf32>
    %102 = arith.divf %101, %100 : vector<8x128xf32>
    %cst_48 = arith.constant 1.06140542 : f32
    %103 = vector.broadcast %cst_48 : f32 to vector<8x128xf32>
    %104 = arith.mulf %103, %102 : vector<8x128xf32>
    %cst_49 = arith.constant -1.45315206 : f32
    %105 = vector.broadcast %cst_49 : f32 to vector<8x128xf32>
    %106 = arith.addf %104, %105 : vector<8x128xf32>
    %107 = arith.mulf %106, %102 : vector<8x128xf32>
    %cst_50 = arith.constant 1.42141378 : f32
    %108 = vector.broadcast %cst_50 : f32 to vector<8x128xf32>
    %109 = arith.addf %107, %108 : vector<8x128xf32>
    %110 = arith.mulf %109, %102 : vector<8x128xf32>
    %cst_51 = arith.constant -0.284496725 : f32
    %111 = vector.broadcast %cst_51 : f32 to vector<8x128xf32>
    %112 = arith.addf %110, %111 : vector<8x128xf32>
    %113 = arith.mulf %112, %102 : vector<8x128xf32>
    %cst_52 = arith.constant 0.254829586 : f32
    %114 = vector.broadcast %cst_52 : f32 to vector<8x128xf32>
    %115 = arith.addf %113, %114 : vector<8x128xf32>
    %116 = arith.mulf %115, %102 : vector<8x128xf32>
    %cst_53 = arith.constant 0.000000e+00 : f32
    %117 = vector.broadcast %cst_53 : f32 to vector<8x128xf32>
    %118 = arith.subf %117, %96 : vector<8x128xf32>
    %119 = arith.mulf %118, %96 : vector<8x128xf32>
    %120 = math.exp %119 : vector<8x128xf32>
    %121 = arith.mulf %116, %120 : vector<8x128xf32>
    %cst_54 = arith.constant 1.000000e+00 : f32
    %122 = vector.broadcast %cst_54 : f32 to vector<8x128xf32>
    %123 = arith.subf %122, %121 : vector<8x128xf32>
    %124 = arith.mulf %95, %123 : vector<8x128xf32>
    %cst_55 = arith.constant 1.000000e+00 : f32
    %125 = vector.broadcast %cst_55 : f32 to vector<8x128xf32>
    %126 = arith.addf %125, %124 : vector<8x128xf32>
    %127 = arith.mulf %88, %126 : vector<8x128xf32>
    %c0_56 = arith.constant 0 : index
    %c0_57 = arith.constant 0 : index
    %128 = vector.load %arg10[%c0_56, %c0_57] : memref<128x128xf32, #tpu.memory_space<vmem>>, vector<128x128xf32>
    %cst_58 = arith.constant dense<0.000000e+00> : vector<8x128xf32>
    %129 = tpu.matmul %127, %128, %cst_58 {dimension_numbers = #tpu.dot_dimension_numbers<[1], [0], [0], [1], [0, 0, 1, 1], [], []>} : vector<8x128xf32>, vector<128x128xf32>, vector<8x128xf32> -> vector<8x128xf32>
    %c0_59 = arith.constant 0 : index
    %c0_60 = arith.constant 0 : index
    %130 = vector.load %arg11[%c0_59, %c0_60] : memref<1x128xf32, #tpu.memory_space<vmem>>, vector<1x128xf32>
    %131 = vector.broadcast %130 : vector<1x128xf32> to vector<8x128xf32>
    %132 = arith.addf %129, %131 : vector<8x128xf32>
    %133 = arith.addf %81, %132 : vector<8x128xf32>
    %c0_61 = arith.constant 0 : index
    %c0_62 = arith.constant 0 : index
    %134 = vector.load %arg12[%c0_61, %c0_62] : memref<1x128xf32, #tpu.memory_space<vmem>>, vector<1x128xf32>
    %c0_63 = arith.constant 0 : index
    %c0_64 = arith.constant 0 : index
    %135 = vector.load %arg13[%c0_63, %c0_64] : memref<1x128xf32, #tpu.memory_space<vmem>>, vector<1x128xf32>
    %cst_65 = arith.constant dense<0.000000e+00> : vector<8xf32>
    %136 = vector.multi_reduction <add>, %133, %cst_65 [1] : vector<8x128xf32> to vector<8xf32>
    %137 = vector.shape_cast %136 : vector<8xf32> to vector<8x1xf32>
    %cst_66 = arith.constant 3.125000e-02 : f32
    %138 = vector.broadcast %cst_66 : f32 to vector<8x1xf32>
    %139 = arith.mulf %137, %138 : vector<8x1xf32>
    %140 = tpu.iota {dimensions = array<i32: 1>} : vector<8x128xi32>
    %c32_i32_67 = arith.constant 32 : i32
    %141 = vector.broadcast %c32_i32_67 : i32 to vector<8x128xi32>
    %142 = arith.cmpi slt, %140, %141 : vector<8x128xi32>
    %143 = vector.broadcast %139 : vector<8x1xf32> to vector<8x128xf32>
    %144 = arith.subf %133, %143 : vector<8x128xf32>
    %cst_68 = arith.constant 0.000000e+00 : f32
    %145 = vector.broadcast %cst_68 : f32 to vector<8x128xf32>
    %146 = arith.select %142, %144, %145 : vector<8x128xi1>, vector<8x128xf32>
    %147 = arith.mulf %146, %146 : vector<8x128xf32>
    %cst_69 = arith.constant dense<0.000000e+00> : vector<8xf32>
    %148 = vector.multi_reduction <add>, %147, %cst_69 [1] : vector<8x128xf32> to vector<8xf32>
    %149 = vector.shape_cast %148 : vector<8xf32> to vector<8x1xf32>
    %cst_70 = arith.constant 3.125000e-02 : f32
    %150 = vector.broadcast %cst_70 : f32 to vector<8x1xf32>
    %151 = arith.mulf %149, %150 : vector<8x1xf32>
    %cst_71 = arith.constant 9.99999974E-6 : f32
    %152 = vector.broadcast %cst_71 : f32 to vector<8x1xf32>
    %153 = arith.addf %151, %152 : vector<8x1xf32>
    %154 = math.rsqrt %153 : vector<8x1xf32>
    %155 = vector.broadcast %154 : vector<8x1xf32> to vector<8x128xf32>
    %156 = arith.mulf %146, %155 : vector<8x128xf32>
    %157 = vector.broadcast %134 : vector<1x128xf32> to vector<8x128xf32>
    %158 = arith.mulf %156, %157 : vector<8x128xf32>
    %159 = vector.broadcast %135 : vector<1x128xf32> to vector<8x128xf32>
    %160 = arith.addf %158, %159 : vector<8x128xf32>
    %c0_72 = arith.constant 0 : index
    %c0_73 = arith.constant 0 : index
    %161 = vector.load %arg14[%c0_72, %c0_73] : memref<8x128xf32, #tpu.memory_space<vmem>>, vector<8x128xf32>
    tpu.vector_store %arg14[%c0_72, %c0_73], %160 {strides = array<i32>} : memref<8x128xf32, #tpu.memory_space<vmem>>, vector<8x128xf32>,
    return
  }
  func.func @transform_0(%arg0: i32) -> (i32, i32) {
    %c0_i32 = arith.constant 0 : i32
    %c0_i32_0 = arith.constant 0 : i32
    return %arg0, %c0_i32 : i32, i32
  }
  func.func @transform_1(%arg0: i32) -> (i32, i32) {
    %c0_i32 = arith.constant 0 : i32
    %c0_i32_0 = arith.constant 0 : i32
    %c0_i32_1 = arith.constant 0 : i32
    return %c0_i32, %c0_i32_0 : i32, i32
  }
  func.func @transform_2(%arg0: i32) -> (i32, i32) {
    %c0_i32 = arith.constant 0 : i32
    %c0_i32_0 = arith.constant 0 : i32
    %c0_i32_1 = arith.constant 0 : i32
    return %c0_i32, %c0_i32_0 : i32, i32
  }
  func.func @transform_3(%arg0: i32) -> (i32, i32) {
    %c0_i32 = arith.constant 0 : i32
    %c0_i32_0 = arith.constant 0 : i32
    %c0_i32_1 = arith.constant 0 : i32
    return %c0_i32, %c0_i32_0 : i32, i32
  }
  func.func @transform_4(%arg0: i32) -> (i32, i32) {
    %c0_i32 = arith.constant 0 : i32
    %c0_i32_0 = arith.constant 0 : i32
    %c0_i32_1 = arith.constant 0 : i32
    return %c0_i32, %c0_i32_0 : i32, i32
  }
  func.func @transform_5(%arg0: i32) -> (i32, i32) {
    %c0_i32 = arith.constant 0 : i32
    %c0_i32_0 = arith.constant 0 : i32
    %c0_i32_1 = arith.constant 0 : i32
    return %c0_i32, %c0_i32_0 : i32, i32
  }
  func.func @transform_6(%arg0: i32) -> (i32, i32) {
    %c0_i32 = arith.constant 0 : i32
    %c0_i32_0 = arith.constant 0 : i32
    %c0_i32_1 = arith.constant 0 : i32
    return %c0_i32, %c0_i32_0 : i32, i32
  }
  func.func @transform_7(%arg0: i32) -> (i32, i32) {
    %c0_i32 = arith.constant 0 : i32
    %c0_i32_0 = arith.constant 0 : i32
    %c0_i32_1 = arith.constant 0 : i32
    return %c0_i32, %c0_i32_0 : i32, i32
  }
  func.func @transform_8(%arg0: i32) -> (i32, i32) {
    %c0_i32 = arith.constant 0 : i32
    %c0_i32_0 = arith.constant 0 : i32
    %c0_i32_1 = arith.constant 0 : i32
    return %c0_i32, %c0_i32_0 : i32, i32
  }
  func.func @transform_9(%arg0: i32) -> (i32, i32) {
    %c0_i32 = arith.constant 0 : i32
    %c0_i32_0 = arith.constant 0 : i32
    %c0_i32_1 = arith.constant 0 : i32
    return %c0_i32, %c0_i32_0 : i32, i32
  }
  func.func @transform_10(%arg0: i32) -> (i32, i32) {
    %c0_i32 = arith.constant 0 : i32
    %c0_i32_0 = arith.constant 0 : i32
    %c0_i32_1 = arith.constant 0 : i32
    return %c0_i32, %c0_i32_0 : i32, i32
  }
  func.func @transform_11(%arg0: i32) -> (i32, i32) {
    %c0_i32 = arith.constant 0 : i32
    %c0_i32_0 = arith.constant 0 : i32
    %c0_i32_1 = arith.constant 0 : i32
    return %c0_i32, %c0_i32_0 : i32, i32
  }
  func.func @transform_12(%arg0: i32) -> (i32, i32) {
    %c0_i32 = arith.constant 0 : i32
    %c0_i32_0 = arith.constant 0 : i32
    %c0_i32_1 = arith.constant 0 : i32
    return %c0_i32, %c0_i32_0 : i32, i32
  }
  func.func @transform_13(%arg0: i32) -> (i32, i32) {
    %c0_i32 = arith.constant 0 : i32
    %c0_i32_0 = arith.constant 0 : i32
    return %arg0, %c0_i32 : i32, i32
  }
}

</mosaic_0001>

<llo_original>
// kernel: tpu_custom_call.1
$region0: #{tpu_custom_call.1}
  #allocation0 [shape = 'u32[]', space=smem, size = 0x4, offset = 0x4, fixed_abs, tag = 'smem constant byte address 0x4 - core index']
  #allocation1 [shape = 'u32[144,128]{1,0:T(1,128)}', space=vmem, size = 0x12000, scoped, tag = 'internal scratch']
  #allocation2 [shape = 'f32[8,32]{1,0:T(8,128)}', space=vmem, size = 0x1000, scoped, tag = 'scratch operand']
  %s0 = inlined_call_operand.vmem [shape: f32[16,128], index: 0, kind: input, shape index: {}]
  %s1 = inlined_call_operand.vmem [shape: f32[128,96], index: 1, kind: input, shape index: {}]
  %s2 = inlined_call_operand.vmem [shape: f32[1,96], index: 2, kind: input, shape index: {}]
  %s3 = inlined_call_operand.vmem [shape: f32[32,128], index: 3, kind: input, shape index: {}]
  %s4 = inlined_call_operand.vmem [shape: f32[1,128], index: 4, kind: input, shape index: {}]
  %s5 = inlined_call_operand.vmem [shape: f32[1,128], index: 5, kind: input, shape index: {}]
  %s6 = inlined_call_operand.vmem [shape: f32[1,128], index: 6, kind: input, shape index: {}]
  %s7 = inlined_call_operand.vmem [shape: f32[128,128], index: 7, kind: input, shape index: {}]
  %s8 = inlined_call_operand.vmem [shape: f32[1,128], index: 8, kind: input, shape index: {}]
  %s9 = inlined_call_operand.hbm [shape: f32[128,128], index: 9, kind: input, shape index: {}]
  %s10 = inlined_call_operand.vmem [shape: f32[1,128], index: 10, kind: input, shape index: {}]
  %s11 = inlined_call_operand.vmem [shape: f32[1,128], index: 11, kind: input, shape index: {}]
  %s12 = inlined_call_operand.vmem [shape: f32[1,128], index: 12, kind: input, shape index: {}]
  %s13 = inlined_call_operand.hbm [shape: f32[16,128], index: 13, kind: output, shape index: {}]
  %s14 = sld [smem:[#allocation0]]
  $region89: #{tpu_custom_call.1} parent=0
    _
  %s16 = ssub.s32 1, %s14
  %s17 = scalar_select 0, %s16, %s14
  $region1: #{tpu_custom_call.1} parent=0
    #allocation3 [shape = 'u8[65536]{0}', space=vmem, size = 0x10000, scoped, tag = 'input window, operand 9, single buffered']
    #allocation4 [shape = 's32[2]{0}', space=sflag, size = 0x8, scoped, tag = 'scoped memory for tpu_custom_call.1']
    #allocation5 [shape = 's32[2]{0}', space=sflag, size = 0x8, scoped, tag = 'scoped memory for tpu_custom_call.1']
    #allocation6 [shape = 'u8[8192]{0}', space=vmem, size = 0x2000, scoped, tag = 'output window, operand 0']
    %18 = vsyncpa [#allocation4], 0
    %19 = vsyncpa [#allocation5], 0
    %s20 = scalar_lea.sflag [#allocation5], 1
    %21 = vsyncpa %s20, 0
    loop: start=0, step=1, limit=4
    $region2: #{tpu_custom_call.1} parent=1 // loop_pre_header
      _
    $region3: #{tpu_custom_call.1} parent=1 // loop_header
      %s23 = sphi 0, %s27
      %p24 = scmp.ge.s32.totalorder %s23, 4
      %s33 = sphi 0, %s35
      %s36 = sphi 0, %s33
      %s37 = sphi 0, %s36
      %s53 = sphi 0, %s37
      %s57 = sphi 0, %s57
      %s59 = sphi 0, %s57
      %s60 = sphi 0, %s59
      %s74 = sphi 0, %s60
      %s78 = sphi 0, %s78
      %s80 = sphi 0, %s78
      %s81 = sphi 0, %s80
      %s95 = sphi 0, %s81
      %s99 = sphi 0, %s99
      %s101 = sphi 0, %s99
      %s102 = sphi 0, %s101
      %s116 = sphi 0, %s102
      %s120 = sphi 0, %s120
      %s122 = sphi 0, %s120
      %s123 = sphi 0, %s122
      %s137 = sphi 0, %s123
      %s141 = sphi 0, %s141
      %s143 = sphi 0, %s141
      %s144 = sphi 0, %s143
      %s158 = sphi 0, %s144
      %s162 = sphi 0, %s162
      %s164 = sphi 0, %s162
      %s165 = sphi 0, %s164
      %s179 = sphi 0, %s165
      %s183 = sphi 0, %s183
      %s185 = sphi 0, %s183
      %s186 = sphi 0, %s185
      %s200 = sphi 0, %s186
      %s204 = sphi 0, %s204
      %s206 = sphi 0, %s204
      %s207 = sphi 0, %s206
      %s221 = sphi 0, %s207
      %s225 = sphi 0, %s225
      %s227 = sphi 0, %s225
      %s228 = sphi 0, %s227
      %s242 = sphi 0, %s228
      %s246 = sphi 0, %s246
      %s248 = sphi 0, %s246
      %s249 = sphi 0, %s248
      %s263 = sphi 0, %s249
      %s267 = sphi 0, %s267
      %s269 = sphi 0, %s267
      %s270 = sphi 0, %s269
      %s284 = sphi 0, %s270
      %s288 = sphi 0, %s288
      %s290 = sphi 0, %s288
      %s291 = sphi 0, %s290
      %s305 = sphi 0, %s291
      %s311 = sphi 0, %s313
      %s314 = sphi 0, %s311
      %s315 = sphi 0, %s314
      %s331 = sphi 0, %s315
    $region4: #{tpu_custom_call.1} parent=1 // loop_header_branch
      %26 = sbr.rel (%p24) target = $region8
    $region5: #{tpu_custom_call.1} parent=1 // loop_body
      %s28 = ssub.s32 %s23, 1
      %s29 = ssub.s32 %s23, 2
      %s30 = sadd.s32 %s23, 1
      %s31 = ssub.s32 %s23, %s30
      %p32 = scmp.eq.s32.totalorder %s31, 0
      %s34 = sadd.s32 %s33, 1
      %s35 = scalar_select %p32, %s33, %s34
      %p38 = pneg %p32
      %p39 = scmp.eq.s32.totalorder %s23, 1
      %p40 = por %p38, %p39
      %p41 = scmp.ne.s32.totalorder %s33, %s36
      %p42 = scmp.eq.s32.totalorder %s23, 0
      %p43 = por %p41, %p42
      %p44 = scmp.ne.s32.totalorder %s33, %s36
      %p45 = scmp.eq.s32.totalorder %s28, 1
      %p46 = por %p44, %p45
      %p47 = scmp.ne.s32.totalorder %s36, %s37
      %p48 = scmp.eq.s32.totalorder %s28, 0
      %p49 = por %p47, %p48
      %p50 = scmp.ne.s32.totalorder %s36, %s37
      %p51 = scmp.eq.s32.totalorder %s29, 1
      %p52 = por %p50, %p51
      %p54 = scmp.ne.s32.totalorder %s37, %s53
      %p55 = scmp.eq.s32.totalorder %s29, 0
      %p56 = por %p54, %p55
      %s58 = sadd.s32 %s57, 1
      %p61 = scmp.eq.s32.totalorder %s23, 1
      %p62 = scmp.ne.s32.totalorder %s57, %s59
      %p63 = scmp.eq.s32.totalorder %s23, 0
      %p64 = por %p62, %p63
      %p65 = scmp.ne.s32.totalorder %s57, %s59
      %p66 = scmp.eq.s32.totalorder %s28, 1
      %p67 = por %p65, %p66
      %p68 = scmp.ne.s32.totalorder %s59, %s60
      %p69 = scmp.eq.s32.totalorder %s28, 0
      %p70 = por %p68, %p69
      %p71 = scmp.ne.s32.totalorder %s59, %s60
      %p72 = scmp.eq.s32.totalorder %s29, 1
      %p73 = por %p71, %p72
      %p75 = scmp.ne.s32.totalorder %s60, %s74
      %p76 = scmp.eq.s32.totalorder %s29, 0
      %p77 = por %p75, %p76
      %s79 = sadd.s32 %s78, 1
      %p82 = scmp.eq.s32.totalorder %s23, 1
      %p83 = scmp.ne.s32.totalorder %s78, %s80
      %p84 = scmp.eq.s32.totalorder %s23, 0
      %p85 = por %p83, %p84
      %p86 = scmp.ne.s32.totalorder %s78, %s80
      %p87 = scmp.eq.s32.totalorder %s28, 1
      %p88 = por %p86, %p87
      %p89 = scmp.ne.s32.totalorder %s80, %s81
      %p90 = scmp.eq.s32.totalorder %s28, 0
      %p91 = por %p89, %p90
      %p92 = scmp.ne.s32.totalorder %s80, %s81
      %p93 = scmp.eq.s32.totalorder %s29, 1
      %p94 = por %p92, %p93
      %p96 = scmp.ne.s32.totalorder %s81, %s95
      %p97 = scmp.eq.s32.totalorder %s29, 0
      %p98 = por %p96, %p97
      %s100 = sadd.s32 %s99, 1
      %p103 = scmp.eq.s32.totalorder %s23, 1
      %p104 = scmp.ne.s32.totalorder %s99, %s101
      %p105 = scmp.eq.s32.totalorder %s23, 0
      %p106 = por %p104, %p105
      %p107 = scmp.ne.s32.totalorder %s99, %s101
      %p108 = scmp.eq.s32.totalorder %s28, 1
      %p109 = por %p107, %p108
      %p110 = scmp.ne.s32.totalorder %s101, %s102
      %p111 = scmp.eq.s32.totalorder %s28, 0
      %p112 = por %p110, %p111
      %p113 = scmp.ne.s32.totalorder %s101, %s102
      %p114 = scmp.eq.s32.totalorder %s29, 1
      %p115 = por %p113, %p114
      %p117 = scmp.ne.s32.totalorder %s102, %s116
      %p118 = scmp.eq.s32.totalorder %s29, 0
      %p119 = por %p117, %p118
      %s121 = sadd.s32 %s120, 1
      %p124 = scmp.eq.s32.totalorder %s23, 1
      %p125 = scmp.ne.s32.totalorder %s120, %s122
      %p126 = scmp.eq.s32.totalorder %s23, 0
      %p127 = por %p125, %p126
      %p128 = scmp.ne.s32.totalorder %s120, %s122
      %p129 = scmp.eq.s32.totalorder %s28, 1
      %p130 = por %p128, %p129
      %p131 = scmp.ne.s32.totalorder %s122, %s123
      %p132 = scmp.eq.s32.totalorder %s28, 0
      %p133 = por %p131, %p132
      %p134 = scmp.ne.s32.totalorder %s122, %s123
      %p135 = scmp.eq.s32.totalorder %s29, 1
      %p136 = por %p134, %p135
      %p138 = scmp.ne.s32.totalorder %s123, %s137
      %p139 = scmp.eq.s32.totalorder %s29, 0
      %p140 = por %p138, %p139
      %s142 = sadd.s32 %s141, 1
      %p145 = scmp.eq.s32.totalorder %s23, 1
      %p146 = scmp.ne.s32.totalorder %s141, %s143
      %p147 = scmp.eq.s32.totalorder %s23, 0
      %p148 = por %p146, %p147
      %p149 = scmp.ne.s32.totalorder %s141, %s143
      %p150 = scmp.eq.s32.totalorder %s28, 1
      %p151 = por %p149, %p150
      %p152 = scmp.ne.s32.totalorder %s143, %s144
      %p153 = scmp.eq.s32.totalorder %s28, 0
      %p154 = por %p152, %p153
      %p155 = scmp.ne.s32.totalorder %s143, %s144
      %p156 = scmp.eq.s32.totalorder %s29, 1
      %p157 = por %p155, %p156
      %p159 = scmp.ne.s32.totalorder %s144, %s158
      %p160 = scmp.eq.s32.totalorder %s29, 0
      %p161 = por %p159, %p160
      %s163 = sadd.s32 %s162, 1
      %p166 = scmp.eq.s32.totalorder %s23, 1
      %p167 = scmp.ne.s32.totalorder %s162, %s164
      %p168 = scmp.eq.s32.totalorder %s23, 0
      %p169 = por %p167, %p168
      %p170 = scmp.ne.s32.totalorder %s162, %s164
      %p171 = scmp.eq.s32.totalorder %s28, 1
      %p172 = por %p170, %p171
      %p173 = scmp.ne.s32.totalorder %s164, %s165
      %p174 = scmp.eq.s32.totalorder %s28, 0
      %p175 = por %p173, %p174
      %p176 = scmp.ne.s32.totalorder %s164, %s165
      %p177 = scmp.eq.s32.totalorder %s29, 1
      %p178 = por %p176, %p177
      %p180 = scmp.ne.s32.totalorder %s165, %s179
      %p181 = scmp.eq.s32.totalorder %s29, 0
      %p182 = por %p180, %p181
      %s184 = sadd.s32 %s183, 1
      %p187 = scmp.eq.s32.totalorder %s23, 1
      %p188 = scmp.ne.s32.totalorder %s183, %s185
      %p189 = scmp.eq.s32.totalorder %s23, 0
      %p190 = por %p188, %p189
      %p191 = scmp.ne.s32.totalorder %s183, %s185
      %p192 = scmp.eq.s32.totalorder %s28, 1
      %p193 = por %p191, %p192
      %p194 = scmp.ne.s32.totalorder %s185, %s186
      %p195 = scmp.eq.s32.totalorder %s28, 0
      %p196 = por %p194, %p195
      %p197 = scmp.ne.s32.totalorder %s185, %s186
      %p198 = scmp.eq.s32.totalorder %s29, 1
      %p199 = por %p197, %p198
      %p201 = scmp.ne.s32.totalorder %s186, %s200
      %p202 = scmp.eq.s32.totalorder %s29, 0
      %p203 = por %p201, %p202
      %s205 = sadd.s32 %s204, 1
      %p208 = scmp.eq.s32.totalorder %s23, 1
      %p209 = scmp.ne.s32.totalorder %s204, %s206
      %p210 = scmp.eq.s32.totalorder %s23, 0
      %p211 = por %p209, %p210
      %p212 = scmp.ne.s32.totalorder %s204, %s206
      %p213 = scmp.eq.s32.totalorder %s28, 1
      %p214 = por %p212, %p213
      %p215 = scmp.ne.s32.totalorder %s206, %s207
      %p216 = scmp.eq.s32.totalorder %s28, 0
      %p217 = por %p215, %p216
      %p218 = scmp.ne.s32.totalorder %s206, %s207
      %p219 = scmp.eq.s32.totalorder %s29, 1
      %p220 = por %p218, %p219
      %p222 = scmp.ne.s32.totalorder %s207, %s221
      %p223 = scmp.eq.s32.totalorder %s29, 0
      %p224 = por %p222, %p223
      %s226 = sadd.s32 %s225, 1
      %p229 = scmp.eq.s32.totalorder %s23, 1
      %p230 = scmp.ne.s32.totalorder %s225, %s227
      %p231 = scmp.eq.s32.totalorder %s23, 0
      %p232 = por %p230, %p231
      %p233 = scmp.ne.s32.totalorder %s225, %s227
      %p234 = scmp.eq.s32.totalorder %s28, 1
      %p235 = por %p233, %p234
      %p236 = scmp.ne.s32.totalorder %s227, %s228
      %p237 = scmp.eq.s32.totalorder %s28, 0
      %p238 = por %p236, %p237
      %p239 = scmp.ne.s32.totalorder %s227, %s228
      %p240 = scmp.eq.s32.totalorder %s29, 1
      %p241 = por %p239, %p240
      %p243 = scmp.ne.s32.totalorder %s228, %s242
      %p244 = scmp.eq.s32.totalorder %s29, 0
      %p245 = por %p243, %p244
      %s247 = sadd.s32 %s246, 1
      %p250 = scmp.eq.s32.totalorder %s23, 1
      %p251 = scmp.ne.s32.totalorder %s246, %s248
      %p252 = scmp.eq.s32.totalorder %s23, 0
      %p253 = por %p251, %p252
      %p254 = scmp.ne.s32.totalorder %s246, %s248
      %p255 = scmp.eq.s32.totalorder %s28, 1
      %p256 = por %p254, %p255
      %p257 = scmp.ne.s32.totalorder %s248, %s249
      %p258 = scmp.eq.s32.totalorder %s28, 0
      %p259 = por %p257, %p258
      %p260 = scmp.ne.s32.totalorder %s248, %s249
      %p261 = scmp.eq.s32.totalorder %s29, 1
      %p262 = por %p260, %p261
      %p264 = scmp.ne.s32.totalorder %s249, %s263
      %p265 = scmp.eq.s32.totalorder %s29, 0
      %p266 = por %p264, %p265
      %s268 = sadd.s32 %s267, 1
      %p271 = scmp.eq.s32.totalorder %s23, 1
      %p272 = scmp.ne.s32.totalorder %s267, %s269
      %p273 = scmp.eq.s32.totalorder %s23, 0
      %p274 = por %p272, %p273
      %p275 = scmp.ne.s32.totalorder %s267, %s269
      %p276 = scmp.eq.s32.totalorder %s28, 1
      %p277 = por %p275, %p276
      %p278 = scmp.ne.s32.totalorder %s269, %s270
      %p279 = scmp.eq.s32.totalorder %s28, 0
      %p280 = por %p278, %p279
      %p281 = scmp.ne.s32.totalorder %s269, %s270
      %p282 = scmp.eq.s32.totalorder %s29, 1
      %p283 = por %p281, %p282
      %p285 = scmp.ne.s32.totalorder %s270, %s284
      %p286 = scmp.eq.s32.totalorder %s29, 0
      %p287 = por %p285, %p286
      %s289 = sadd.s32 %s288, 1
      %p292 = scmp.eq.s32.totalorder %s23, 1
      %p293 = scmp.ne.s32.totalorder %s288, %s290
      %p294 = scmp.eq.s32.totalorder %s23, 0
      %p295 = por %p293, %p294
      %p296 = scmp.ne.s32.totalorder %s288, %s290
      %p297 = scmp.eq.s32.totalorder %s28, 1
      %p298 = por %p296, %p297
      %p299 = scmp.ne.s32.totalorder %s290, %s291
      %p300 = scmp.eq.s32.totalorder %s28, 0
      %p301 = por %p299, %p300
      %p302 = scmp.ne.s32.totalorder %s290, %s291
      %p303 = scmp.eq.s32.totalorder %s29, 1
      %p304 = por %p302, %p303
      %p306 = scmp.ne.s32.totalorder %s291, %s305
      %p307 = scmp.eq.s32.totalorder %s29, 0
      %p308 = por %p306, %p307
      %s309 = ssub.s32 %s23, %s30
      %p310 = scmp.eq.s32.totalorder %s309, 0
      %s312 = sadd.s32 %s311, 1
      %s313 = scalar_select %p310, %s311, %s312
      %p316 = pneg %p310
      %p317 = scmp.eq.s32.totalorder %s23, 1
      %p318 = por %p316, %p317
      %p319 = scmp.ne.s32.totalorder %s311, %s314
      %p320 = scmp.eq.s32.totalorder %s23, 0
      %p321 = por %p319, %p320
      %p322 = scmp.ne.s32.totalorder %s311, %s314
      %p323 = scmp.eq.s32.totalorder %s28, 1
      %p324 = por %p322, %p323
      %p325 = scmp.ne.s32.totalorder %s314, %s315
      %p326 = scmp.eq.s32.totalorder %s28, 0
      %p327 = por %p325, %p326
      %p328 = scmp.ne.s32.totalorder %s314, %s315
      %p329 = scmp.eq.s32.totalorder %s29, 1
      %p330 = por %p328, %p329
      %p332 = scmp.ne.s32.totalorder %s315, %s331
      %p333 = scmp.eq.s32.totalorder %s29, 0
      %p334 = por %p332, %p333
      %p335 = scmp.le.s32.totalorder 1, %s23
      %p336 = scmp.lt.s32.totalorder %s23, 3
      %p337 = pnand %p335, %p336
      %p338 = pneg %p337
      // Predicated region
      $region9: #{tpu_custom_call.1} parent=5 // pred_check
        _
      $region10: #{tpu_custom_call.1} parent=5 // pred_check_branch
        %340 = sbr.rel (%p337) target = $region12
      $region11: #{tpu_custom_call.1} parent=5 // pred_region
        %s341 = ssub.s32 %s23, 1
        // Predicated region
        $region13: #{tpu_custom_call.1} parent=11 // pred_check
          %p342 = pneg %p70
        $region14: #{tpu_custom_call.1} parent=11 // pred_check_branch
          %344 = sbr.rel (%p342) target = $region16
        $region15: #{tpu_custom_call.1} parent=11 // pred_region
          _
        $region16: #{tpu_custom_call.1} parent=11 // pred_fallthru
          _
        // Predicated region
        $region17: #{tpu_custom_call.1} parent=11 // pred_check
          %p345 = pneg %p91
        $region18: #{tpu_custom_call.1} parent=11 // pred_check_branch
          %347 = sbr.rel (%p345) target = $region20
        $region19: #{tpu_custom_call.1} parent=11 // pred_region
          _
        $region20: #{tpu_custom_call.1} parent=11 // pred_fallthru
          _
        // Predicated region
        $region21: #{tpu_custom_call.1} parent=11 // pred_check
          %p348 = pneg %p112
        $region22: #{tpu_custom_call.1} parent=11 // pred_check_branch
          %350 = sbr.rel (%p348) target = $region24
        $region23: #{tpu_custom_call.1} parent=11 // pred_region
          _
        $region24: #{tpu_custom_call.1} parent=11 // pred_fallthru
          _
        // Predicated region
        $region25: #{tpu_custom_call.1} parent=11 // pred_check
          %p351 = pneg %p133
        $region26: #{tpu_custom_call.1} parent=11 // pred_check_branch
          %353 = sbr.rel (%p351) target = $region28
        $region27: #{tpu_custom_call.1} parent=11 // pred_region
          _
        $region28: #{tpu_custom_call.1} parent=11 // pred_fallthru
          _
        // Predicated region
        $region29: #{tpu_custom_call.1} parent=11 // pred_check
          %p354 = pneg %p154
        $region30: #{tpu_custom_call.1} parent=11 // pred_check_branch
          %356 = sbr.rel (%p354) target = $region32
        $region31: #{tpu_custom_call.1} parent=11 // pred_region
          _
        $region32: #{tpu_custom_call.1} parent=11 // pred_fallthru
          _
        // Predicated region
        $region33: #{tpu_custom_call.1} parent=11 // pred_check
          %p357 = pneg %p175
        $region34: #{tpu_custom_call.1} parent=11 // pred_check_branch
          %359 = sbr.rel (%p357) target = $region36
        $region35: #{tpu_custom_call.1} parent=11 // pred_region
          _
        $region36: #{tpu_custom_call.1} parent=11 // pred_fallthru
          _
        // Predicated region
        $region37: #{tpu_custom_call.1} parent=11 // pred_check
          %p360 = pneg %p196
        $region38: #{tpu_custom_call.1} parent=11 // pred_check_branch
          %362 = sbr.rel (%p360) target = $region40
        $region39: #{tpu_custom_call.1} parent=11 // pred_region
          _
        $region40: #{tpu_custom_call.1} parent=11 // pred_fallthru
          _
        // Predicated region
        $region41: #{tpu_custom_call.1} parent=11 // pred_check
          %p363 = pneg %p217
        $region42: #{tpu_custom_call.1} parent=11 // pred_check_branch
          %365 = sbr.rel (%p363) target = $region44
        $region43: #{tpu_custom_call.1} parent=11 // pred_region
          _
        $region44: #{tpu_custom_call.1} parent=11 // pred_fallthru
          _
        // Predicated region
        $region45: #{tpu_custom_call.1} parent=11 // pred_check
          %p366 = pneg %p238
        $region46: #{tpu_custom_call.1} parent=11 // pred_check_branch
          %368 = sbr.rel (%p366) target = $region48
        $region47: #{tpu_custom_call.1} parent=11 // pred_region
          %s370 = ssub.s32 2048, 2048
          %371 = vsyncadd [#allocation4], %s370
          %s372 = sshll.u32 [#allocation3], 4
          %s373 = int_to_ptr.vmem [resolvable:$true] %s372
          %378 = dma.hbm_to_vmem [thread:$0]  %s9, 2048, %s373, [#allocation4], 128, 128, 8
        $region48: #{tpu_custom_call.1} parent=11 // pred_fallthru
          _
        // Predicated region
        $region49: #{tpu_custom_call.1} parent=11 // pred_check
          %p379 = pneg %p259
        $region50: #{tpu_custom_call.1} parent=11 // pred_check_branch
          %381 = sbr.rel (%p379) target = $region52
        $region51: #{tpu_custom_call.1} parent=11 // pred_region
          _
        $region52: #{tpu_custom_call.1} parent=11 // pred_fallthru
          _
        // Predicated region
        $region53: #{tpu_custom_call.1} parent=11 // pred_check
          %p382 = pneg %p280
        $region54: #{tpu_custom_call.1} parent=11 // pred_check_branch
          %384 = sbr.rel (%p382) target = $region56
        $region55: #{tpu_custom_call.1} parent=11 // pred_region
          _
        $region56: #{tpu_custom_call.1} parent=11 // pred_fallthru
          _
        // Predicated region
        $region57: #{tpu_custom_call.1} parent=11 // pred_check
          %p385 = pneg %p301
        $region58: #{tpu_custom_call.1} parent=11 // pred_check_branch
          %387 = sbr.rel (%p385) target = $region60
        $region59: #{tpu_custom_call.1} parent=11 // pred_region
          _
        $region60: #{tpu_custom_call.1} parent=11 // pred_fallthru
          _
      $region12: #{tpu_custom_call.1} parent=5 // pred_fallthru
        _
      %p388 = scmp.lt.s32.totalorder %s23, 2
      // Predicated region
      $region61: #{tpu_custom_call.1} parent=5 // pred_check
        %p389 = pneg %p388
      $region62: #{tpu_custom_call.1} parent=5 // pred_check_branch
        %391 = sbr.rel (%p389) target = $region64
      $region63: #{tpu_custom_call.1} parent=5 // pred_region
        // Predicated region
        $region65: #{tpu_custom_call.1} parent=63 // pred_check
          %p392 = pneg %p43
        $region66: #{tpu_custom_call.1} parent=63 // pred_check_branch
          %394 = sbr.rel (%p392) target = $region68
        $region67: #{tpu_custom_call.1} parent=63 // pred_region
          %p395 = scmp.lt.s32.totalorder %s23, 1
          %s396 = scalar_select %p395, %s23, 1
          %s397 = smul.addr %s396, 8
          %s398 = scalar_lea.vmem %s0, %s397
        $region68: #{tpu_custom_call.1} parent=63 // pred_fallthru
          _
      $region64: #{tpu_custom_call.1} parent=5 // pred_fallthru
        _
      %p399 = scmp.le.s32.totalorder 1, %s23
      %p400 = scmp.lt.s32.totalorder %s23, 3
      %p401 = pnand %p399, %p400
      %p402 = pneg %p401
      // Predicated region
      $region69: #{tpu_custom_call.1} parent=5 // pred_check
        _
      $region70: #{tpu_custom_call.1} parent=5 // pred_check_branch
        %404 = sbr.rel (%p401) target = $region72
      $region71: #{tpu_custom_call.1} parent=5 // pred_region
        %s405 = ssub.s32 %s23, 1
        // Predicated region
        $region73: #{tpu_custom_call.1} parent=71 // pred_check
          %p406 = pneg %p238
        $region74: #{tpu_custom_call.1} parent=71 // pred_check_branch
          %408 = sbr.rel (%p406) target = $region76
        $region75: #{tpu_custom_call.1} parent=71 // pred_region
          %409 = dma.done [#allocation4], 2048
        $region76: #{tpu_custom_call.1} parent=71 // pred_fallthru
          _
        %p410 = scmp.lt.s32.totalorder %s28, 1
        %s411 = scalar_select %p410, %s28, 1
        %s412 = smul.addr %s411, 8
        %s413 = scalar_lea.vmem %s0, %s412
        %p414 = pneg %p49
        %p415 = pneg %p46
        %p416 = pneg %p70
        %p417 = pneg %p67
        %p418 = pneg %p91
        %p419 = pneg %p88
        %p420 = pneg %p112
        %p421 = pneg %p109
        %p422 = pneg %p133
        %p423 = pneg %p130
        %p424 = pneg %p154
        %p425 = pneg %p151
        %p426 = pneg %p175
        %p427 = pneg %p172
        %p428 = pneg %p196
        %p429 = pneg %p193
        %p430 = pneg %p217
        %p431 = pneg %p214
        %p432 = pneg %p238
        %p433 = pneg %p235
        %p434 = pneg %p259
        %p435 = pneg %p256
        %p436 = pneg %p280
        %p437 = pneg %p277
        %p438 = pneg %p301
        %p439 = pneg %p298
        %p440 = pneg %p327
        %p441 = pneg %p324
        %s442 = sand.u32 %s314, 1
        %s443 = scalar_lea.sflag [#allocation5], %s442
        %s444 = sand.u32 %s314, 1
        %s445 = smul.addr %s444, 8
        %s446 = scalar_lea.vmem [#allocation6], %s445
        %p447 = scmp.lt.s32.totalorder %s28, 1
        %s448 = scalar_select %p447, %s28, 1
        %s449 = smul.addr %s448, 8
        %s450 = scalar_lea.vmem %s0, %s449
        %v451 = vld [vmem:[%s450] sm:$0xff]
        %v452 = vld [vmem:[%s1] sm:$0xff]
        %v453 = vld [vmem:[%s1 + $0x8] sm:$0xff]
        %v454 = vld [vmem:[%s1 + $0x10] sm:$0xff]
        %v455 = vld [vmem:[%s1 + $0x18] sm:$0xff]
        %v456 = vld [vmem:[%s1 + $0x20] sm:$0xff]
        %v457 = vld [vmem:[%s1 + $0x28] sm:$0xff]
        %v458 = vld [vmem:[%s1 + $0x30] sm:$0xff]
        %v459 = vld [vmem:[%s1 + $0x38] sm:$0xff]
        %v460 = vld [vmem:[%s1 + $0x40] sm:$0xff]
        %v461 = vld [vmem:[%s1 + $0x48] sm:$0xff]
        %v462 = vld [vmem:[%s1 + $0x50] sm:$0xff]
        %v463 = vld [vmem:[%s1 + $0x58] sm:$0xff]
        %v464 = vld [vmem:[%s1 + $0x60] sm:$0xff]
        %v465 = vld [vmem:[%s1 + $0x68] sm:$0xff]
        %v466 = vld [vmem:[%s1 + $0x70] sm:$0xff]
        %v467 = vld [vmem:[%s1 + $0x78] sm:$0xff]
        %v468 = vld [vmem:[%s2] sm:$0x1]
        %v470 = vlaneseq
        %v471 = vshrl.u32 %v470, 7
        %v472 = vsub.s32 0, %v471
        %v473 = vrot.slane %v468, %v472
        %475 = vmatprep.subr.mxu0 0.0
        %476 = vmatpush1.msra.mxu0 %v467
        %477 = vmatprep.subr.mxu0 0.0
        %478 = vmatpush1.msra.mxu0 %v466
        %479 = vmatprep.subr.mxu0 0.0
        %480 = vmatpush1.msra.mxu0 %v465
        %481 = vmatprep.subr.mxu0 0.0
        %482 = vmatpush1.msra.mxu0 %v464
        %483 = vmatprep.subr.mxu0 0.0
        %484 = vmatpush1.msra.mxu0 %v463
        %485 = vmatprep.subr.mxu0 0.0
        %486 = vmatpush1.msra.mxu0 %v462
        %487 = vmatprep.subr.mxu0 0.0
        %488 = vmatpush1.msra.mxu0 %v461
        %489 = vmatprep.subr.mxu0 0.0
        %490 = vmatpush1.msra.mxu0 %v460
        %491 = vmatprep.subr.mxu0 0.0
        %492 = vmatpush1.msra.mxu0 %v459
        %493 = vmatprep.subr.mxu0 0.0
        %494 = vmatpush1.msra.mxu0 %v458
        %495 = vmatprep.subr.mxu0 0.0
        %496 = vmatpush1.msra.mxu0 %v457
        %497 = vmatprep.subr.mxu0 0.0
        %498 = vmatpush1.msra.mxu0 %v456
        %499 = vmatprep.subr.mxu0 0.0
        %500 = vmatpush1.msra.mxu0 %v455
        %501 = vmatprep.subr.mxu0 0.0
        %502 = vmatpush1.msra.mxu0 %v454
        %503 = vmatprep.subr.mxu0 0.0
        %504 = vmatpush1.msra.mxu0 %v453
        %505 = vmatprep.subr.mxu0 0.0
        %506 = vmatpush1.msra.mxu0 %v452
        %507 = vmatprep.subr.mxu0 0.0
        %508 = vmatpush2.msra.mxu0 0.0
        %509 = vmatprep.subr.mxu0 0.0
        %510 = vmatpush2.msra.mxu0 0.0
        %511 = vmatprep.subr.mxu0 0.0
        %512 = vmatpush2.msra.mxu0 0.0
        %513 = vmatprep.subr.mxu0 0.0
        %514 = vmatpush2.msra.mxu0 0.0
        %515 = vmatprep.subr.mxu0 0.0
        %516 = vmatpush2.msra.mxu0 0.0
        %517 = vmatprep.subr.mxu0 0.0
        %518 = vmatpush2.msra.mxu0 0.0
        %519 = vmatprep.subr.mxu0 0.0
        %520 = vmatpush2.msra.mxu0 0.0
        %521 = vmatprep.subr.mxu0 0.0
        %522 = vmatpush2.msra.mxu0 0.0
        %523 = vmatprep.subr.mxu0 0.0
        %524 = vmatpush2.msra.mxu0 0.0
        %525 = vmatprep.subr.mxu0 0.0
        %526 = vmatpush2.msra.mxu0 0.0
        %527 = vmatprep.subr.mxu0 0.0
        %528 = vmatpush2.msra.mxu0 0.0
        %529 = vmatprep.subr.mxu0 0.0
        %530 = vmatpush2.msra.mxu0 0.0
        %531 = vmatprep.subr.mxu0 0.0
        %532 = vmatpush2.msra.mxu0 0.0
        %533 = vmatprep.subr.mxu0 0.0
        %534 = vmatpush2.msra.mxu0 0.0
        %535 = vmatprep.subr.mxu0 0.0
        %536 = vmatpush2.msra.mxu0 0.0
        %537 = vmatprep.subr.mxu0 0.0
        %538 = vmatpush2.msra.mxu0 0.0
        %539 = vmatprep.mubr.f32.mxu0 0.0
        %540 = vmatmul.mubr.f32.gmra.mxu0 %v451
        %v541 = vpop.f32.mrf.mxu0
        %v542 = vadd.f32 %v473, %v541
        %v543 = vpop.f32.mrf.mxu0
        %544 = vdwg.mxu0
        %546 = vrot.lane.b32.xlu0 %v542, 96
        %v547 = vpop.permute.xlu0 %546
        %vm548 = vcmask 130048
        %v549 = vsel %vm548, %v542, 0
        %v551 = vsel %vm548, %v547, 0
        %553 = vmatprep.subr.mxu0 0.0
        %554 = vmatpush1.xpose.msra.mxu0 0.0
        %555 = vmatprep.subr.mxu0 0.0
        %556 = vmatpush1.xpose.msra.mxu0 0.0
        %557 = vmatprep.subr.mxu0 0.0
        %558 = vmatpush1.xpose.msra.mxu0 0.0
        %559 = vmatprep.subr.mxu0 0.0
        %560 = vmatpush1.xpose.msra.mxu0 0.0
        %561 = vmatprep.subr.mxu0 0.0
        %562 = vmatpush1.xpose.msra.mxu0 0.0
        %563 = vmatprep.subr.mxu0 0.0
        %564 = vmatpush1.xpose.msra.mxu0 0.0
        %565 = vmatprep.subr.mxu0 0.0
        %566 = vmatpush1.xpose.msra.mxu0 0.0
        %567 = vmatprep.subr.mxu0 0.0
        %568 = vmatpush1.xpose.msra.mxu0 0.0
        %569 = vmatprep.subr.mxu0 0.0
        %570 = vmatpush1.xpose.msra.mxu0 0.0
        %571 = vmatprep.subr.mxu0 0.0
        %572 = vmatpush1.xpose.msra.mxu0 0.0
        %573 = vmatprep.subr.mxu0 0.0
        %574 = vmatpush1.xpose.msra.mxu0 0.0
        %575 = vmatprep.subr.mxu0 0.0
        %576 = vmatpush1.xpose.msra.mxu0 0.0
        %577 = vmatprep.subr.mxu0 0.0
        %578 = vmatpush1.xpose.msra.mxu0 0.0
        %579 = vmatprep.subr.mxu0 0.0
        %580 = vmatpush1.xpose.msra.mxu0 0.0
        %581 = vmatprep.subr.mxu0 0.0
        %582 = vmatpush1.xpose.msra.mxu0 0.0
        %583 = vmatprep.subr.mxu0 0.0
        %584 = vmatpush1.xpose.msra.mxu0 %v551
        %585 = vmatprep.subr.mxu0 0.0
        %586 = vmatpush2.xpose.msra.mxu0 0.0
        %587 = vmatprep.subr.mxu0 0.0
        %588 = vmatpush2.xpose.msra.mxu0 0.0
        %589 = vmatprep.subr.mxu0 0.0
        %590 = vmatpush2.xpose.msra.mxu0 0.0
        %591 = vmatprep.subr.mxu0 0.0
        %592 = vmatpush2.xpose.msra.mxu0 0.0
        %593 = vmatprep.subr.mxu0 0.0
        %594 = vmatpush2.xpose.msra.mxu0 0.0
        %595 = vmatprep.subr.mxu0 0.0
        %596 = vmatpush2.xpose.msra.mxu0 0.0
        %597 = vmatprep.subr.mxu0 0.0
        %598 = vmatpush2.xpose.msra.mxu0 0.0
        %599 = vmatprep.subr.mxu0 0.0
        %600 = vmatpush2.xpose.msra.mxu0 0.0
        %601 = vmatprep.subr.mxu0 0.0
        %602 = vmatpush2.xpose.msra.mxu0 0.0
        %603 = vmatprep.subr.mxu0 0.0
        %604 = vmatpush2.xpose.msra.mxu0 0.0
        %605 = vmatprep.subr.mxu0 0.0
        %606 = vmatpush2.xpose.msra.mxu0 0.0
        %607 = vmatprep.subr.mxu0 0.0
        %608 = vmatpush2.xpose.msra.mxu0 0.0
        %609 = vmatprep.subr.mxu0 0.0
        %610 = vmatpush2.xpose.msra.mxu0 0.0
        %611 = vmatprep.subr.mxu0 0.0
        %612 = vmatpush2.xpose.msra.mxu0 0.0
        %613 = vmatprep.subr.mxu0 0.0
        %614 = vmatpush2.xpose.msra.mxu0 0.0
        %615 = vmatprep.subr.mxu0 0.0
        %616 = vmatpush2.xpose.msra.mxu0 0.0
        %617 = vmatprep.mubr.f32.mxu0 0.0
        %618 = vmatmul.mubr.f32.gmra.mxu0 %v549
        %v619 = vpop.f32.mrf.mxu0
        %v620 = vadd.f32 0.0, %v619
        %v621 = vpop.f32.mrf.mxu0
        %622 = vdwg.mxu0
        %v623 = vmul.f32 %v620, 0.25
        %vm624 = vcmask 64512
        %v625 = vsel %vm624, %v623, -inf
        %626 = vmax.xlane.f32.xlu0 %v625
        %v627 = vpop.xlane.xlu0 %626
        %v628 = vsub.f32 %v623, %v627
        %v629 = vmul.f32 %v628, 1.442695
        %v630 = vpow.pop %v629
        %v631 = vsel %vm624, %v630, 0.0
        %632 = vadd.xlane.f32.xlu0 %v631
        %v633 = vpop.xlane.xlu0 %632
        %v634 = vrcp.pop %v633
        %v635 = vmul.f32 %v630, %v634
        %636 = vrot.lane.b32.xlu0 %v542, 64
        %v637 = vpop.permute.xlu0 %636
        %v640 = vsel %vm624, %v635, 0
        %642 = vmatprep.subr.mxu0 0.0
        %643 = vmatpush1.msra.mxu0 0.0
        %644 = vmatprep.subr.mxu0 0.0
        %645 = vmatpush1.msra.mxu0 0.0
        %646 = vmatprep.subr.mxu0 0.0
        %647 = vmatpush1.msra.mxu0 0.0
        %648 = vmatprep.subr.mxu0 0.0
        %649 = vmatpush1.msra.mxu0 0.0
        %650 = vmatprep.subr.mxu0 0.0
        %651 = vmatpush1.msra.mxu0 0.0
        %652 = vmatprep.subr.mxu0 0.0
        %653 = vmatpush1.msra.mxu0 0.0
        %654 = vmatprep.subr.mxu0 0.0
        %655 = vmatpush1.msra.mxu0 0.0
        %656 = vmatprep.subr.mxu0 0.0
        %657 = vmatpush1.msra.mxu0 0.0
        %658 = vmatprep.subr.mxu0 0.0
        %659 = vmatpush1.msra.mxu0 0.0
        %660 = vmatprep.subr.mxu0 0.0
        %661 = vmatpush1.msra.mxu0 0.0
        %662 = vmatprep.subr.mxu0 0.0
        %663 = vmatpush1.msra.mxu0 0.0
        %664 = vmatprep.subr.mxu0 0.0
        %665 = vmatpush1.msra.mxu0 0.0
        %666 = vmatprep.subr.mxu0 0.0
        %667 = vmatpush1.msra.mxu0 0.0
        %668 = vmatprep.subr.mxu0 0.0
        %669 = vmatpush1.msra.mxu0 0.0
        %670 = vmatprep.subr.mxu0 0.0
        %671 = vmatpush1.msra.mxu0 0.0
        %672 = vmatprep.subr.mxu0 0.0
        %673 = vmatpush1.msra.mxu0 %v637
        %674 = vmatprep.subr.mxu0 0.0
        %675 = vmatpush2.msra.mxu0 0.0
        %676 = vmatprep.subr.mxu0 0.0
        %677 = vmatpush2.msra.mxu0 0.0
        %678 = vmatprep.subr.mxu0 0.0
        %679 = vmatpush2.msra.mxu0 0.0
        %680 = vmatprep.subr.mxu0 0.0
        %681 = vmatpush2.msra.mxu0 0.0
        %682 = vmatprep.subr.mxu0 0.0
        %683 = vmatpush2.msra.mxu0 0.0
        %684 = vmatprep.subr.mxu0 0.0
        %685 = vmatpush2.msra.mxu0 0.0
        %686 = vmatprep.subr.mxu0 0.0
        %687 = vmatpush2.msra.mxu0 0.0
        %688 = vmatprep.subr.mxu0 0.0
        %689 = vmatpush2.msra.mxu0 0.0
        %690 = vmatprep.subr.mxu0 0.0
        %691 = vmatpush2.msra.mxu0 0.0
        %692 = vmatprep.subr.mxu0 0.0
        %693 = vmatpush2.msra.mxu0 0.0
        %694 = vmatprep.subr.mxu0 0.0
        %695 = vmatpush2.msra.mxu0 0.0
        %696 = vmatprep.subr.mxu0 0.0
        %697 = vmatpush2.msra.mxu0 0.0
        %698 = vmatprep.subr.mxu0 0.0
        %699 = vmatpush2.msra.mxu0 0.0
        %700 = vmatprep.subr.mxu0 0.0
        %701 = vmatpush2.msra.mxu0 0.0
        %702 = vmatprep.subr.mxu0 0.0
        %703 = vmatpush2.msra.mxu0 0.0
        %704 = vmatprep.subr.mxu0 0.0
        %705 = vmatpush2.msra.mxu0 0.0
        %706 = vmatprep.mubr.f32.mxu0 0.0
        %707 = vmatmul.mubr.f32.gmra.mxu0 %v640
        %v708 = vpop.f32.mrf.mxu0
        %v709 = vadd.f32 0.0, %v708
        %v710 = vpop.f32.mrf.mxu0
        %711 = vdwg.mxu0
        %712 = vst.msk [vmem:[#allocation2] sm:$0xff] %vm548, %v709
        %713 = vrot.lane.b32.xlu0 %v542, 112
        %v714 = vpop.permute.xlu0 %713
        %715 = vrot.lane.b32.xlu0 %v542, 80
        %v716 = vpop.permute.xlu0 %715
        %v717 = vsel %vm548, %v714, 0
        %v719 = vsel %vm548, %v716, 0
        %721 = vmatprep.subr.mxu0 0.0
        %722 = vmatpush1.xpose.msra.mxu0 0.0
        %723 = vmatprep.subr.mxu0 0.0
        %724 = vmatpush1.xpose.msra.mxu0 0.0
        %725 = vmatprep.subr.mxu0 0.0
        %726 = vmatpush1.xpose.msra.mxu0 0.0
        %727 = vmatprep.subr.mxu0 0.0
        %728 = vmatpush1.xpose.msra.mxu0 0.0
        %729 = vmatprep.subr.mxu0 0.0
        %730 = vmatpush1.xpose.msra.mxu0 0.0
        %731 = vmatprep.subr.mxu0 0.0
        %732 = vmatpush1.xpose.msra.mxu0 0.0
        %733 = vmatprep.subr.mxu0 0.0
        %734 = vmatpush1.xpose.msra.mxu0 0.0
        %735 = vmatprep.subr.mxu0 0.0
        %736 = vmatpush1.xpose.msra.mxu0 0.0
        %737 = vmatprep.subr.mxu0 0.0
        %738 = vmatpush1.xpose.msra.mxu0 0.0
        %739 = vmatprep.subr.mxu0 0.0
        %740 = vmatpush1.xpose.msra.mxu0 0.0
        %741 = vmatprep.subr.mxu0 0.0
        %742 = vmatpush1.xpose.msra.mxu0 0.0
        %743 = vmatprep.subr.mxu0 0.0
        %744 = vmatpush1.xpose.msra.mxu0 0.0
        %745 = vmatprep.subr.mxu0 0.0
        %746 = vmatpush1.xpose.msra.mxu0 0.0
        %747 = vmatprep.subr.mxu0 0.0
        %748 = vmatpush1.xpose.msra.mxu0 0.0
        %749 = vmatprep.subr.mxu0 0.0
        %750 = vmatpush1.xpose.msra.mxu0 0.0
        %751 = vmatprep.subr.mxu0 0.0
        %752 = vmatpush1.xpose.msra.mxu0 %v719
        %753 = vmatprep.subr.mxu0 0.0
        %754 = vmatpush2.xpose.msra.mxu0 0.0
        %755 = vmatprep.subr.mxu0 0.0
        %756 = vmatpush2.xpose.msra.mxu0 0.0
        %757 = vmatprep.subr.mxu0 0.0
        %758 = vmatpush2.xpose.msra.mxu0 0.0
        %759 = vmatprep.subr.mxu0 0.0
        %760 = vmatpush2.xpose.msra.mxu0 0.0
        %761 = vmatprep.subr.mxu0 0.0
        %762 = vmatpush2.xpose.msra.mxu0 0.0
        %763 = vmatprep.subr.mxu0 0.0
        %764 = vmatpush2.xpose.msra.mxu0 0.0
        %765 = vmatprep.subr.mxu0 0.0
        %766 = vmatpush2.xpose.msra.mxu0 0.0
        %767 = vmatprep.subr.mxu0 0.0
        %768 = vmatpush2.xpose.msra.mxu0 0.0
        %769 = vmatprep.subr.mxu0 0.0
        %770 = vmatpush2.xpose.msra.mxu0 0.0
        %771 = vmatprep.subr.mxu0 0.0
        %772 = vmatpush2.xpose.msra.mxu0 0.0
        %773 = vmatprep.subr.mxu0 0.0
        %774 = vmatpush2.xpose.msra.mxu0 0.0
        %775 = vmatprep.subr.mxu0 0.0
        %776 = vmatpush2.xpose.msra.mxu0 0.0
        %777 = vmatprep.subr.mxu0 0.0
        %778 = vmatpush2.xpose.msra.mxu0 0.0
        %779 = vmatprep.subr.mxu0 0.0
        %780 = vmatpush2.xpose.msra.mxu0 0.0
        %781 = vmatprep.subr.mxu0 0.0
        %782 = vmatpush2.xpose.msra.mxu0 0.0
        %783 = vmatprep.subr.mxu0 0.0
        %784 = vmatpush2.xpose.msra.mxu0 0.0
        %785 = vmatprep.mubr.f32.mxu0 0.0
        %786 = vmatmul.mubr.f32.gmra.mxu0 %v717
        %v787 = vpop.f32.mrf.mxu0
        %v788 = vadd.f32 0.0, %v787
        %v789 = vpop.f32.mrf.mxu0
        %790 = vdwg.mxu0
        %v791 = vmul.f32 %v788, 0.25
        %v792 = vsel %vm624, %v791, -inf
        %793 = vmax.xlane.f32.xlu0 %v792
        %v794 = vpop.xlane.xlu0 %793
        %v795 = vsub.f32 %v791, %v794
        %v796 = vmul.f32 %v795, 1.442695
        %v797 = vpow.pop %v796
        %v798 = vsel %vm624, %v797, 0.0
        %799 = vadd.xlane.f32.xlu0 %v798
        %v800 = vpop.xlane.xlu0 %799
        %v801 = vrcp.pop %v800
        %v802 = vmul.f32 %v797, %v801
        %803 = vrot.lane.b32.xlu0 %v542, 48
        %v804 = vpop.permute.xlu0 %803
        %v807 = vsel %vm624, %v802, 0
        %809 = vmatprep.subr.mxu0 0.0
        %810 = vmatpush1.msra.mxu0 0.0
        %811 = vmatprep.subr.mxu0 0.0
        %812 = vmatpush1.msra.mxu0 0.0
        %813 = vmatprep.subr.mxu0 0.0
        %814 = vmatpush1.msra.mxu0 0.0
        %815 = vmatprep.subr.mxu0 0.0
        %816 = vmatpush1.msra.mxu0 0.0
        %817 = vmatprep.subr.mxu0 0.0
        %818 = vmatpush1.msra.mxu0 0.0
        %819 = vmatprep.subr.mxu0 0.0
        %820 = vmatpush1.msra.mxu0 0.0
        %821 = vmatprep.subr.mxu0 0.0
        %822 = vmatpush1.msra.mxu0 0.0
        %823 = vmatprep.subr.mxu0 0.0
        %824 = vmatpush1.msra.mxu0 0.0
        %825 = vmatprep.subr.mxu0 0.0
        %826 = vmatpush1.msra.mxu0 0.0
        %827 = vmatprep.subr.mxu0 0.0
        %828 = vmatpush1.msra.mxu0 0.0
        %829 = vmatprep.subr.mxu0 0.0
        %830 = vmatpush1.msra.mxu0 0.0
        %831 = vmatprep.subr.mxu0 0.0
        %832 = vmatpush1.msra.mxu0 0.0
        %833 = vmatprep.subr.mxu0 0.0
        %834 = vmatpush1.msra.mxu0 0.0
        %835 = vmatprep.subr.mxu0 0.0
        %836 = vmatpush1.msra.mxu0 0.0
        %837 = vmatprep.subr.mxu0 0.0
        %838 = vmatpush1.msra.mxu0 0.0
        %839 = vmatprep.subr.mxu0 0.0
        %840 = vmatpush1.msra.mxu0 %v804
        %841 = vmatprep.subr.mxu0 0.0
        %842 = vmatpush2.msra.mxu0 0.0
        %843 = vmatprep.subr.mxu0 0.0
        %844 = vmatpush2.msra.mxu0 0.0
        %845 = vmatprep.subr.mxu0 0.0
        %846 = vmatpush2.msra.mxu0 0.0
        %847 = vmatprep.subr.mxu0 0.0
        %848 = vmatpush2.msra.mxu0 0.0
        %849 = vmatprep.subr.mxu0 0.0
        %850 = vmatpush2.msra.mxu0 0.0
        %851 = vmatprep.subr.mxu0 0.0
        %852 = vmatpush2.msra.mxu0 0.0
        %853 = vmatprep.subr.mxu0 0.0
        %854 = vmatpush2.msra.mxu0 0.0
        %855 = vmatprep.subr.mxu0 0.0
        %856 = vmatpush2.msra.mxu0 0.0
        %857 = vmatprep.subr.mxu0 0.0
        %858 = vmatpush2.msra.mxu0 0.0
        %859 = vmatprep.subr.mxu0 0.0
        %860 = vmatpush2.msra.mxu0 0.0
        %861 = vmatprep.subr.mxu0 0.0
        %862 = vmatpush2.msra.mxu0 0.0
        %863 = vmatprep.subr.mxu0 0.0
        %864 = vmatpush2.msra.mxu0 0.0
        %865 = vmatprep.subr.mxu0 0.0
        %866 = vmatpush2.msra.mxu0 0.0
        %867 = vmatprep.subr.mxu0 0.0
        %868 = vmatpush2.msra.mxu0 0.0
        %869 = vmatprep.subr.mxu0 0.0
        %870 = vmatpush2.msra.mxu0 0.0
        %871 = vmatprep.subr.mxu0 0.0
        %872 = vmatpush2.msra.mxu0 0.0
        %873 = vmatprep.mubr.f32.mxu0 0.0
        %874 = vmatmul.mubr.f32.gmra.mxu0 %v807
        %v875 = vpop.f32.mrf.mxu0
        %v876 = vadd.f32 0.0, %v875
        %v877 = vpop.f32.mrf.mxu0
        %878 = vdwg.mxu0
        %880 = vrot.lane.b32.xlu0 %v876, 16
        %v881 = vpop.permute.xlu0 %880
        %vm883 = vcmask 261248
        %884 = vst.msk [vmem:[#allocation2] sm:$0xff] %vm883, %v881
        %v885 = vld [vmem:[#allocation2] sm:$0xff]
        %v886 = vld [vmem:[%s3] sm:$0xff]
        %v887 = vld [vmem:[%s3 + $0x8] sm:$0xff]
        %v888 = vld [vmem:[%s3 + $0x10] sm:$0xff]
        %v889 = vld [vmem:[%s3 + $0x18] sm:$0xff]
        %v890 = vld [vmem:[%s4] sm:$0x1]
        %v892 = vlaneseq
        %v893 = vshrl.u32 %v892, 7
        %v894 = vsub.s32 0, %v893
        %v895 = vrot.slane %v890, %v894
        %vm897 = vcmask 261120
        %v899 = vsel %vm897, %v885, 0
        %901 = vmatprep.subr.mxu0 0.0
        %902 = vmatpush1.msra.mxu0 0.0
        %903 = vmatprep.subr.mxu0 0.0
        %904 = vmatpush1.msra.mxu0 0.0
        %905 = vmatprep.subr.mxu0 0.0
        %906 = vmatpush1.msra.mxu0 0.0
        %907 = vmatprep.subr.mxu0 0.0
        %908 = vmatpush1.msra.mxu0 0.0
        %909 = vmatprep.subr.mxu0 0.0
        %910 = vmatpush1.msra.mxu0 0.0
        %911 = vmatprep.subr.mxu0 0.0
        %912 = vmatpush1.msra.mxu0 0.0
        %913 = vmatprep.subr.mxu0 0.0
        %914 = vmatpush1.msra.mxu0 0.0
        %915 = vmatprep.subr.mxu0 0.0
        %916 = vmatpush1.msra.mxu0 0.0
        %917 = vmatprep.subr.mxu0 0.0
        %918 = vmatpush1.msra.mxu0 0.0
        %919 = vmatprep.subr.mxu0 0.0
        %920 = vmatpush1.msra.mxu0 0.0
        %921 = vmatprep.subr.mxu0 0.0
        %922 = vmatpush1.msra.mxu0 0.0
        %923 = vmatprep.subr.mxu0 0.0
        %924 = vmatpush1.msra.mxu0 0.0
        %925 = vmatprep.subr.mxu0 0.0
        %926 = vmatpush1.msra.mxu0 %v889
        %927 = vmatprep.subr.mxu0 0.0
        %928 = vmatpush1.msra.mxu0 %v888
        %929 = vmatprep.subr.mxu0 0.0
        %930 = vmatpush1.msra.mxu0 %v887
        %931 = vmatprep.subr.mxu0 0.0
        %932 = vmatpush1.msra.mxu0 %v886
        %933 = vmatprep.subr.mxu0 0.0
        %934 = vmatpush2.msra.mxu0 0.0
        %935 = vmatprep.subr.mxu0 0.0
        %936 = vmatpush2.msra.mxu0 0.0
        %937 = vmatprep.subr.mxu0 0.0
        %938 = vmatpush2.msra.mxu0 0.0
        %939 = vmatprep.subr.mxu0 0.0
        %940 = vmatpush2.msra.mxu0 0.0
        %941 = vmatprep.subr.mxu0 0.0
        %942 = vmatpush2.msra.mxu0 0.0
        %943 = vmatprep.subr.mxu0 0.0
        %944 = vmatpush2.msra.mxu0 0.0
        %945 = vmatprep.subr.mxu0 0.0
        %946 = vmatpush2.msra.mxu0 0.0
        %947 = vmatprep.subr.mxu0 0.0
        %948 = vmatpush2.msra.mxu0 0.0
        %949 = vmatprep.subr.mxu0 0.0
        %950 = vmatpush2.msra.mxu0 0.0
        %951 = vmatprep.subr.mxu0 0.0
        %952 = vmatpush2.msra.mxu0 0.0
        %953 = vmatprep.subr.mxu0 0.0
        %954 = vmatpush2.msra.mxu0 0.0
        %955 = vmatprep.subr.mxu0 0.0
        %956 = vmatpush2.msra.mxu0 0.0
        %957 = vmatprep.subr.mxu0 0.0
        %958 = vmatpush2.msra.mxu0 0.0
        %959 = vmatprep.subr.mxu0 0.0
        %960 = vmatpush2.msra.mxu0 0.0
        %961 = vmatprep.subr.mxu0 0.0
        %962 = vmatpush2.msra.mxu0 0.0
        %963 = vmatprep.subr.mxu0 0.0
        %964 = vmatpush2.msra.mxu0 0.0
        %965 = vmatprep.mubr.f32.mxu0 0.0
        %966 = vmatmul.mubr.f32.gmra.mxu0 %v899
        %v967 = vpop.f32.mrf.mxu0
        %v968 = vadd.f32 %v895, %v967
        %v969 = vpop.f32.mrf.mxu0
        %970 = vdwg.mxu0
        %v971 = vadd.f32 %v451, %v968
        %v972 = vld [vmem:[%s5] sm:$0x1]
        %v973 = vld [vmem:[%s6] sm:$0x1]
        %974 = vadd.xlane.f32.xlu0 %v971
        %v975 = vpop.xlane.xlu0 %974
        %v976 = vmul.f32 %v975, 0.03125
        %v977 = vlaneseq
        %v978 = vand.u32 %v977, 127
        %vm979 = vcmp.lt.s32.totalorder %v978, 32
        %v980 = vsub.f32 %v971, %v976
        %v981 = vsel %vm979, %v980, 0.0
        %v982 = vmul.f32 %v981, %v981
        %983 = vadd.xlane.f32.xlu0 %v982
        %v984 = vpop.xlane.xlu0 %983
        %v985 = vmul.f32 %v984, 0.03125
        %v986 = vadd.f32 %v985, 1e-05
        %v987 = vrsqrt.pop %v986
        %v988 = vmul.f32 %v981, %v987
        %v990 = vlaneseq
        %v991 = vshrl.u32 %v990, 7
        %v992 = vsub.s32 0, %v991
        %v993 = vrot.slane %v972, %v992
        %v995 = vmul.f32 %v988, %v993
        %v997 = vlaneseq
        %v998 = vshrl.u32 %v997, 7
        %v999 = vsub.s32 0, %v998
        %v1000 = vrot.slane %v973, %v999
        %v1002 = vadd.f32 %v995, %v1000
        %v1003 = vld [vmem:[%s7] sm:$0xff]
        %v1004 = vld [vmem:[%s7 + $0x8] sm:$0xff]
        %v1005 = vld [vmem:[%s7 + $0x10] sm:$0xff]
        %v1006 = vld [vmem:[%s7 + $0x18] sm:$0xff]
        %v1007 = vld [vmem:[%s7 + $0x20] sm:$0xff]
        %v1008 = vld [vmem:[%s7 + $0x28] sm:$0xff]
        %v1009 = vld [vmem:[%s7 + $0x30] sm:$0xff]
        %v1010 = vld [vmem:[%s7 + $0x38] sm:$0xff]
        %v1011 = vld [vmem:[%s7 + $0x40] sm:$0xff]
        %v1012 = vld [vmem:[%s7 + $0x48] sm:$0xff]
        %v1013 = vld [vmem:[%s7 + $0x50] sm:$0xff]
        %v1014 = vld [vmem:[%s7 + $0x58] sm:$0xff]
        %v1015 = vld [vmem:[%s7 + $0x60] sm:$0xff]
        %v1016 = vld [vmem:[%s7 + $0x68] sm:$0xff]
        %v1017 = vld [vmem:[%s7 + $0x70] sm:$0xff]
        %v1018 = vld [vmem:[%s7 + $0x78] sm:$0xff]
        %v1019 = vld [vmem:[%s8] sm:$0x1]
        %v1021 = vlaneseq
        %v1022 = vshrl.u32 %v1021, 7
        %v1023 = vsub.s32 0, %v1022
        %v1024 = vrot.slane %v1019, %v1023
        %1026 = vmatprep.subr.mxu0 0.0
        %1027 = vmatpush1.msra.mxu0 %v1018
        %1028 = vmatprep.subr.mxu0 0.0
        %1029 = vmatpush1.msra.mxu0 %v1017
        %1030 = vmatprep.subr.mxu0 0.0
        %1031 = vmatpush1.msra.mxu0 %v1016
        %1032 = vmatprep.subr.mxu0 0.0
        %1033 = vmatpush1.msra.mxu0 %v1015
        %1034 = vmatprep.subr.mxu0 0.0
        %1035 = vmatpush1.msra.mxu0 %v1014
        %1036 = vmatprep.subr.mxu0 0.0
        %1037 = vmatpush1.msra.mxu0 %v1013
        %1038 = vmatprep.subr.mxu0 0.0
        %1039 = vmatpush1.msra.mxu0 %v1012
        %1040 = vmatprep.subr.mxu0 0.0
        %1041 = vmatpush1.msra.mxu0 %v1011
        %1042 = vmatprep.subr.mxu0 0.0
        %1043 = vmatpush1.msra.mxu0 %v1010
        %1044 = vmatprep.subr.mxu0 0.0
        %1045 = vmatpush1.msra.mxu0 %v1009
        %1046 = vmatprep.subr.mxu0 0.0
        %1047 = vmatpush1.msra.mxu0 %v1008
        %1048 = vmatprep.subr.mxu0 0.0
        %1049 = vmatpush1.msra.mxu0 %v1007
        %1050 = vmatprep.subr.mxu0 0.0
        %1051 = vmatpush1.msra.mxu0 %v1006
        %1052 = vmatprep.subr.mxu0 0.0
        %1053 = vmatpush1.msra.mxu0 %v1005
        %1054 = vmatprep.subr.mxu0 0.0
        %1055 = vmatpush1.msra.mxu0 %v1004
        %1056 = vmatprep.subr.mxu0 0.0
        %1057 = vmatpush1.msra.mxu0 %v1003
        %1058 = vmatprep.subr.mxu0 0.0
        %1059 = vmatpush2.msra.mxu0 0.0
        %1060 = vmatprep.subr.mxu0 0.0
        %1061 = vmatpush2.msra.mxu0 0.0
        %1062 = vmatprep.subr.mxu0 0.0
        %1063 = vmatpush2.msra.mxu0 0.0
        %1064 = vmatprep.subr.mxu0 0.0
        %1065 = vmatpush2.msra.mxu0 0.0
        %1066 = vmatprep.subr.mxu0 0.0
        %1067 = vmatpush2.msra.mxu0 0.0
        %1068 = vmatprep.subr.mxu0 0.0
        %1069 = vmatpush2.msra.mxu0 0.0
        %1070 = vmatprep.subr.mxu0 0.0
        %1071 = vmatpush2.msra.mxu0 0.0
        %1072 = vmatprep.subr.mxu0 0.0
        %1073 = vmatpush2.msra.mxu0 0.0
        %1074 = vmatprep.subr.mxu0 0.0
        %1075 = vmatpush2.msra.mxu0 0.0
        %1076 = vmatprep.subr.mxu0 0.0
        %1077 = vmatpush2.msra.mxu0 0.0
        %1078 = vmatprep.subr.mxu0 0.0
        %1079 = vmatpush2.msra.mxu0 0.0
        %1080 = vmatprep.subr.mxu0 0.0
        %1081 = vmatpush2.msra.mxu0 0.0
        %1082 = vmatprep.subr.mxu0 0.0
        %1083 = vmatpush2.msra.mxu0 0.0
        %1084 = vmatprep.subr.mxu0 0.0
        %1085 = vmatpush2.msra.mxu0 0.0
        %1086 = vmatprep.subr.mxu0 0.0
        %1087 = vmatpush2.msra.mxu0 0.0
        %1088 = vmatprep.subr.mxu0 0.0
        %1089 = vmatpush2.msra.mxu0 0.0
        %1090 = vmatprep.mubr.f32.mxu0 0.0
        %1091 = vmatmul.mubr.f32.gmra.mxu0 %v1002
        %v1092 = vpop.f32.mrf.mxu0
        %v1093 = vadd.f32 %v1024, %v1092
        %v1094 = vpop.f32.mrf.mxu0
        %1095 = vdwg.mxu0
        %v1096 = vmul.f32 %v1093, 0.5
        %v1097 = vmul.f32 %v1093, 0.70710677
        %vm1098 = vcmp.ge.f32.partialorder %v1097, 0.0
        %v1099 = vsel %vm1098, 1.0, -1.0
        %v1100 = vand.u32 2147483647, %v1097
        %v1101 = vmul.f32 %v1100, 0.3275911
        %v1102 = vadd.f32 %v1101, 1.0
        %v1103 = vrcp.pop %v1102
        %v1104 = vmul.f32 1.0, %v1103
        %v1105 = vmul.f32 %v1104, 1.0614054
        %v1106 = vadd.f32 %v1105, -1.4531521
        %v1107 = vmul.f32 %v1106, %v1104
        %v1108 = vadd.f32 %v1107, 1.4214138
        %v1109 = vmul.f32 %v1108, %v1104
        %v1110 = vadd.f32 %v1109, -0.28449672
        %v1111 = vmul.f32 %v1110, %v1104
        %v1112 = vadd.f32 %v1111, 0.2548296
        %v1113 = vmul.f32 %v1112, %v1104
        %v1114 = vsub.f32 0.0, %v1100
        %v1115 = vmul.f32 %v1114, %v1100
        %v1116 = vmul.f32 %v1115, 1.442695
        %v1117 = vpow.pop %v1116
        %v1118 = vmul.f32 %v1113, %v1117
        %v1119 = vsub.f32 1.0, %v1118
        %v1120 = vmul.f32 %v1099, %v1119
        %v1121 = vadd.f32 %v1120, 1.0
        %v1122 = vmul.f32 %v1096, %v1121
        %v1123 = vld [vmem:[#allocation3] sm:$0xff]
        %v1124 = vld [vmem:[#allocation3 + $0x8] sm:$0xff]
        %v1125 = vld [vmem:[#allocation3 + $0x10] sm:$0xff]
        %v1126 = vld [vmem:[#allocation3 + $0x18] sm:$0xff]
        %v1127 = vld [vmem:[#allocation3 + $0x20] sm:$0xff]
        %v1128 = vld [vmem:[#allocation3 + $0x28] sm:$0xff]
        %v1129 = vld [vmem:[#allocation3 + $0x30] sm:$0xff]
        %v1130 = vld [vmem:[#allocation3 + $0x38] sm:$0xff]
        %v1131 = vld [vmem:[#allocation3 + $0x40] sm:$0xff]
        %v1132 = vld [vmem:[#allocation3 + $0x48] sm:$0xff]
        %v1133 = vld [vmem:[#allocation3 + $0x50] sm:$0xff]
        %v1134 = vld [vmem:[#allocation3 + $0x58] sm:$0xff]
        %v1135 = vld [vmem:[#allocation3 + $0x60] sm:$0xff]
        %v1136 = vld [vmem:[#allocation3 + $0x68] sm:$0xff]
        %v1137 = vld [vmem:[#allocation3 + $0x70] sm:$0xff]
        %v1138 = vld [vmem:[#allocation3 + $0x78] sm:$0xff]
        %v1139 = vld [vmem:[%s10] sm:$0x1]
        %v1141 = vlaneseq
        %v1142 = vshrl.u32 %v1141, 7
        %v1143 = vsub.s32 0, %v1142
        %v1144 = vrot.slane %v1139, %v1143
        %1146 = vmatprep.subr.mxu0 0.0
        %1147 = vmatpush1.msra.mxu0 %v1138
        %1148 = vmatprep.subr.mxu0 0.0
        %1149 = vmatpush1.msra.mxu0 %v1137
        %1150 = vmatprep.subr.mxu0 0.0
        %1151 = vmatpush1.msra.mxu0 %v1136
        %1152 = vmatprep.subr.mxu0 0.0
        %1153 = vmatpush1.msra.mxu0 %v1135
        %1154 = vmatprep.subr.mxu0 0.0
        %1155 = vmatpush1.msra.mxu0 %v1134
        %1156 = vmatprep.subr.mxu0 0.0
        %1157 = vmatpush1.msra.mxu0 %v1133
        %1158 = vmatprep.subr.mxu0 0.0
        %1159 = vmatpush1.msra.mxu0 %v1132
        %1160 = vmatprep.subr.mxu0 0.0
        %1161 = vmatpush1.msra.mxu0 %v1131
        %1162 = vmatprep.subr.mxu0 0.0
        %1163 = vmatpush1.msra.mxu0 %v1130
        %1164 = vmatprep.subr.mxu0 0.0
        %1165 = vmatpush1.msra.mxu0 %v1129
        %1166 = vmatprep.subr.mxu0 0.0
        %1167 = vmatpush1.msra.mxu0 %v1128
        %1168 = vmatprep.subr.mxu0 0.0
        %1169 = vmatpush1.msra.mxu0 %v1127
        %1170 = vmatprep.subr.mxu0 0.0
        %1171 = vmatpush1.msra.mxu0 %v1126
        %1172 = vmatprep.subr.mxu0 0.0
        %1173 = vmatpush1.msra.mxu0 %v1125
        %1174 = vmatprep.subr.mxu0 0.0
        %1175 = vmatpush1.msra.mxu0 %v1124
        %1176 = vmatprep.subr.mxu0 0.0
        %1177 = vmatpush1.msra.mxu0 %v1123
        %1178 = vmatprep.subr.mxu0 0.0
        %1179 = vmatpush2.msra.mxu0 0.0
        %1180 = vmatprep.subr.mxu0 0.0
        %1181 = vmatpush2.msra.mxu0 0.0
        %1182 = vmatprep.subr.mxu0 0.0
        %1183 = vmatpush2.msra.mxu0 0.0
        %1184 = vmatprep.subr.mxu0 0.0
        %1185 = vmatpush2.msra.mxu0 0.0
        %1186 = vmatprep.subr.mxu0 0.0
        %1187 = vmatpush2.msra.mxu0 0.0
        %1188 = vmatprep.subr.mxu0 0.0
        %1189 = vmatpush2.msra.mxu0 0.0
        %1190 = vmatprep.subr.mxu0 0.0
        %1191 = vmatpush2.msra.mxu0 0.0
        %1192 = vmatprep.subr.mxu0 0.0
        %1193 = vmatpush2.msra.mxu0 0.0
        %1194 = vmatprep.subr.mxu0 0.0
        %1195 = vmatpush2.msra.mxu0 0.0
        %1196 = vmatprep.subr.mxu0 0.0
        %1197 = vmatpush2.msra.mxu0 0.0
        %1198 = vmatprep.subr.mxu0 0.0
        %1199 = vmatpush2.msra.mxu0 0.0
        %1200 = vmatprep.subr.mxu0 0.0
        %1201 = vmatpush2.msra.mxu0 0.0
        %1202 = vmatprep.subr.mxu0 0.0
        %1203 = vmatpush2.msra.mxu0 0.0
        %1204 = vmatprep.subr.mxu0 0.0
        %1205 = vmatpush2.msra.mxu0 0.0
        %1206 = vmatprep.subr.mxu0 0.0
        %1207 = vmatpush2.msra.mxu0 0.0
        %1208 = vmatprep.subr.mxu0 0.0
        %1209 = vmatpush2.msra.mxu0 0.0
        %1210 = vmatprep.mubr.f32.mxu0 0.0
        %1211 = vmatmul.mubr.f32.gmra.mxu0 %v1122
        %v1212 = vpop.f32.mrf.mxu0
        %v1213 = vadd.f32 %v1144, %v1212
        %v1214 = vpop.f32.mrf.mxu0
        %1215 = vdwg.mxu0
        %v1216 = vadd.f32 %v1002, %v1213
        %v1217 = vld [vmem:[%s11] sm:$0x1]
        %v1218 = vld [vmem:[%s12] sm:$0x1]
        %1219 = vadd.xlane.f32.xlu0 %v1216
        %v1220 = vpop.xlane.xlu0 %1219
        %v1221 = vmul.f32 %v1220, 0.03125
        %v1222 = vsub.f32 %v1216, %v1221
        %v1223 = vsel %vm979, %v1222, 0.0
        %v1224 = vmul.f32 %v1223, %v1223
        %1225 = vadd.xlane.f32.xlu0 %v1224
        %v1226 = vpop.xlane.xlu0 %1225
        %v1227 = vmul.f32 %v1226, 0.03125
        %v1228 = vadd.f32 %v1227, 1e-05
        %v1229 = vrsqrt.pop %v1228
        %v1230 = vmul.f32 %v1223, %v1229
        %v1232 = vlaneseq
        %v1233 = vshrl.u32 %v1232, 7
        %v1234 = vsub.s32 0, %v1233
        %v1235 = vrot.slane %v1217, %v1234
        %v1237 = vmul.f32 %v1230, %v1235
        %v1239 = vlaneseq
        %v1240 = vshrl.u32 %v1239, 7
        %v1241 = vsub.s32 0, %v1240
        %v1242 = vrot.slane %v1218, %v1241
        %v1244 = vadd.f32 %v1237, %v1242
        %1245 = vst [vmem:[%s446] sm:$0xff] %v1244
        %s1246 = sand.u32 %s314, 1
        %s1247 = scalar_lea.sflag [#allocation5], %s1246
        %s1248 = sand.u32 %s314, 1
        %s1249 = smul.addr %s1248, 8
        %s1250 = scalar_lea.vmem [#allocation6], %s1249
        // Predicated region
        $region77: #{tpu_custom_call.1} parent=71 // pred_check
          %p1251 = pneg %p324
        $region78: #{tpu_custom_call.1} parent=71 // pred_check_branch
          %1253 = sbr.rel (%p1251) target = $region80
        $region79: #{tpu_custom_call.1} parent=71 // pred_region
          %s1255 = ssub.s32 128, 128
          %1256 = vsyncadd %s1247, %s1255
          %s1257 = smul.addr %s28, 128
          %s1258 = scalar_lea.hbm %s13, %s1257
          %s1260 = sshll.u32 %s1250, 4
          %s1261 = int_to_ptr.vmem [resolvable:$true] %s1260
          %1263 = dma.vmem_to_hbm [thread:$0]  %s1261, 128, %s1258, %s1247
        $region80: #{tpu_custom_call.1} parent=71 // pred_fallthru
          _
      $region72: #{tpu_custom_call.1} parent=5 // pred_fallthru
        _
      %p1264 = scmp.le.s32.totalorder 2, %s23
      // Predicated region
      $region81: #{tpu_custom_call.1} parent=5 // pred_check
        %p1265 = pneg %p1264
      $region82: #{tpu_custom_call.1} parent=5 // pred_check_branch
        %1267 = sbr.rel (%p1265) target = $region84
      $region83: #{tpu_custom_call.1} parent=5 // pred_region
        %s1268 = ssub.s32 %s23, 2
        // Predicated region
        $region85: #{tpu_custom_call.1} parent=83 // pred_check
          %p1269 = pneg %p330
        $region86: #{tpu_custom_call.1} parent=83 // pred_check_branch
          %1271 = sbr.rel (%p1269) target = $region88
        $region87: #{tpu_custom_call.1} parent=83 // pred_region
          %s1272 = sand.u32 %s315, 1
          %s1273 = scalar_lea.sflag [#allocation5], %s1272
          %s1274 = sand.u32 %s315, 1
          %s1275 = smul.addr %s1274, 8
          %s1276 = scalar_lea.vmem [#allocation6], %s1275
          %1277 = dma.done %s1273, 128
        $region88: #{tpu_custom_call.1} parent=83 // pred_fallthru
          _
      $region84: #{tpu_custom_call.1} parent=5 // pred_fallthru
        _
    $region6: #{tpu_custom_call.1} parent=1 // loop_footer
      %s27 = sadd.s32 1, %s23
    $region7: #{tpu_custom_call.1} parent=1 // loop_footer_branch
      %22 = sbr.rel target = $region3
    $region8: #{tpu_custom_call.1} parent=1 // loop_exit
      _
    %1278 = vsyncpa [#allocation4], 1
    %s1279 = scalar_lea.sflag [#allocation4], 1
    %1280 = vsyncpa %s1279, 1
    %1281 = vsyncpa [#allocation5], 1
    %s1282 = scalar_lea.sflag [#allocation5], 1
    %1283 = vsyncpa %s1282, 1

// kernel: tpu_custom_call.1
$region0: #{tpu_custom_call.1}
  #allocation0 [shape = 'u32[]', space=smem, size = 0x4, offset = 0x4, fixed_abs, tag = 'smem constant byte address 0x4 - core index']
  #allocation1 [shape = 'u32[144,128]{1,0:T(1,128)}', space=vmem, size = 0x12000, scoped, tag = 'internal scratch']
  #allocation2 [shape = 'f32[8,32]{1,0:T(8,128)}', space=vmem, size = 0x1000, scoped, tag = 'scratch operand']
  %s0 = inlined_call_operand.vmem [shape: f32[16,128], index: 0, kind: input, shape index: {}]
  %s1 = inlined_call_operand.vmem [shape: f32[128,96], index: 1, kind: input, shape index: {}]
  %s2 = inlined_call_operand.vmem [shape: f32[1,96], index: 2, kind: input, shape index: {}]
  %s3 = inlined_call_operand.vmem [shape: f32[32,128], index: 3, kind: input, shape index: {}]
  %s4 = inlined_call_operand.vmem [shape: f32[1,128], index: 4, kind: input, shape index: {}]
  %s5 = inlined_call_operand.vmem [shape: f32[1,128], index: 5, kind: input, shape index: {}]
  %s6 = inlined_call_operand.vmem [shape: f32[1,128], index: 6, kind: input, shape index: {}]
  %s7 = inlined_call_operand.vmem [shape: f32[128,128], index: 7, kind: input, shape index: {}]
  %s8 = inlined_call_operand.vmem [shape: f32[1,128], index: 8, kind: input, shape index: {}]
  %s9 = inlined_call_operand.hbm [shape: f32[128,128], index: 9, kind: input, shape index: {}]
  %s10 = inlined_call_operand.vmem [shape: f32[1,128], index: 10, kind: input, shape index: {}]
  %s11 = inlined_call_operand.vmem [shape: f32[1,128], index: 11, kind: input, shape index: {}]
  %s12 = inlined_call_operand.vmem [shape: f32[1,128], index: 12, kind: input, shape index: {}]
  %s13 = inlined_call_operand.hbm [shape: f32[16,128], index: 13, kind: output, shape index: {}]
  %s14 = sld [smem:[#allocation0]]
  $region89: #{tpu_custom_call.1} parent=0
    _
  %s16 = ssub.s32 1, %s14
  %s17 = scalar_select 0, %s16, %s14
  $region1: #{tpu_custom_call.1} parent=0
    #allocation3 [shape = 'u8[65536]{0}', space=vmem, size = 0x10000, scoped, tag = 'input window, operand 9, single buffered']
    #allocation4 [shape = 's32[2]{0}', space=sflag, size = 0x8, scoped, tag = 'scoped memory for tpu_custom_call.1']
    #allocation5 [shape = 's32[2]{0}', space=sflag, size = 0x8, scoped, tag = 'scoped memory for tpu_custom_call.1']
    #allocation6 [shape = 'u8[8192]{0}', space=vmem, size = 0x2000, scoped, tag = 'output window, operand 0']
    %18 = vsyncpa [#allocation4], 0
    %19 = vsyncpa [#allocation5], 0
    %s20 = scalar_lea.sflag [#allocation5], 1
    %21 = vsyncpa %s20, 0
    loop: start=0, step=1, limit=4
    $region2: #{tpu_custom_call.1} parent=1 // loop_pre_header
      _
    $region3: #{tpu_custom_call.1} parent=1 // loop_header
      %s23 = sphi 0, %s27
      %p24 = scmp.ge.s32.totalorder %s23, 4
      %s33 = sphi 0, %s35
      %s36 = sphi 0, %s33
      %s37 = sphi 0, %s36
      %s53 = sphi 0, %s37
      %s57 = sphi 0, %s57
      %s59 = sphi 0, %s57
      %s60 = sphi 0, %s59
      %s74 = sphi 0, %s60
      %s78 = sphi 0, %s78
      %s80 = sphi 0, %s78
      %s81 = sphi 0, %s80
      %s95 = sphi 0, %s81
      %s99 = sphi 0, %s99
      %s101 = sphi 0, %s99
      %s102 = sphi 0, %s101
      %s116 = sphi 0, %s102
      %s120 = sphi 0, %s120
      %s122 = sphi 0, %s120
      %s123 = sphi 0, %s122
      %s137 = sphi 0, %s123
      %s141 = sphi 0, %s141
      %s143 = sphi 0, %s141
      %s144 = sphi 0, %s143
      %s158 = sphi 0, %s144
      %s162 = sphi 0, %s162
      %s164 = sphi 0, %s162
      %s165 = sphi 0, %s164
      %s179 = sphi 0, %s165
      %s183 = sphi 0, %s183
      %s185 = sphi 0, %s183
      %s186 = sphi 0, %s185
      %s200 = sphi 0, %s186
      %s204 = sphi 0, %s204
      %s206 = sphi 0, %s204
      %s207 = sphi 0, %s206
      %s221 = sphi 0, %s207
      %s225 = sphi 0, %s225
      %s227 = sphi 0, %s225
      %s228 = sphi 0, %s227
      %s242 = sphi 0, %s228
      %s246 = sphi 0, %s246
      %s248 = sphi 0, %s246
      %s249 = sphi 0, %s248
      %s263 = sphi 0, %s249
      %s267 = sphi 0, %s267
      %s269 = sphi 0, %s267
      %s270 = sphi 0, %s269
      %s284 = sphi 0, %s270
      %s288 = sphi 0, %s288
      %s290 = sphi 0, %s288
      %s291 = sphi 0, %s290
      %s305 = sphi 0, %s291
      %s311 = sphi 0, %s313
      %s314 = sphi 0, %s311
      %s315 = sphi 0, %s314
      %s331 = sphi 0, %s315
    $region4: #{tpu_custom_call.1} parent=1 // loop_header_branch
      %26 = sbr.rel (%p24) target = $region8
    $region5: #{tpu_custom_call.1} parent=1 // loop_body
      %s28 = ssub.s32 %s23, 1
      %s29 = ssub.s32 %s23, 2
      %s30 = sadd.s32 %s23, 1
      %s31 = ssub.s32 %s23, %s30
      %p32 = scmp.eq.s32.totalorder %s31, 0
      %s34 = sadd.s32 %s33, 1
      %s35 = scalar_select %p32, %s33, %s34
      %p38 = pneg %p32
      %p39 = scmp.eq.s32.totalorder %s23, 1
      %p40 = por %p38, %p39
      %p41 = scmp.ne.s32.totalorder %s33, %s36
      %p42 = scmp.eq.s32.totalorder %s23, 0
      %p43 = por %p41, %p42
      %p44 = scmp.ne.s32.totalorder %s33, %s36
      %p45 = scmp.eq.s32.totalorder %s28, 1
      %p46 = por %p44, %p45
      %p47 = scmp.ne.s32.totalorder %s36, %s37
      %p48 = scmp.eq.s32.totalorder %s28, 0
      %p49 = por %p47, %p48
      %p50 = scmp.ne.s32.totalorder %s36, %s37
      %p51 = scmp.eq.s32.totalorder %s29, 1
      %p52 = por %p50, %p51
      %p54 = scmp.ne.s32.totalorder %s37, %s53
      %p55 = scmp.eq.s32.totalorder %s29, 0
      %p56 = por %p54, %p55
      %s58 = sadd.s32 %s57, 1
      %p61 = scmp.eq.s32.totalorder %s23, 1
      %p62 = scmp.ne.s32.totalorder %s57, %s59
      %p63 = scmp.eq.s32.totalorder %s23, 0
      %p64 = por %p62, %p63
      %p65 = scmp.ne.s32.totalorder %s57, %s59
      %p66 = scmp.eq.s32.totalorder %s28, 1
      %p67 = por %p65, %p66
      %p68 = scmp.ne.s32.totalorder %s59, %s60
      %p69 = scmp.eq.s32.totalorder %s28, 0
      %p70 = por %p68, %p69
      %p71 = scmp.ne.s32.totalorder %s59, %s60
      %p72 = scmp.eq.s32.totalorder %s29, 1
      %p73 = por %p71, %p72
      %p75 = scmp.ne.s32.totalorder %s60, %s74
      %p76 = scmp.eq.s32.totalorder %s29, 0
      %p77 = por %p75, %p76
      %s79 = sadd.s32 %s78, 1
      %p82 = scmp.eq.s32.totalorder %s23, 1
      %p83 = scmp.ne.s32.totalorder %s78, %s80
      %p84 = scmp.eq.s32.totalorder %s23, 0
      %p85 = por %p83, %p84
      %p86 = scmp.ne.s32.totalorder %s78, %s80
      %p87 = scmp.eq.s32.totalorder %s28, 1
      %p88 = por %p86, %p87
      %p89 = scmp.ne.s32.totalorder %s80, %s81
      %p90 = scmp.eq.s32.totalorder %s28, 0
      %p91 = por %p89, %p90
      %p92 = scmp.ne.s32.totalorder %s80, %s81
      %p93 = scmp.eq.s32.totalorder %s29, 1
      %p94 = por %p92, %p93
      %p96 = scmp.ne.s32.totalorder %s81, %s95
      %p97 = scmp.eq.s32.totalorder %s29, 0
      %p98 = por %p96, %p97
      %s100 = sadd.s32 %s99, 1
      %p103 = scmp.eq.s32.totalorder %s23, 1
      %p104 = scmp.ne.s32.totalorder %s99, %s101
      %p105 = scmp.eq.s32.totalorder %s23, 0
      %p106 = por %p104, %p105
      %p107 = scmp.ne.s32.totalorder %s99, %s101
      %p108 = scmp.eq.s32.totalorder %s28, 1
      %p109 = por %p107, %p108
      %p110 = scmp.ne.s32.totalorder %s101, %s102
      %p111 = scmp.eq.s32.totalorder %s28, 0
      %p112 = por %p110, %p111
      %p113 = scmp.ne.s32.totalorder %s101, %s102
      %p114 = scmp.eq.s32.totalorder %s29, 1
      %p115 = por %p113, %p114
      %p117 = scmp.ne.s32.totalorder %s102, %s116
      %p118 = scmp.eq.s32.totalorder %s29, 0
      %p119 = por %p117, %p118
      %s121 = sadd.s32 %s120, 1
      %p124 = scmp.eq.s32.totalorder %s23, 1
      %p125 = scmp.ne.s32.totalorder %s120, %s122
      %p126 = scmp.eq.s32.totalorder %s23, 0
      %p127 = por %p125, %p126
      %p128 = scmp.ne.s32.totalorder %s120, %s122
      %p129 = scmp.eq.s32.totalorder %s28, 1
      %p130 = por %p128, %p129
      %p131 = scmp.ne.s32.totalorder %s122, %s123
      %p132 = scmp.eq.s32.totalorder %s28, 0
      %p133 = por %p131, %p132
      %p134 = scmp.ne.s32.totalorder %s122, %s123
      %p135 = scmp.eq.s32.totalorder %s29, 1
      %p136 = por %p134, %p135
      %p138 = scmp.ne.s32.totalorder %s123, %s137
      %p139 = scmp.eq.s32.totalorder %s29, 0
      %p140 = por %p138, %p139
      %s142 = sadd.s32 %s141, 1
      %p145 = scmp.eq.s32.totalorder %s23, 1
      %p146 = scmp.ne.s32.totalorder %s141, %s143
      %p147 = scmp.eq.s32.totalorder %s23, 0
      %p148 = por %p146, %p147
      %p149 = scmp.ne.s32.totalorder %s141, %s143
      %p150 = scmp.eq.s32.totalorder %s28, 1
      %p151 = por %p149, %p150
      %p152 = scmp.ne.s32.totalorder %s143, %s144
      %p153 = scmp.eq.s32.totalorder %s28, 0
      %p154 = por %p152, %p153
      %p155 = scmp.ne.s32.totalorder %s143, %s144
      %p156 = scmp.eq.s32.totalorder %s29, 1
      %p157 = por %p155, %p156
      %p159 = scmp.ne.s32.totalorder %s144, %s158
      %p160 = scmp.eq.s32.totalorder %s29, 0
      %p161 = por %p159, %p160
      %s163 = sadd.s32 %s162, 1
      %p166 = scmp.eq.s32.totalorder %s23, 1
      %p167 = scmp.ne.s32.totalorder %s162, %s164
      %p168 = scmp.eq.s32.totalorder %s23, 0
      %p169 = por %p167, %p168
      %p170 = scmp.ne.s32.totalorder %s162, %s164
      %p171 = scmp.eq.s32.totalorder %s28, 1
      %p172 = por %p170, %p171
      %p173 = scmp.ne.s32.totalorder %s164, %s165
      %p174 = scmp.eq.s32.totalorder %s28, 0
      %p175 = por %p173, %p174
      %p176 = scmp.ne.s32.totalorder %s164, %s165
      %p177 = scmp.eq.s32.totalorder %s29, 1
      %p178 = por %p176, %p177
      %p180 = scmp.ne.s32.totalorder %s165, %s179
      %p181 = scmp.eq.s32.totalorder %s29, 0
      %p182 = por %p180, %p181
      %s184 = sadd.s32 %s183, 1
      %p187 = scmp.eq.s32.totalorder %s23, 1
      %p188 = scmp.ne.s32.totalorder %s183, %s185
      %p189 = scmp.eq.s32.totalorder %s23, 0
      %p190 = por %p188, %p189
      %p191 = scmp.ne.s32.totalorder %s183, %s185
      %p192 = scmp.eq.s32.totalorder %s28, 1
      %p193 = por %p191, %p192
      %p194 = scmp.ne.s32.totalorder %s185, %s186
      %p195 = scmp.eq.s32.totalorder %s28, 0
      %p196 = por %p194, %p195
      %p197 = scmp.ne.s32.totalorder %s185, %s186
      %p198 = scmp.eq.s32.totalorder %s29, 1
      %p199 = por %p197, %p198
      %p201 = scmp.ne.s32.totalorder %s186, %s200
      %p202 = scmp.eq.s32.totalorder %s29, 0
      %p203 = por %p201, %p202
      %s205 = sadd.s32 %s204, 1
      %p208 = scmp.eq.s32.totalorder %s23, 1
      %p209 = scmp.ne.s32.totalorder %s204, %s206
      %p210 = scmp.eq.s32.totalorder %s23, 0
      %p211 = por %p209, %p210
      %p212 = scmp.ne.s32.totalorder %s204, %s206
      %p213 = scmp.eq.s32.totalorder %s28, 1
      %p214 = por %p212, %p213
      %p215 = scmp.ne.s32.totalorder %s206, %s207
      %p216 = scmp.eq.s32.totalorder %s28, 0
      %p217 = por %p215, %p216
      %p218 = scmp.ne.s32.totalorder %s206, %s207
      %p219 = scmp.eq.s32.totalorder %s29, 1
      %p220 = por %p218, %p219
      %p222 = scmp.ne.s32.totalorder %s207, %s221
      %p223 = scmp.eq.s32.totalorder %s29, 0
      %p224 = por %p222, %p223
      %s226 = sadd.s32 %s225, 1
      %p229 = scmp.eq.s32.totalorder %s23, 1
      %p230 = scmp.ne.s32.totalorder %s225, %s227
      %p231 = scmp.eq.s32.totalorder %s23, 0
      %p232 = por %p230, %p231
      %p233 = scmp.ne.s32.totalorder %s225, %s227
      %p234 = scmp.eq.s32.totalorder %s28, 1
      %p235 = por %p233, %p234
      %p236 = scmp.ne.s32.totalorder %s227, %s228
      %p237 = scmp.eq.s32.totalorder %s28, 0
      %p238 = por %p236, %p237
      %p239 = scmp.ne.s32.totalorder %s227, %s228
      %p240 = scmp.eq.s32.totalorder %s29, 1
      %p241 = por %p239, %p240
      %p243 = scmp.ne.s32.totalorder %s228, %s242
      %p244 = scmp.eq.s32.totalorder %s29, 0
      %p245 = por %p243, %p244
      %s247 = sadd.s32 %s246, 1
      %p250 = scmp.eq.s32.totalorder %s23, 1
      %p251 = scmp.ne.s32.totalorder %s246, %s248
      %p252 = scmp.eq.s32.totalorder %s23, 0
      %p253 = por %p251, %p252
      %p254 = scmp.ne.s32.totalorder %s246, %s248
      %p255 = scmp.eq.s32.totalorder %s28, 1
      %p256 = por %p254, %p255
      %p257 = scmp.ne.s32.totalorder %s248, %s249
      %p258 = scmp.eq.s32.totalorder %s28, 0
      %p259 = por %p257, %p258
      %p260 = scmp.ne.s32.totalorder %s248, %s249
      %p261 = scmp.eq.s32.totalorder %s29, 1
      %p262 = por %p260, %p261
      %p264 = scmp.ne.s32.totalorder %s249, %s263
      %p265 = scmp.eq.s32.totalorder %s29, 0
      %p266 = por %p264, %p265
      %s268 = sadd.s32 %s267, 1
      %p271 = scmp.eq.s32.totalorder %s23, 1
      %p272 = scmp.ne.s32.totalorder %s267, %s269
      %p273 = scmp.eq.s32.totalorder %s23, 0
      %p274 = por %p272, %p273
      %p275 = scmp.ne.s32.totalorder %s267, %s269
      %p276 = scmp.eq.s32.totalorder %s28, 1
      %p277 = por %p275, %p276
      %p278 = scmp.ne.s32.totalorder %s269, %s270
      %p279 = scmp.eq.s32.totalorder %s28, 0
      %p280 = por %p278, %p279
      %p281 = scmp.ne.s32.totalorder %s269, %s270
      %p282 = scmp.eq.s32.totalorder %s29, 1
      %p283 = por %p281, %p282
      %p285 = scmp.ne.s32.totalorder %s270, %s284
      %p286 = scmp.eq.s32.totalorder %s29, 0
      %p287 = por %p285, %p286
      %s289 = sadd.s32 %s288, 1
      %p292 = scmp.eq.s32.totalorder %s23, 1
      %p293 = scmp.ne.s32.totalorder %s288, %s290
      %p294 = scmp.eq.s32.totalorder %s23, 0
      %p295 = por %p293, %p294
      %p296 = scmp.ne.s32.totalorder %s288, %s290
      %p297 = scmp.eq.s32.totalorder %s28, 1
      %p298 = por %p296, %p297
      %p299 = scmp.ne.s32.totalorder %s290, %s291
      %p300 = scmp.eq.s32.totalorder %s28, 0
      %p301 = por %p299, %p300
      %p302 = scmp.ne.s32.totalorder %s290, %s291
      %p303 = scmp.eq.s32.totalorder %s29, 1
      %p304 = por %p302, %p303
      %p306 = scmp.ne.s32.totalorder %s291, %s305
      %p307 = scmp.eq.s32.totalorder %s29, 0
      %p308 = por %p306, %p307
      %s309 = ssub.s32 %s23, %s30
      %p310 = scmp.eq.s32.totalorder %s309, 0
      %s312 = sadd.s32 %s311, 1
      %s313 = scalar_select %p310, %s311, %s312
      %p316 = pneg %p310
      %p317 = scmp.eq.s32.totalorder %s23, 1
      %p318 = por %p316, %p317
      %p319 = scmp.ne.s32.totalorder %s311, %s314
      %p320 = scmp.eq.s32.totalorder %s23, 0
      %p321 = por %p319, %p320
      %p322 = scmp.ne.s32.totalorder %s311, %s314
      %p323 = scmp.eq.s32.totalorder %s28, 1
      %p324 = por %p322, %p323
      %p325 = scmp.ne.s32.totalorder %s314, %s315
      %p326 = scmp.eq.s32.totalorder %s28, 0
      %p327 = por %p325, %p326
      %p328 = scmp.ne.s32.totalorder %s314, %s315
      %p329 = scmp.eq.s32.totalorder %s29, 1
      %p330 = por %p328, %p329
      %p332 = scmp.ne.s32.totalorder %s315, %s331
      %p333 = scmp.eq.s32.totalorder %s29, 0
      %p334 = por %p332, %p333
      %p335 = scmp.le.s32.totalorder 1, %s23
      %p336 = scmp.lt.s32.totalorder %s23, 3
      %p337 = pnand %p335, %p336
      %p338 = pneg %p337
      // Predicated region
      $region9: #{tpu_custom_call.1} parent=5 // pred_check
        _
      $region10: #{tpu_custom_call.1} parent=5 // pred_check_branch
        %340 = sbr.rel (%p337) target = $region12
      $region11: #{tpu_custom_call.1} parent=5 // pred_region
        %s341 = ssub.s32 %s23, 1
        // Predicated region
        $region13: #{tpu_custom_call.1} parent=11 // pred_check
          %p342 = pneg %p70
        $region14: #{tpu_custom_call.1} parent=11 // pred_check_branch
          %344 = sbr.rel (%p342) target = $region16
        $region15: #{tpu_custom_call.1} parent=11 // pred_region
          _
        $region16: #{tpu_custom_call.1} parent=11 // pred_fallthru
          _
        // Predicated region
        $region17: #{tpu_custom_call.1} parent=11 // pred_check
          %p345 = pneg %p91
        $region18: #{tpu_custom_call.1} parent=11 // pred_check_branch
          %347 = sbr.rel (%p345) target = $region20
        $region19: #{tpu_custom_call.1} parent=11 // pred_region
          _
        $region20: #{tpu_custom_call.1} parent=11 // pred_fallthru
          _
        // Predicated region
        $region21: #{tpu_custom_call.1} parent=11 // pred_check
          %p348 = pneg %p112
        $region22: #{tpu_custom_call.1} parent=11 // pred_check_branch
          %350 = sbr.rel (%p348) target = $region24
        $region23: #{tpu_custom_call.1} parent=11 // pred_region
          _
        $region24: #{tpu_custom_call.1} parent=11 // pred_fallthru
          _
        // Predicated region
        $region25: #{tpu_custom_call.1} parent=11 // pred_check
          %p351 = pneg %p133
        $region26: #{tpu_custom_call.1} parent=11 // pred_check_branch
          %353 = sbr.rel (%p351) target = $region28
        $region27: #{tpu_custom_call.1} parent=11 // pred_region
          _
        $region28: #{tpu_custom_call.1} parent=11 // pred_fallthru
          _
        // Predicated region
        $region29: #{tpu_custom_call.1} parent=11 // pred_check
          %p354 = pneg %p154
        $region30: #{tpu_custom_call.1} parent=11 // pred_check_branch
          %356 = sbr.rel (%p354) target = $region32
        $region31: #{tpu_custom_call.1} parent=11 // pred_region
          _
        $region32: #{tpu_custom_call.1} parent=11 // pred_fallthru
          _
        // Predicated region
        $region33: #{tpu_custom_call.1} parent=11 // pred_check
          %p357 = pneg %p175
        $region34: #{tpu_custom_call.1} parent=11 // pred_check_branch
          %359 = sbr.rel (%p357) target = $region36
        $region35: #{tpu_custom_call.1} parent=11 // pred_region
          _
        $region36: #{tpu_custom_call.1} parent=11 // pred_fallthru
          _
        // Predicated region
        $region37: #{tpu_custom_call.1} parent=11 // pred_check
          %p360 = pneg %p196
        $region38: #{tpu_custom_call.1} parent=11 // pred_check_branch
          %362 = sbr.rel (%p360) target = $region40
        $region39: #{tpu_custom_call.1} parent=11 // pred_region
          _
        $region40: #{tpu_custom_call.1} parent=11 // pred_fallthru
          _
        // Predicated region
        $region41: #{tpu_custom_call.1} parent=11 // pred_check
          %p363 = pneg %p217
        $region42: #{tpu_custom_call.1} parent=11 // pred_check_branch
          %365 = sbr.rel (%p363) target = $region44
        $region43: #{tpu_custom_call.1} parent=11 // pred_region
          _
        $region44: #{tpu_custom_call.1} parent=11 // pred_fallthru
          _
        // Predicated region
        $region45: #{tpu_custom_call.1} parent=11 // pred_check
          %p366 = pneg %p238
        $region46: #{tpu_custom_call.1} parent=11 // pred_check_branch
          %368 = sbr.rel (%p366) target = $region48
        $region47: #{tpu_custom_call.1} parent=11 // pred_region
          %s370 = ssub.s32 2048, 2048
          %371 = vsyncadd [#allocation4], %s370
          %s372 = sshll.u32 [#allocation3], 4
          %s373 = int_to_ptr.vmem [resolvable:$true] %s372
          %378 = dma.hbm_to_vmem [thread:$0]  %s9, 2048, %s373, [#allocation4], 128, 128, 8
        $region48: #{tpu_custom_call.1} parent=11 // pred_fallthru
          _
        // Predicated region
        $region49: #{tpu_custom_call.1} parent=11 // pred_check
          %p379 = pneg %p259
        $region50: #{tpu_custom_call.1} parent=11 // pred_check_branch
          %381 = sbr.rel (%p379) target = $region52
        $region51: #{tpu_custom_call.1} parent=11 // pred_region
          _
        $region52: #{tpu_custom_call.1} parent=11 // pred_fallthru
          _
        // Predicated region
        $region53: #{tpu_custom_call.1} parent=11 // pred_check
          %p382 = pneg %p280
        $region54: #{tpu_custom_call.1} parent=11 // pred_check_branch
          %384 = sbr.rel (%p382) target = $region56
        $region55: #{tpu_custom_call.1} parent=11 // pred_region
          _
        $region56: #{tpu_custom_call.1} parent=11 // pred_fallthru
          _
        // Predicated region
        $region57: #{tpu_custom_call.1} parent=11 // pred_check
          %p385 = pneg %p301
        $region58: #{tpu_custom_call.1} parent=11 // pred_check_branch
          %387 = sbr.rel (%p385) target = $region60
        $region59: #{tpu_custom_call.1} parent=11 // pred_region
          _
        $region60: #{tpu_custom_call.1} parent=11 // pred_fallthru
          _
      $region12: #{tpu_custom_call.1} parent=5 // pred_fallthru
        _
      %p388 = scmp.lt.s32.totalorder %s23, 2
      // Predicated region
      $region61: #{tpu_custom_call.1} parent=5 // pred_check
        %p389 = pneg %p388
      $region62: #{tpu_custom_call.1} parent=5 // pred_check_branch
        %391 = sbr.rel (%p389) target = $region64
      $region63: #{tpu_custom_call.1} parent=5 // pred_region
        // Predicated region
        $region65: #{tpu_custom_call.1} parent=63 // pred_check
          %p392 = pneg %p43
        $region66: #{tpu_custom_call.1} parent=63 // pred_check_branch
          %394 = sbr.rel (%p392) target = $region68
        $region67: #{tpu_custom_call.1} parent=63 // pred_region
          %p395 = scmp.lt.s32.totalorder %s23, 1
          %s396 = scalar_select %p395, %s23, 1
          %s397 = smul.addr %s396, 8
          %s398 = scalar_lea.vmem %s0, %s397
        $region68: #{tpu_custom_call.1} parent=63 // pred_fallthru
          _
      $region64: #{tpu_custom_call.1} parent=5 // pred_fallthru
        _
      %p399 = scmp.le.s32.totalorder 1, %s23
      %p400 = scmp.lt.s32.totalorder %s23, 3
      %p401 = pnand %p399, %p400
      %p402 = pneg %p401
      // Predicated region
      $region69: #{tpu_custom_call.1} parent=5 // pred_check
        _
      $region70: #{tpu_custom_call.1} parent=5 // pred_check_branch
        %404 = sbr.rel (%p401) target = $region72
      $region71: #{tpu_custom_call.1} parent=5 // pred_region
        %s405 = ssub.s32 %s23, 1
        // Predicated region
        $region73: #{tpu_custom_call.1} parent=71 // pred_check
          %p406 = pneg %p238
        $region74: #{tpu_custom_call.1} parent=71 // pred_check_branch
          %408 = sbr.rel (%p406) target = $region76
        $region75: #{tpu_custom_call.1} parent=71 // pred_region
          %409 = dma.done [#allocation4], 2048
        $region76: #{tpu_custom_call.1} parent=71 // pred_fallthru
          _
        %p410 = scmp.lt.s32.totalorder %s28, 1
        %s411 = scalar_select %p410, %s28, 1
        %s412 = smul.addr %s411, 8
        %s413 = scalar_lea.vmem %s0, %s412
        %p414 = pneg %p49
        %p415 = pneg %p46
        %p416 = pneg %p70
        %p417 = pneg %p67
        %p418 = pneg %p91
        %p419 = pneg %p88
        %p420 = pneg %p112
        %p421 = pneg %p109
        %p422 = pneg %p133
        %p423 = pneg %p130
        %p424 = pneg %p154
        %p425 = pneg %p151
        %p426 = pneg %p175
        %p427 = pneg %p172
        %p428 = pneg %p196
        %p429 = pneg %p193
        %p430 = pneg %p217
        %p431 = pneg %p214
        %p432 = pneg %p238
        %p433 = pneg %p235
        %p434 = pneg %p259
        %p435 = pneg %p256
        %p436 = pneg %p280
        %p437 = pneg %p277
        %p438 = pneg %p301
        %p439 = pneg %p298
        %p440 = pneg %p327
        %p441 = pneg %p324
        %s442 = sand.u32 %s314, 1
        %s443 = scalar_lea.sflag [#allocation5], %s442
        %s444 = sand.u32 %s314, 1
        %s445 = smul.addr %s444, 8
        %s446 = scalar_lea.vmem [#allocation6], %s445
        %p447 = scmp.lt.s32.totalorder %s28, 1
        %s448 = scalar_select %p447, %s28, 1
        %s449 = smul.addr %s448, 8
        %s450 = scalar_lea.vmem %s0, %s449
        %v451 = vld [vmem:[%s450] sm:$0xff]
        %v452 = vld [vmem:[%s1] sm:$0xff]
        %v453 = vld [vmem:[%s1 + $0x8] sm:$0xff]
        %v454 = vld [vmem:[%s1 + $0x10] sm:$0xff]
        %v455 = vld [vmem:[%s1 + $0x18] sm:$0xff]
        %v456 = vld [vmem:[%s1 + $0x20] sm:$0xff]
        %v457 = vld [vmem:[%s1 + $0x28] sm:$0xff]
        %v458 = vld [vmem:[%s1 + $0x30] sm:$0xff]
        %v459 = vld [vmem:[%s1 + $0x38] sm:$0xff]
        %v460 = vld [vmem:[%s1 + $0x40] sm:$0xff]
        %v461 = vld [vmem:[%s1 + $0x48] sm:$0xff]
        %v462 = vld [vmem:[%s1 + $0x50] sm:$0xff]
        %v463 = vld [vmem:[%s1 + $0x58] sm:$0xff]
        %v464 = vld [vmem:[%s1 + $0x60] sm:$0xff]
        %v465 = vld [vmem:[%s1 + $0x68] sm:$0xff]
        %v466 = vld [vmem:[%s1 + $0x70] sm:$0xff]
        %v467 = vld [vmem:[%s1 + $0x78] sm:$0xff]
        %v468 = vld [vmem:[%s2] sm:$0x1]
        %v470 = vlaneseq
        %v471 = vshrl.u32 %v470, 7
        %v472 = vsub.s32 0, %v471
        %v473 = vrot.slane %v468, %v472
        %475 = vmatprep.subr.mxu0 0.0
        %476 = vmatpush1.msra.mxu0 %v467
        %477 = vmatprep.subr.mxu0 0.0
        %478 = vmatpush1.msra.mxu0 %v466
        %479 = vmatprep.subr.mxu0 0.0
        %480 = vmatpush1.msra.mxu0 %v465
        %481 = vmatprep.subr.mxu0 0.0
        %482 = vmatpush1.msra.mxu0 %v464
        %483 = vmatprep.subr.mxu0 0.0
        %484 = vmatpush1.msra.mxu0 %v463
        %485 = vmatprep.subr.mxu0 0.0
        %486 = vmatpush1.msra.mxu0 %v462
        %487 = vmatprep.subr.mxu0 0.0
        %488 = vmatpush1.msra.mxu0 %v461
        %489 = vmatprep.subr.mxu0 0.0
        %490 = vmatpush1.msra.mxu0 %v460
        %491 = vmatprep.subr.mxu0 0.0
        %492 = vmatpush1.msra.mxu0 %v459
        %493 = vmatprep.subr.mxu0 0.0
        %494 = vmatpush1.msra.mxu0 %v458
        %495 = vmatprep.subr.mxu0 0.0
        %496 = vmatpush1.msra.mxu0 %v457
        %497 = vmatprep.subr.mxu0 0.0
        %498 = vmatpush1.msra.mxu0 %v456
        %499 = vmatprep.subr.mxu0 0.0
        %500 = vmatpush1.msra.mxu0 %v455
        %501 = vmatprep.subr.mxu0 0.0
        %502 = vmatpush1.msra.mxu0 %v454
        %503 = vmatprep.subr.mxu0 0.0
        %504 = vmatpush1.msra.mxu0 %v453
        %505 = vmatprep.subr.mxu0 0.0
        %506 = vmatpush1.msra.mxu0 %v452
        %507 = vmatprep.subr.mxu0 0.0
        %508 = vmatpush2.msra.mxu0 0.0
        %509 = vmatprep.subr.mxu0 0.0
        %510 = vmatpush2.msra.mxu0 0.0
        %511 = vmatprep.subr.mxu0 0.0
        %512 = vmatpush2.msra.mxu0 0.0
        %513 = vmatprep.subr.mxu0 0.0
        %514 = vmatpush2.msra.mxu0 0.0
        %515 = vmatprep.subr.mxu0 0.0
        %516 = vmatpush2.msra.mxu0 0.0
        %517 = vmatprep.subr.mxu0 0.0
        %518 = vmatpush2.msra.mxu0 0.0
        %519 = vmatprep.subr.mxu0 0.0
        %520 = vmatpush2.msra.mxu0 0.0
        %521 = vmatprep.subr.mxu0 0.0
        %522 = vmatpush2.msra.mxu0 0.0
        %523 = vmatprep.subr.mxu0 0.0
        %524 = vmatpush2.msra.mxu0 0.0
        %525 = vmatprep.subr.mxu0 0.0
        %526 = vmatpush2.msra.mxu0 0.0
        %527 = vmatprep.subr.mxu0 0.0
        %528 = vmatpush2.msra.mxu0 0.0
        %529 = vmatprep.subr.mxu0 0.0
        %530 = vmatpush2.msra.mxu0 0.0
        %531 = vmatprep.subr.mxu0 0.0
        %532 = vmatpush2.msra.mxu0 0.0
        %533 = vmatprep.subr.mxu0 0.0
        %534 = vmatpush2.msra.mxu0 0.0
        %535 = vmatprep.subr.mxu0 0.0
        %536 = vmatpush2.msra.mxu0 0.0
        %537 = vmatprep.subr.mxu0 0.0
        %538 = vmatpush2.msra.mxu0 0.0
        %539 = vmatprep.mubr.f32.mxu0 0.0
        %540 = vmatmul.mubr.f32.gmra.mxu0 %v451
        %v541 = vpop.f32.mrf.mxu0
        %v542 = vadd.f32 %v473, %v541
        %v543 = vpop.f32.mrf.mxu0
        %544 = vdwg.mxu0
        %546 = vrot.lane.b32.xlu0 %v542, 96
        %v547 = vpop.permute.xlu0 %546
        %vm548 = vcmask 130048
        %v549 = vsel %vm548, %v542, 0
        %v551 = vsel %vm548, %v547, 0
        %553 = vmatprep.subr.mxu0 0.0
        %554 = vmatpush1.xpose.msra.mxu0 0.0
        %555 = vmatprep.subr.mxu0 0.0
        %556 = vmatpush1.xpose.msra.mxu0 0.0
        %557 = vmatprep.subr.mxu0 0.0
        %558 = vmatpush1.xpose.msra.mxu0 0.0
        %559 = vmatprep.subr.mxu0 0.0
        %560 = vmatpush1.xpose.msra.mxu0 0.0
        %561 = vmatprep.subr.mxu0 0.0
        %562 = vmatpush1.xpose.msra.mxu0 0.0
        %563 = vmatprep.subr.mxu0 0.0
        %564 = vmatpush1.xpose.msra.mxu0 0.0
        %565 = vmatprep.subr.mxu0 0.0
        %566 = vmatpush1.xpose.msra.mxu0 0.0
        %567 = vmatprep.subr.mxu0 0.0
        %568 = vmatpush1.xpose.msra.mxu0 0.0
        %569 = vmatprep.subr.mxu0 0.0
        %570 = vmatpush1.xpose.msra.mxu0 0.0
        %571 = vmatprep.subr.mxu0 0.0
        %572 = vmatpush1.xpose.msra.mxu0 0.0
        %573 = vmatprep.subr.mxu0 0.0
        %574 = vmatpush1.xpose.msra.mxu0 0.0
        %575 = vmatprep.subr.mxu0 0.0
        %576 = vmatpush1.xpose.msra.mxu0 0.0
        %577 = vmatprep.subr.mxu0 0.0
        %578 = vmatpush1.xpose.msra.mxu0 0.0
        %579 = vmatprep.subr.mxu0 0.0
        %580 = vmatpush1.xpose.msra.mxu0 0.0
        %581 = vmatprep.subr.mxu0 0.0
        %582 = vmatpush1.xpose.msra.mxu0 0.0
        %583 = vmatprep.subr.mxu0 0.0
        %584 = vmatpush1.xpose.msra.mxu0 %v551
        %585 = vmatprep.subr.mxu0 0.0
        %586 = vmatpush2.xpose.msra.mxu0 0.0
        %587 = vmatprep.subr.mxu0 0.0
        %588 = vmatpush2.xpose.msra.mxu0 0.0
        %589 = vmatprep.subr.mxu0 0.0
        %590 = vmatpush2.xpose.msra.mxu0 0.0
        %591 = vmatprep.subr.mxu0 0.0
        %592 = vmatpush2.xpose.msra.mxu0 0.0
        %593 = vmatprep.subr.mxu0 0.0
        %594 = vmatpush2.xpose.msra.mxu0 0.0
        %595 = vmatprep.subr.mxu0 0.0
        %596 = vmatpush2.xpose.msra.mxu0 0.0
        %597 = vmatprep.subr.mxu0 0.0
        %598 = vmatpush2.xpose.msra.mxu0 0.0
        %599 = vmatprep.subr.mxu0 0.0
        %600 = vmatpush2.xpose.msra.mxu0 0.0
        %601 = vmatprep.subr.mxu0 0.0
        %602 = vmatpush2.xpose.msra.mxu0 0.0
        %603 = vmatprep.subr.mxu0 0.0
        %604 = vmatpush2.xpose.msra.mxu0 0.0
        %605 = vmatprep.subr.mxu0 0.0
        %606 = vmatpush2.xpose.msra.mxu0 0.0
        %607 = vmatprep.subr.mxu0 0.0
        %608 = vmatpush2.xpose.msra.mxu0 0.0
        %609 = vmatprep.subr.mxu0 0.0
        %610 = vmatpush2.xpose.msra.mxu0 0.0
        %611 = vmatprep.subr.mxu0 0.0
        %612 = vmatpush2.xpose.msra.mxu0 0.0
        %613 = vmatprep.subr.mxu0 0.0
        %614 = vmatpush2.xpose.msra.mxu0 0.0
        %615 = vmatprep.subr.mxu0 0.0
        %616 = vmatpush2.xpose.msra.mxu0 0.0
        %617 = vmatprep.mubr.f32.mxu0 0.0
        %618 = vmatmul.mubr.f32.gmra.mxu0 %v549
        %v619 = vpop.f32.mrf.mxu0
        %v620 = vadd.f32 0.0, %v619
        %v621 = vpop.f32.mrf.mxu0
        %622 = vdwg.mxu0
        %v623 = vmul.f32 %v620, 0.25
        %vm624 = vcmask 64512
        %v625 = vsel %vm624, %v623, -inf
        %626 = vmax.xlane.f32.xlu0 %v625
        %v627 = vpop.xlane.xlu0 %626
        %v628 = vsub.f32 %v623, %v627
        %v629 = vmul.f32 %v628, 1.442695
        %v630 = vpow.pop %v629
        %v631 = vsel %vm624, %v630, 0.0
        %632 = vadd.xlane.f32.xlu0 %v631
        %v633 = vpop.xlane.xlu0 %632
        %v634 = vrcp.pop %v633
        %v635 = vmul.f32 %v630, %v634
        %636 = vrot.lane.b32.xlu0 %v542, 64
        %v637 = vpop.permute.xlu0 %636
        %v640 = vsel %vm624, %v635, 0
        %642 = vmatprep.subr.mxu0 0.0
        %643 = vmatpush1.msra.mxu0 0.0
        %644 = vmatprep.subr.mxu0 0.0
        %645 = vmatpush1.msra.mxu0 0.0
        %646 = vmatprep.subr.mxu0 0.0
        %647 = vmatpush1.msra.mxu0 0.0
        %648 = vmatprep.subr.mxu0 0.0
        %649 = vmatpush1.msra.mxu0 0.0
        %650 = vmatprep.subr.mxu0 0.0
        %651 = vmatpush1.msra.mxu0 0.0
        %652 = vmatprep.subr.mxu0 0.0
        %653 = vmatpush1.msra.mxu0 0.0
        %654 = vmatprep.subr.mxu0 0.0
        %655 = vmatpush1.msra.mxu0 0.0
        %656 = vmatprep.subr.mxu0 0.0
        %657 = vmatpush1.msra.mxu0 0.0
        %658 = vmatprep.subr.mxu0 0.0
        %659 = vmatpush1.msra.mxu0 0.0
        %660 = vmatprep.subr.mxu0 0.0
        %661 = vmatpush1.msra.mxu0 0.0
        %662 = vmatprep.subr.mxu0 0.0
        %663 = vmatpush1.msra.mxu0 0.0
        %664 = vmatprep.subr.mxu0 0.0
        %665 = vmatpush1.msra.mxu0 0.0
        %666 = vmatprep.subr.mxu0 0.0
        %667 = vmatpush1.msra.mxu0 0.0
        %668 = vmatprep.subr.mxu0 0.0
        %669 = vmatpush1.msra.mxu0 0.0
        %670 = vmatprep.subr.mxu0 0.0
        %671 = vmatpush1.msra.mxu0 0.0
        %672 = vmatprep.subr.mxu0 0.0
        %673 = vmatpush1.msra.mxu0 %v637
        %674 = vmatprep.subr.mxu0 0.0
        %675 = vmatpush2.msra.mxu0 0.0
        %676 = vmatprep.subr.mxu0 0.0
        %677 = vmatpush2.msra.mxu0 0.0
        %678 = vmatprep.subr.mxu0 0.0
        %679 = vmatpush2.msra.mxu0 0.0
        %680 = vmatprep.subr.mxu0 0.0
        %681 = vmatpush2.msra.mxu0 0.0
        %682 = vmatprep.subr.mxu0 0.0
        %683 = vmatpush2.msra.mxu0 0.0
        %684 = vmatprep.subr.mxu0 0.0
        %685 = vmatpush2.msra.mxu0 0.0
        %686 = vmatprep.subr.mxu0 0.0
        %687 = vmatpush2.msra.mxu0 0.0
        %688 = vmatprep.subr.mxu0 0.0
        %689 = vmatpush2.msra.mxu0 0.0
        %690 = vmatprep.subr.mxu0 0.0
        %691 = vmatpush2.msra.mxu0 0.0
        %692 = vmatprep.subr.mxu0 0.0
        %693 = vmatpush2.msra.mxu0 0.0
        %694 = vmatprep.subr.mxu0 0.0
        %695 = vmatpush2.msra.mxu0 0.0
        %696 = vmatprep.subr.mxu0 0.0
        %697 = vmatpush2.msra.mxu0 0.0
        %698 = vmatprep.subr.mxu0 0.0
        %699 = vmatpush2.msra.mxu0 0.0
        %700 = vmatprep.subr.mxu0 0.0
        %701 = vmatpush2.msra.mxu0 0.0
        %702 = vmatprep.subr.mxu0 0.0
        %703 = vmatpush2.msra.mxu0 0.0
        %704 = vmatprep.subr.mxu0 0.0
        %705 = vmatpush2.msra.mxu0 0.0
        %706 = vmatprep.mubr.f32.mxu0 0.0
        %707 = vmatmul.mubr.f32.gmra.mxu0 %v640
        %v708 = vpop.f32.mrf.mxu0
        %v709 = vadd.f32 0.0, %v708
        %v710 = vpop.f32.mrf.mxu0
        %711 = vdwg.mxu0
        %712 = vst.msk [vmem:[#allocation2] sm:$0xff] %vm548, %v709
        %713 = vrot.lane.b32.xlu0 %v542, 112
        %v714 = vpop.permute.xlu0 %713
        %715 = vrot.lane.b32.xlu0 %v542, 80
        %v716 = vpop.permute.xlu0 %715
        %v717 = vsel %vm548, %v714, 0
        %v719 = vsel %vm548, %v716, 0
        %721 = vmatprep.subr.mxu0 0.0
        %722 = vmatpush1.xpose.msra.mxu0 0.0
        %723 = vmatprep.subr.mxu0 0.0
        %724 = vmatpush1.xpose.msra.mxu0 0.0
        %725 = vmatprep.subr.mxu0 0.0
        %726 = vmatpush1.xpose.msra.mxu0 0.0
        %727 = vmatprep.subr.mxu0 0.0
        %728 = vmatpush1.xpose.msra.mxu0 0.0
        %729 = vmatprep.subr.mxu0 0.0
        %730 = vmatpush1.xpose.msra.mxu0 0.0
        %731 = vmatprep.subr.mxu0 0.0
        %732 = vmatpush1.xpose.msra.mxu0 0.0
        %733 = vmatprep.subr.mxu0 0.0
        %734 = vmatpush1.xpose.msra.mxu0 0.0
        %735 = vmatprep.subr.mxu0 0.0
        %736 = vmatpush1.xpose.msra.mxu0 0.0
        %737 = vmatprep.subr.mxu0 0.0
        %738 = vmatpush1.xpose.msra.mxu0 0.0
        %739 = vmatprep.subr.mxu0 0.0
        %740 = vmatpush1.xpose.msra.mxu0 0.0
        %741 = vmatprep.subr.mxu0 0.0
        %742 = vmatpush1.xpose.msra.mxu0 0.0
        %743 = vmatprep.subr.mxu0 0.0
        %744 = vmatpush1.xpose.msra.mxu0 0.0
        %745 = vmatprep.subr.mxu0 0.0
        %746 = vmatpush1.xpose.msra.mxu0 0.0
        %747 = vmatprep.subr.mxu0 0.0
        %748 = vmatpush1.xpose.msra.mxu0 0.0
        %749 = vmatprep.subr.mxu0 0.0
        %750 = vmatpush1.xpose.msra.mxu0 0.0
        %751 = vmatprep.subr.mxu0 0.0
        %752 = vmatpush1.xpose.msra.mxu0 %v719
        %753 = vmatprep.subr.mxu0 0.0
        %754 = vmatpush2.xpose.msra.mxu0 0.0
        %755 = vmatprep.subr.mxu0 0.0
        %756 = vmatpush2.xpose.msra.mxu0 0.0
        %757 = vmatprep.subr.mxu0 0.0
        %758 = vmatpush2.xpose.msra.mxu0 0.0
        %759 = vmatprep.subr.mxu0 0.0
        %760 = vmatpush2.xpose.msra.mxu0 0.0
        %761 = vmatprep.subr.mxu0 0.0
        %762 = vmatpush2.xpose.msra.mxu0 0.0
        %763 = vmatprep.subr.mxu0 0.0
        %764 = vmatpush2.xpose.msra.mxu0 0.0
        %765 = vmatprep.subr.mxu0 0.0
        %766 = vmatpush2.xpose.msra.mxu0 0.0
        %767 = vmatprep.subr.mxu0 0.0
        %768 = vmatpush2.xpose.msra.mxu0 0.0
        %769 = vmatprep.subr.mxu0 0.0
        %770 = vmatpush2.xpose.msra.mxu0 0.0
        %771 = vmatprep.subr.mxu0 0.0
        %772 = vmatpush2.xpose.msra.mxu0 0.0
        %773 = vmatprep.subr.mxu0 0.0
        %774 = vmatpush2.xpose.msra.mxu0 0.0
        %775 = vmatprep.subr.mxu0 0.0
        %776 = vmatpush2.xpose.msra.mxu0 0.0
        %777 = vmatprep.subr.mxu0 0.0
        %778 = vmatpush2.xpose.msra.mxu0 0.0
        %779 = vmatprep.subr.mxu0 0.0
        %780 = vmatpush2.xpose.msra.mxu0 0.0
        %781 = vmatprep.subr.mxu0 0.0
        %782 = vmatpush2.xpose.msra.mxu0 0.0
        %783 = vmatprep.subr.mxu0 0.0
        %784 = vmatpush2.xpose.msra.mxu0 0.0
        %785 = vmatprep.mubr.f32.mxu0 0.0
        %786 = vmatmul.mubr.f32.gmra.mxu0 %v717
        %v787 = vpop.f32.mrf.mxu0
        %v788 = vadd.f32 0.0, %v787
        %v789 = vpop.f32.mrf.mxu0
        %790 = vdwg.mxu0
        %v791 = vmul.f32 %v788, 0.25
        %v792 = vsel %vm624, %v791, -inf
        %793 = vmax.xlane.f32.xlu0 %v792
        %v794 = vpop.xlane.xlu0 %793
        %v795 = vsub.f32 %v791, %v794
        %v796 = vmul.f32 %v795, 1.442695
        %v797 = vpow.pop %v796
        %v798 = vsel %vm624, %v797, 0.0
        %799 = vadd.xlane.f32.xlu0 %v798
        %v800 = vpop.xlane.xlu0 %799
        %v801 = vrcp.pop %v800
        %v802 = vmul.f32 %v797, %v801
        %803 = vrot.lane.b32.xlu0 %v542, 48
        %v804 = vpop.permute.xlu0 %803
        %v807 = vsel %vm624, %v802, 0
        %809 = vmatprep.subr.mxu0 0.0
        %810 = vmatpush1.msra.mxu0 0.0
        %811 = vmatprep.subr.mxu0 0.0
        %812 = vmatpush1.msra.mxu0 0.0
        %813 = vmatprep.subr.mxu0 0.0
        %814 = vmatpush1.msra.mxu0 0.0
        %815 = vmatprep.subr.mxu0 0.0
        %816 = vmatpush1.msra.mxu0 0.0
        %817 = vmatprep.subr.mxu0 0.0
        %818 = vmatpush1.msra.mxu0 0.0
        %819 = vmatprep.subr.mxu0 0.0
        %820 = vmatpush1.msra.mxu0 0.0
        %821 = vmatprep.subr.mxu0 0.0
        %822 = vmatpush1.msra.mxu0 0.0
        %823 = vmatprep.subr.mxu0 0.0
        %824 = vmatpush1.msra.mxu0 0.0
        %825 = vmatprep.subr.mxu0 0.0
        %826 = vmatpush1.msra.mxu0 0.0
        %827 = vmatprep.subr.mxu0 0.0
        %828 = vmatpush1.msra.mxu0 0.0
        %829 = vmatprep.subr.mxu0 0.0
        %830 = vmatpush1.msra.mxu0 0.0
        %831 = vmatprep.subr.mxu0 0.0
        %832 = vmatpush1.msra.mxu0 0.0
        %833 = vmatprep.subr.mxu0 0.0
        %834 = vmatpush1.msra.mxu0 0.0
        %835 = vmatprep.subr.mxu0 0.0
        %836 = vmatpush1.msra.mxu0 0.0
        %837 = vmatprep.subr.mxu0 0.0
        %838 = vmatpush1.msra.mxu0 0.0
        %839 = vmatprep.subr.mxu0 0.0
        %840 = vmatpush1.msra.mxu0 %v804
        %841 = vmatprep.subr.mxu0 0.0
        %842 = vmatpush2.msra.mxu0 0.0
        %843 = vmatprep.subr.mxu0 0.0
        %844 = vmatpush2.msra.mxu0 0.0
        %845 = vmatprep.subr.mxu0 0.0
        %846 = vmatpush2.msra.mxu0 0.0
        %847 = vmatprep.subr.mxu0 0.0
        %848 = vmatpush2.msra.mxu0 0.0
        %849 = vmatprep.subr.mxu0 0.0
        %850 = vmatpush2.msra.mxu0 0.0
        %851 = vmatprep.subr.mxu0 0.0
        %852 = vmatpush2.msra.mxu0 0.0
        %853 = vmatprep.subr.mxu0 0.0
        %854 = vmatpush2.msra.mxu0 0.0
        %855 = vmatprep.subr.mxu0 0.0
        %856 = vmatpush2.msra.mxu0 0.0
        %857 = vmatprep.subr.mxu0 0.0
        %858 = vmatpush2.msra.mxu0 0.0
        %859 = vmatprep.subr.mxu0 0.0
        %860 = vmatpush2.msra.mxu0 0.0
        %861 = vmatprep.subr.mxu0 0.0
        %862 = vmatpush2.msra.mxu0 0.0
        %863 = vmatprep.subr.mxu0 0.0
        %864 = vmatpush2.msra.mxu0 0.0
        %865 = vmatprep.subr.mxu0 0.0
        %866 = vmatpush2.msra.mxu0 0.0
        %867 = vmatprep.subr.mxu0 0.0
        %868 = vmatpush2.msra.mxu0 0.0
        %869 = vmatprep.subr.mxu0 0.0
        %870 = vmatpush2.msra.mxu0 0.0
        %871 = vmatprep.subr.mxu0 0.0
        %872 = vmatpush2.msra.mxu0 0.0
        %873 = vmatprep.mubr.f32.mxu0 0.0
        %874 = vmatmul.mubr.f32.gmra.mxu0 %v807
        %v875 = vpop.f32.mrf.mxu0
        %v876 = vadd.f32 0.0, %v875
        %v877 = vpop.f32.mrf.mxu0
        %878 = vdwg.mxu0
        %880 = vrot.lane.b32.xlu0 %v876, 16
        %v881 = vpop.permute.xlu0 %880
        %vm883 = vcmask 261248
        %884 = vst.msk [vmem:[#allocation2] sm:$0xff] %vm883, %v881
        %v885 = vld [vmem:[#allocation2] sm:$0xff]
        %v886 = vld [vmem:[%s3] sm:$0xff]
        %v887 = vld [vmem:[%s3 + $0x8] sm:$0xff]
        %v888 = vld [vmem:[%s3 + $0x10] sm:$0xff]
        %v889 = vld [vmem:[%s3 + $0x18] sm:$0xff]
        %v890 = vld [vmem:[%s4] sm:$0x1]
        %v892 = vlaneseq
        %v893 = vshrl.u32 %v892, 7
        %v894 = vsub.s32 0, %v893
        %v895 = vrot.slane %v890, %v894
        %vm897 = vcmask 261120
        %v899 = vsel %vm897, %v885, 0
        %901 = vmatprep.subr.mxu0 0.0
        %902 = vmatpush1.msra.mxu0 0.0
        %903 = vmatprep.subr.mxu0 0.0
        %904 = vmatpush1.msra.mxu0 0.0
        %905 = vmatprep.subr.mxu0 0.0
        %906 = vmatpush1.msra.mxu0 0.0
        %907 = vmatprep.subr.mxu0 0.0
        %908 = vmatpush1.msra.mxu0 0.0
        %909 = vmatprep.subr.mxu0 0.0
        %910 = vmatpush1.msra.mxu0 0.0
        %911 = vmatprep.subr.mxu0 0.0
        %912 = vmatpush1.msra.mxu0 0.0
        %913 = vmatprep.subr.mxu0 0.0
        %914 = vmatpush1.msra.mxu0 0.0
        %915 = vmatprep.subr.mxu0 0.0
        %916 = vmatpush1.msra.mxu0 0.0
        %917 = vmatprep.subr.mxu0 0.0
        %918 = vmatpush1.msra.mxu0 0.0
        %919 = vmatprep.subr.mxu0 0.0
        %920 = vmatpush1.msra.mxu0 0.0
        %921 = vmatprep.subr.mxu0 0.0
        %922 = vmatpush1.msra.mxu0 0.0
        %923 = vmatprep.subr.mxu0 0.0
        %924 = vmatpush1.msra.mxu0 0.0
        %925 = vmatprep.subr.mxu0 0.0
        %926 = vmatpush1.msra.mxu0 %v889
        %927 = vmatprep.subr.mxu0 0.0
        %928 = vmatpush1.msra.mxu0 %v888
        %929 = vmatprep.subr.mxu0 0.0
        %930 = vmatpush1.msra.mxu0 %v887
        %931 = vmatprep.subr.mxu0 0.0
        %932 = vmatpush1.msra.mxu0 %v886
        %933 = vmatprep.subr.mxu0 0.0
        %934 = vmatpush2.msra.mxu0 0.0
        %935 = vmatprep.subr.mxu0 0.0
        %936 = vmatpush2.msra.mxu0 0.0
        %937 = vmatprep.subr.mxu0 0.0
        %938 = vmatpush2.msra.mxu0 0.0
        %939 = vmatprep.subr.mxu0 0.0
        %940 = vmatpush2.msra.mxu0 0.0
        %941 = vmatprep.subr.mxu0 0.0
        %942 = vmatpush2.msra.mxu0 0.0
        %943 = vmatprep.subr.mxu0 0.0
        %944 = vmatpush2.msra.mxu0 0.0
        %945 = vmatprep.subr.mxu0 0.0
        %946 = vmatpush2.msra.mxu0 0.0
        %947 = vmatprep.subr.mxu0 0.0
        %948 = vmatpush2.msra.mxu0 0.0
        %949 = vmatprep.subr.mxu0 0.0
        %950 = vmatpush2.msra.mxu0 0.0
        %951 = vmatprep.subr.mxu0 0.0
        %952 = vmatpush2.msra.mxu0 0.0
        %953 = vmatprep.subr.mxu0 0.0
        %954 = vmatpush2.msra.mxu0 0.0
        %955 = vmatprep.subr.mxu0 0.0
        %956 = vmatpush2.msra.mxu0 0.0
        %957 = vmatprep.subr.mxu0 0.0
        %958 = vmatpush2.msra.mxu0 0.0
        %959 = vmatprep.subr.mxu0 0.0
        %960 = vmatpush2.msra.mxu0 0.0
        %961 = vmatprep.subr.mxu0 0.0
        %962 = vmatpush2.msra.mxu0 0.0
        %963 = vmatprep.subr.mxu0 0.0
        %964 = vmatpush2.msra.mxu0 0.0
        %965 = vmatprep.mubr.f32.mxu0 0.0
        %966 = vmatmul.mubr.f32.gmra.mxu0 %v899
        %v967 = vpop.f32.mrf.mxu0
        %v968 = vadd.f32 %v895, %v967
        %v969 = vpop.f32.mrf.mxu0
        %970 = vdwg.mxu0
        %v971 = vadd.f32 %v451, %v968
        %v972 = vld [vmem:[%s5] sm:$0x1]
        %v973 = vld [vmem:[%s6] sm:$0x1]
        %974 = vadd.xlane.f32.xlu0 %v971
        %v975 = vpop.xlane.xlu0 %974
        %v976 = vmul.f32 %v975, 0.03125
        %v977 = vlaneseq
        %v978 = vand.u32 %v977, 127
        %vm979 = vcmp.lt.s32.totalorder %v978, 32
        %v980 = vsub.f32 %v971, %v976
        %v981 = vsel %vm979, %v980, 0.0
        %v982 = vmul.f32 %v981, %v981
        %983 = vadd.xlane.f32.xlu0 %v982
        %v984 = vpop.xlane.xlu0 %983
        %v985 = vmul.f32 %v984, 0.03125
        %v986 = vadd.f32 %v985, 1e-05
        %v987 = vrsqrt.pop %v986
        %v988 = vmul.f32 %v981, %v987
        %v990 = vlaneseq
        %v991 = vshrl.u32 %v990, 7
        %v992 = vsub.s32 0, %v991
        %v993 = vrot.slane %v972, %v992
        %v995 = vmul.f32 %v988, %v993
        %v997 = vlaneseq
        %v998 = vshrl.u32 %v997, 7
        %v999 = vsub.s32 0, %v998
        %v1000 = vrot.slane %v973, %v999
        %v1002 = vadd.f32 %v995, %v1000
        %v1003 = vld [vmem:[%s7] sm:$0xff]
        %v1004 = vld [vmem:[%s7 + $0x8] sm:$0xff]
        %v1005 = vld [vmem:[%s7 + $0x10] sm:$0xff]
        %v1006 = vld [vmem:[%s7 + $0x18] sm:$0xff]
        %v1007 = vld [vmem:[%s7 + $0x20] sm:$0xff]
        %v1008 = vld [vmem:[%s7 + $0x28] sm:$0xff]
        %v1009 = vld [vmem:[%s7 + $0x30] sm:$0xff]
        %v1010 = vld [vmem:[%s7 + $0x38] sm:$0xff]
        %v1011 = vld [vmem:[%s7 + $0x40] sm:$0xff]
        %v1012 = vld [vmem:[%s7 + $0x48] sm:$0xff]
        %v1013 = vld [vmem:[%s7 + $0x50] sm:$0xff]
        %v1014 = vld [vmem:[%s7 + $0x58] sm:$0xff]
        %v1015 = vld [vmem:[%s7 + $0x60] sm:$0xff]
        %v1016 = vld [vmem:[%s7 + $0x68] sm:$0xff]
        %v1017 = vld [vmem:[%s7 + $0x70] sm:$0xff]
        %v1018 = vld [vmem:[%s7 + $0x78] sm:$0xff]
        %v1019 = vld [vmem:[%s8] sm:$0x1]
        %v1021 = vlaneseq
        %v1022 = vshrl.u32 %v1021, 7
        %v1023 = vsub.s32 0, %v1022
        %v1024 = vrot.slane %v1019, %v1023
        %1026 = vmatprep.subr.mxu0 0.0
        %1027 = vmatpush1.msra.mxu0 %v1018
        %1028 = vmatprep.subr.mxu0 0.0
        %1029 = vmatpush1.msra.mxu0 %v1017
        %1030 = vmatprep.subr.mxu0 0.0
        %1031 = vmatpush1.msra.mxu0 %v1016
        %1032 = vmatprep.subr.mxu0 0.0
        %1033 = vmatpush1.msra.mxu0 %v1015
        %1034 = vmatprep.subr.mxu0 0.0
        %1035 = vmatpush1.msra.mxu0 %v1014
        %1036 = vmatprep.subr.mxu0 0.0
        %1037 = vmatpush1.msra.mxu0 %v1013
        %1038 = vmatprep.subr.mxu0 0.0
        %1039 = vmatpush1.msra.mxu0 %v1012
        %1040 = vmatprep.subr.mxu0 0.0
        %1041 = vmatpush1.msra.mxu0 %v1011
        %1042 = vmatprep.subr.mxu0 0.0
        %1043 = vmatpush1.msra.mxu0 %v1010
        %1044 = vmatprep.subr.mxu0 0.0
        %1045 = vmatpush1.msra.mxu0 %v1009
        %1046 = vmatprep.subr.mxu0 0.0
        %1047 = vmatpush1.msra.mxu0 %v1008
        %1048 = vmatprep.subr.mxu0 0.0
        %1049 = vmatpush1.msra.mxu0 %v1007
        %1050 = vmatprep.subr.mxu0 0.0
        %1051 = vmatpush1.msra.mxu0 %v1006
        %1052 = vmatprep.subr.mxu0 0.0
        %1053 = vmatpush1.msra.mxu0 %v1005
        %1054 = vmatprep.subr.mxu0 0.0
        %1055 = vmatpush1.msra.mxu0 %v1004
        %1056 = vmatprep.subr.mxu0 0.0
        %1057 = vmatpush1.msra.mxu0 %v1003
        %1058 = vmatprep.subr.mxu0 0.0
        %1059 = vmatpush2.msra.mxu0 0.0
        %1060 = vmatprep.subr.mxu0 0.0
        %1061 = vmatpush2.msra.mxu0 0.0
        %1062 = vmatprep.subr.mxu0 0.0
        %1063 = vmatpush2.msra.mxu0 0.0
        %1064 = vmatprep.subr.mxu0 0.0
        %1065 = vmatpush2.msra.mxu0 0.0
        %1066 = vmatprep.subr.mxu0 0.0
        %1067 = vmatpush2.msra.mxu0 0.0
        %1068 = vmatprep.subr.mxu0 0.0
        %1069 = vmatpush2.msra.mxu0 0.0
        %1070 = vmatprep.subr.mxu0 0.0
        %1071 = vmatpush2.msra.mxu0 0.0
        %1072 = vmatprep.subr.mxu0 0.0
        %1073 = vmatpush2.msra.mxu0 0.0
        %1074 = vmatprep.subr.mxu0 0.0
        %1075 = vmatpush2.msra.mxu0 0.0
        %1076 = vmatprep.subr.mxu0 0.0
        %1077 = vmatpush2.msra.mxu0 0.0
        %1078 = vmatprep.subr.mxu0 0.0
        %1079 = vmatpush2.msra.mxu0 0.0
        %1080 = vmatprep.subr.mxu0 0.0
        %1081 = vmatpush2.msra.mxu0 0.0
        %1082 = vmatprep.subr.mxu0 0.0
        %1083 = vmatpush2.msra.mxu0 0.0
        %1084 = vmatprep.subr.mxu0 0.0
        %1085 = vmatpush2.msra.mxu0 0.0
        %1086 = vmatprep.subr.mxu0 0.0
        %1087 = vmatpush2.msra.mxu0 0.0
        %1088 = vmatprep.subr.mxu0 0.0
        %1089 = vmatpush2.msra.mxu0 0.0
        %1090 = vmatprep.mubr.f32.mxu0 0.0
        %1091 = vmatmul.mubr.f32.gmra.mxu0 %v1002
        %v1092 = vpop.f32.mrf.mxu0
        %v1093 = vadd.f32 %v1024, %v1092
        %v1094 = vpop.f32.mrf.mxu0
        %1095 = vdwg.mxu0
        %v1096 = vmul.f32 %v1093, 0.5
        %v1097 = vmul.f32 %v1093, 0.70710677
        %vm1098 = vcmp.ge.f32.partialorder %v1097, 0.0
        %v1099 = vsel %vm1098, 1.0, -1.0
        %v1100 = vand.u32 2147483647, %v1097
        %v1101 = vmul.f32 %v1100, 0.3275911
        %v1102 = vadd.f32 %v1101, 1.0
        %v1103 = vrcp.pop %v1102
        %v1104 = vmul.f32 1.0, %v1103
        %v1105 = vmul.f32 %v1104, 1.0614054
        %v1106 = vadd.f32 %v1105, -1.4531521
        %v1107 = vmul.f32 %v1106, %v1104
        %v1108 = vadd.f32 %v1107, 1.4214138
        %v1109 = vmul.f32 %v1108, %v1104
        %v1110 = vadd.f32 %v1109, -0.28449672
        %v1111 = vmul.f32 %v1110, %v1104
        %v1112 = vadd.f32 %v1111, 0.2548296
        %v1113 = vmul.f32 %v1112, %v1104
        %v1114 = vsub.f32 0.0, %v1100
        %v1115 = vmul.f32 %v1114, %v1100
        %v1116 = vmul.f32 %v1115, 1.442695
        %v1117 = vpow.pop %v1116
        %v1118 = vmul.f32 %v1113, %v1117
        %v1119 = vsub.f32 1.0, %v1118
        %v1120 = vmul.f32 %v1099, %v1119
        %v1121 = vadd.f32 %v1120, 1.0
        %v1122 = vmul.f32 %v1096, %v1121
        %v1123 = vld [vmem:[#allocation3] sm:$0xff]
        %v1124 = vld [vmem:[#allocation3 + $0x8] sm:$0xff]
        %v1125 = vld [vmem:[#allocation3 + $0x10] sm:$0xff]
        %v1126 = vld [vmem:[#allocation3 + $0x18] sm:$0xff]
        %v1127 = vld [vmem:[#allocation3 + $0x20] sm:$0xff]
        %v1128 = vld [vmem:[#allocation3 + $0x28] sm:$0xff]
        %v1129 = vld [vmem:[#allocation3 + $0x30] sm:$0xff]
        %v1130 = vld [vmem:[#allocation3 + $0x38] sm:$0xff]
        %v1131 = vld [vmem:[#allocation3 + $0x40] sm:$0xff]
        %v1132 = vld [vmem:[#allocation3 + $0x48] sm:$0xff]
        %v1133 = vld [vmem:[#allocation3 + $0x50] sm:$0xff]
        %v1134 = vld [vmem:[#allocation3 + $0x58] sm:$0xff]
        %v1135 = vld [vmem:[#allocation3 + $0x60] sm:$0xff]
        %v1136 = vld [vmem:[#allocation3 + $0x68] sm:$0xff]
        %v1137 = vld [vmem:[#allocation3 + $0x70] sm:$0xff]
        %v1138 = vld [vmem:[#allocation3 + $0x78] sm:$0xff]
        %v1139 = vld [vmem:[%s10] sm:$0x1]
        %v1141 = vlaneseq
        %v1142 = vshrl.u32 %v1141, 7
        %v1143 = vsub.s32 0, %v1142
        %v1144 = vrot.slane %v1139, %v1143
        %1146 = vmatprep.subr.mxu0 0.0
        %1147 = vmatpush1.msra.mxu0 %v1138
        %1148 = vmatprep.subr.mxu0 0.0
        %1149 = vmatpush1.msra.mxu0 %v1137
        %1150 = vmatprep.subr.mxu0 0.0
        %1151 = vmatpush1.msra.mxu0 %v1136
        %1152 = vmatprep.subr.mxu0 0.0
        %1153 = vmatpush1.msra.mxu0 %v1135
        %1154 = vmatprep.subr.mxu0 0.0
        %1155 = vmatpush1.msra.mxu0 %v1134
        %1156 = vmatprep.subr.mxu0 0.0
        %1157 = vmatpush1.msra.mxu0 %v1133
        %1158 = vmatprep.subr.mxu0 0.0
        %1159 = vmatpush1.msra.mxu0 %v1132
        %1160 = vmatprep.subr.mxu0 0.0
        %1161 = vmatpush1.msra.mxu0 %v1131
        %1162 = vmatprep.subr.mxu0 0.0
        %1163 = vmatpush1.msra.mxu0 %v1130
        %1164 = vmatprep.subr.mxu0 0.0
        %1165 = vmatpush1.msra.mxu0 %v1129
        %1166 = vmatprep.subr.mxu0 0.0
        %1167 = vmatpush1.msra.mxu0 %v1128
        %1168 = vmatprep.subr.mxu0 0.0
        %1169 = vmatpush1.msra.mxu0 %v1127
        %1170 = vmatprep.subr.mxu0 0.0
        %1171 = vmatpush1.msra.mxu0 %v1126
        %1172 = vmatprep.subr.mxu0 0.0
        %1173 = vmatpush1.msra.mxu0 %v1125
        %1174 = vmatprep.subr.mxu0 0.0
        %1175 = vmatpush1.msra.mxu0 %v1124
        %1176 = vmatprep.subr.mxu0 0.0
        %1177 = vmatpush1.msra.mxu0 %v1123
        %1178 = vmatprep.subr.mxu0 0.0
        %1179 = vmatpush2.msra.mxu0 0.0
        %1180 = vmatprep.subr.mxu0 0.0
        %1181 = vmatpush2.msra.mxu0 0.0
        %1182 = vmatprep.subr.mxu0 0.0
        %1183 = vmatpush2.msra.mxu0 0.0
        %1184 = vmatprep.subr.mxu0 0.0
        %1185 = vmatpush2.msra.mxu0 0.0
        %1186 = vmatprep.subr.mxu0 0.0
        %1187 = vmatpush2.msra.mxu0 0.0
        %1188 = vmatprep.subr.mxu0 0.0
        %1189 = vmatpush2.msra.mxu0 0.0
        %1190 = vmatprep.subr.mxu0 0.0
        %1191 = vmatpush2.msra.mxu0 0.0
        %1192 = vmatprep.subr.mxu0 0.0
        %1193 = vmatpush2.msra.mxu0 0.0
        %1194 = vmatprep.subr.mxu0 0.0
        %1195 = vmatpush2.msra.mxu0 0.0
        %1196 = vmatprep.subr.mxu0 0.0
        %1197 = vmatpush2.msra.mxu0 0.0
        %1198 = vmatprep.subr.mxu0 0.0
        %1199 = vmatpush2.msra.mxu0 0.0
        %1200 = vmatprep.subr.mxu0 0.0
        %1201 = vmatpush2.msra.mxu0 0.0
        %1202 = vmatprep.subr.mxu0 0.0
        %1203 = vmatpush2.msra.mxu0 0.0
        %1204 = vmatprep.subr.mxu0 0.0
        %1205 = vmatpush2.msra.mxu0 0.0
        %1206 = vmatprep.subr.mxu0 0.0
        %1207 = vmatpush2.msra.mxu0 0.0
        %1208 = vmatprep.subr.mxu0 0.0
        %1209 = vmatpush2.msra.mxu0 0.0
        %1210 = vmatprep.mubr.f32.mxu0 0.0
        %1211 = vmatmul.mubr.f32.gmra.mxu0 %v1122
        %v1212 = vpop.f32.mrf.mxu0
        %v1213 = vadd.f32 %v1144, %v1212
        %v1214 = vpop.f32.mrf.mxu0
        %1215 = vdwg.mxu0
        %v1216 = vadd.f32 %v1002, %v1213
        %v1217 = vld [vmem:[%s11] sm:$0x1]
        %v1218 = vld [vmem:[%s12] sm:$0x1]
        %1219 = vadd.xlane.f32.xlu0 %v1216
        %v1220 = vpop.xlane.xlu0 %1219
        %v1221 = vmul.f32 %v1220, 0.03125
        %v1222 = vsub.f32 %v1216, %v1221
        %v1223 = vsel %vm979, %v1222, 0.0
        %v1224 = vmul.f32 %v1223, %v1223
        %1225 = vadd.xlane.f32.xlu0 %v1224
        %v1226 = vpop.xlane.xlu0 %1225
        %v1227 = vmul.f32 %v1226, 0.03125
        %v1228 = vadd.f32 %v1227, 1e-05
        %v1229 = vrsqrt.pop %v1228
        %v1230 = vmul.f32 %v1223, %v1229
        %v1232 = vlaneseq
        %v1233 = vshrl.u32 %v1232, 7
        %v1234 = vsub.s32 0, %v1233
        %v1235 = vrot.slane %v1217, %v1234
        %v1237 = vmul.f32 %v1230, %v1235
        %v1239 = vlaneseq
        %v1240 = vshrl.u32 %v1239, 7
        %v1241 = vsub.s32 0, %v1240
        %v1242 = vrot.slane %v1218, %v1241
        %v1244 = vadd.f32 %v1237, %v1242
        %1245 = vst [vmem:[%s446] sm:$0xff] %v1244
        %s1246 = sand.u32 %s314, 1
        %s1247 = scalar_lea.sflag [#allocation5], %s1246
        %s1248 = sand.u32 %s314, 1
        %s1249 = smul.addr %s1248, 8
        %s1250 = scalar_lea.vmem [#allocation6], %s1249
        // Predicated region
        $region77: #{tpu_custom_call.1} parent=71 // pred_check
          %p1251 = pneg %p324
        $region78: #{tpu_custom_call.1} parent=71 // pred_check_branch
          %1253 = sbr.rel (%p1251) target = $region80
        $region79: #{tpu_custom_call.1} parent=71 // pred_region
          %s1255 = ssub.s32 128, 128
          %1256 = vsyncadd %s1247, %s1255
          %s1257 = smul.addr %s28, 128
          %s1258 = scalar_lea.hbm %s13, %s1257
          %s1260 = sshll.u32 %s1250, 4
          %s1261 = int_to_ptr.vmem [resolvable:$true] %s1260
          %1263 = dma.vmem_to_hbm [thread:$0]  %s1261, 128, %s1258, %s1247
        $region80: #{tpu_custom_call.1} parent=71 // pred_fallthru
          _
      $region72: #{tpu_custom_call.1} parent=5 // pred_fallthru
        _
      %p1264 = scmp.le.s32.totalorder 2, %s23
      // Predicated region
      $region81: #{tpu_custom_call.1} parent=5 // pred_check
        %p1265 = pneg %p1264
      $region82: #{tpu_custom_call.1} parent=5 // pred_check_branch
        %1267 = sbr.rel (%p1265) target = $region84
      $region83: #{tpu_custom_call.1} parent=5 // pred_region
        %s1268 = ssub.s32 %s23, 2
        // Predicated region
        $region85: #{tpu_custom_call.1} parent=83 // pred_check
          %p1269 = pneg %p330
        $region86: #{tpu_custom_call.1} parent=83 // pred_check_branch
          %1271 = sbr.rel (%p1269) target = $region88
        $region87: #{tpu_custom_call.1} parent=83 // pred_region
          %s1272 = sand.u32 %s315, 1
          %s1273 = scalar_lea.sflag [#allocation5], %s1272
          %s1274 = sand.u32 %s315, 1
          %s1275 = smul.addr %s1274, 8
          %s1276 = scalar_lea.vmem [#allocation6], %s1275
          %1277 = dma.done %s1273, 128
        $region88: #{tpu_custom_call.1} parent=83 // pred_fallthru
          _
      $region84: #{tpu_custom_call.1} parent=5 // pred_fallthru
        _
    $region6: #{tpu_custom_call.1} parent=1 // loop_footer
      %s27 = sadd.s32 1, %s23
    $region7: #{tpu_custom_call.1} parent=1 // loop_footer_branch
      %22 = sbr.rel target = $region3
    $region8: #{tpu_custom_call.1} parent=1 // loop_exit
      _
    %1278 = vsyncpa [#allocation4], 1
    %s1279 = scalar_lea.sflag [#allocation4], 1
    %1280 = vsyncpa %s1279, 1
    %1281 = vsyncpa [#allocation5], 1
    %s1282 = scalar_lea.sflag [#allocation5], 1
    %1283 = vsyncpa %s1282, 1

</llo_original>
